<compile_context>
chip_gen: v7x
topology: tpu7x:2x2x1
jax: 0.10.0
libtpu: 0.0.40
codegen_flags: <defaults>
</compile_context>

<pallas_src>
import functools

import jax
import jax.numpy as jnp
from jax.experimental import pallas as pl
from jax.experimental.pallas import tpu as pltpu

HIGHEST = jax.lax.Precision.HIGHEST   # reference only
M_ = 16   # WeightNet M
G_ = 4    # WeightNet G


# --------------------------------------------------------------------------- #
# In-kernel helpers
# --------------------------------------------------------------------------- #

def _zero_halo(pad_ref, h, w, c):
    """Zero only the 1-pixel halo of the padded scratch; the interior is fully
    overwritten every grid step, so a full clear is wasted store-slot work."""
    z_row = jnp.zeros((1, w + 2, c), pad_ref.dtype)
    z_col = jnp.zeros((h + 2, 1, c), pad_ref.dtype)
    pad_ref[0:1, :, :] = z_row
    pad_ref[h + 1:h + 2, :, :] = z_row
    pad_ref[:, 0:1, :] = z_col
    pad_ref[:, w + 1:w + 2, :] = z_col


def _im2col(pad_ref, pat_ref, interior, h, w, cin, stride):
    """Write `interior` into the padded VMEM scratch, then scatter the nine 3x3 tap
    windows into the patch scratch at column offset tap*cin (no lane-axis concat).
    Returns the (ho*wo, 9*cin) bf16 patch matrix, K ordered (tap, channel)."""
    ho = (h - 1) // stride + 1
    wo = (w - 1) // stride + 1
    _zero_halo(pad_ref, h, w, cin)
    pad_ref[1:h + 1, 1:w + 1, :] = interior.astype(pad_ref.dtype)
    for kh in range(3):
        for kw in range(3):
            win = pad_ref[kh:kh + (ho - 1) * stride + 1,
                          kw:kw + (wo - 1) * stride + 1, :]
            if stride != 1:                       # only traced when stride > 1
                win = win[::stride, ::stride, :]
            tap = kh * 3 + kw
            pat_ref[:, tap * cin:(tap + 1) * cin] = win.reshape(ho * wo, cin)
    return pat_ref[...]


# --------------------------------------------------------------------------- #
# Fused BasicBlock kernel (one grid step == one sample)
# --------------------------------------------------------------------------- #

def _block_kernel(H, W, Cin, oup1, oup2, stride, has_proj, *refs):
    if has_proj:
        (x_ref, rw_ref, rb_ref,
         f1w1_ref, f1b1_ref, wp1_ref,
         f1w2_ref, f1b2_ref, wp2_ref,
         s1_ref, t1_ref, s2_ref, t2_ref,
         scw_ref, sct_ref, o_ref,
         pad1_ref, pad2_ref, pat1_ref, pat2_ref) = refs
    else:
        (x_ref, rw_ref, rb_ref,
         f1w1_ref, f1b1_ref, wp1_ref,
         f1w2_ref, f1b2_ref, wp2_ref,
         s1_ref, t1_ref, s2_ref, t2_ref,
         o_ref,
         pad1_ref, pad2_ref, pat1_ref, pat2_ref) = refs
        scw_ref = sct_ref = None

    Ho = (H - 1) // stride + 1
    Wo = (W - 1) // stride + 1
    x = x_ref[0]                                            # (H, W, Cin) f32

    # ---- weight generation: GAP -> reduce(1x1) -> [fc1 + sigmoid -> grouped fc2] x2
    gap = jnp.mean(x.reshape(H * W, Cin), axis=0, keepdims=True)          # (1, Cin) f32
    g = jnp.dot(gap.astype(jnp.bfloat16), rw_ref[...],
                preferred_element_type=jnp.float32) + rb_ref[...]         # (1, inp_gap)
    g_b = g.astype(jnp.bfloat16)

    def gen_weight(f1w_ref, f1b_ref, wp_ref, inp, oup):
        # fc1 columns pre-permuted to (c, s, u) order; sigmoid (f32) runs on the EUP.
        a = jax.nn.sigmoid(
            jnp.dot(g_b, f1w_ref[...], preferred_element_type=jnp.float32)
            + f1b_ref[...])                                               # (1, M*oup)
        rep = inp // G_          # conv-input channels served by one sub-group
        w = None
        # True grouped contraction: only M/G = 4 multiply-adds per tap element.
        for c in range(M_ // G_):
            # a_c[i, u] = a[0, (c, i // rep, u)]; built once per c from G lane
            # slices (broadcasts hoisted out of the accumulation).
            a_c = jnp.concatenate(
                [jnp.broadcast_to(
                    a[:, (c * G_ + s) * oup:(c * G_ + s + 1) * oup], (rep, oup))
                 for s in range(G_)], axis=0)                             # (inp, oup)
            term = wp_ref[c] * a_c[None]                                  # (9, inp, oup)
            w = term if w is None else w + term
        # (9, inp, oup) -> (9*inp, oup): leading-dim merge only (layout-trivial),
        # matching the (tap, channel) K-order of the im2col patch matrix.
        return w.reshape(9 * inp, oup).astype(jnp.bfloat16)

    w1 = gen_weight(f1w1_ref, f1b1_ref, wp1_ref, Cin, oup1)
    w2 = gen_weight(f1w2_ref, f1b2_ref, wp2_ref, oup1, oup2)

    # ---- conv1 (3x3, pad 1, stride) + BN1 + ReLU : one K=9*Cin bf16 MXU matmul
    p1 = _im2col(pad1_ref, pat1_ref, x, H, W, Cin, stride)
    y1 = jnp.dot(p1, w1, preferred_element_type=jnp.float32)
    y1 = jnp.maximum(y1 * s1_ref[...] + t1_ref[...], 0.0)                # (Ho*Wo, oup1)

    # ---- conv2 (3x3, pad 1, stride 1) + BN2 + shortcut + ReLU (out1 never leaves VMEM)
    p2 = _im2col(pad2_ref, pat2_ref, y1.reshape(Ho, Wo, oup1), Ho, Wo, oup1, 1)
    y2 = jnp.dot(p2, w2, preferred_element_type=jnp.float32)
    y2 = y2 * s2_ref[...] + t2_ref[...]                                  # (Ho*Wo, oup2)

    if has_proj:
        # fused 1x1 projection shortcut (BN scale folded into scw, shift in sct)
        sub = x if stride == 1 else x[::stride, ::stride, :]
        sub = sub.reshape(Ho * Wo, Cin).astype(jnp.bfloat16)
        y2 = y2 + jnp.dot(sub, scw_ref[...],
                          preferred_element_type=jnp.float32) + sct_ref[...]
    else:
        y2 = y2 + x.reshape(Ho * Wo, Cin)     # identity shortcut (stride 1, Cin == oup2)

    o_ref[0] = jnp.maximum(y2, 0.0).reshape(Ho, Wo, oup2).astype(o_ref.dtype)


# --------------------------------------------------------------------------- #
# Wrapper: one pallas_call, grid over batch
# --------------------------------------------------------------------------- #

def basic_block_forward(x_nchw, kp, stride=1):
    x = jnp.transpose(x_nchw, (0, 2, 3, 1)).astype(jnp.float32)          # NCHW -> NHWC
    B, H, W, Cin = x.shape
    oup1 = kp["bn1_scale"].shape[-1]
    oup2 = kp["bn2_scale"].shape[-1]
    Ho = (H - 1) // stride + 1
    Wo = (W - 1) // stride + 1
    has_proj = "sc_w" in kp
    assert has_proj or (stride == 1 and Cin == oup2)

    kernel = functools.partial(_block_kernel, H, W, Cin, oup1, oup2, stride, has_proj)

    params = [kp["reduce_w"], kp["reduce_b"],
              kp["fc1_w1"], kp["fc1_b1"], kp["wp1"],
              kp["fc1_w2"], kp["fc1_b2"], kp["wp2"],
              kp["bn1_scale"], kp["bn1_shift"], kp["bn2_scale"], kp["bn2_shift"]]
    if has_proj:
        params += [kp["sc_w"], kp["sc_shift"]]

    def full_spec(a):
        n = a.ndim

        def imap(b):
            return (0,) * n
        return pl.BlockSpec(a.shape, imap)    # whole array resident, DMA'd once

    in_specs = ([pl.BlockSpec((1, H, W, Cin), lambda b: (b, 0, 0, 0))]
                + [full_spec(a) for a in params])

    out = pl.pallas_call(
        kernel,
        out_shape=jax.ShapeDtypeStruct((B, Ho, Wo, oup2), x.dtype),
        grid=(B,),
        in_specs=in_specs,
        out_specs=pl.BlockSpec((1, Ho, Wo, oup2), lambda b: (b, 0, 0, 0)),
        scratch_shapes=[
            pltpu.VMEM((H + 2, W + 2, Cin), jnp.bfloat16),      # conv1 padded input
            pltpu.VMEM((Ho + 2, Wo + 2, oup1), jnp.bfloat16),   # conv2 padded input
            pltpu.VMEM((Ho * Wo, 9 * Cin), jnp.bfloat16),       # conv1 im2col patches
            pltpu.VMEM((Ho * Wo, 9 * oup1), jnp.bfloat16),      # conv2 im2col patches
        ],
        compiler_params=pltpu.CompilerParams(dimension_semantics=("parallel",)),
    )(x, *params)

    return jnp.transpose(out, (0, 3, 1, 2))                              # NHWC -> NCHW


# --------------------------------------------------------------------------- #
# Parameters: torch-layout params + one-time conversion to kernel layout
# --------------------------------------------------------------------------- #

def make_torch_params(key, in_planes, planes, stride):
    """Random parameters stored in the PyTorch module's native layouts."""
    inp_gap = max(16, in_planes // 16)
    keys = iter(jax.random.split(key, 24))

    def rnd(shape, scale=0.1):
        return scale * jax.random.normal(next(keys), shape, jnp.float32)

    p = {"in_planes": in_planes, "planes": planes, "stride": stride}
    p["reduce_w"] = rnd((inp_gap, in_planes))              # Conv2d weight (out, in)
    p["reduce_b"] = rnd((inp_gap,))

    def weightnet(inp, oup):
        fc1_w = rnd((M_ * oup, inp_gap))                   # (out, in)
        fc1_b = rnd((M_ * oup,))
        fc2_w = rnd((oup * inp * 9, M_ // G_))             # grouped conv (out, in/groups)
        return fc1_w, fc1_b, fc2_w

    p["wn1"] = weightnet(in_planes, planes)
    p["wn2"] = weightnet(planes, planes)

    def bn():
        return (1.0 + rnd((planes,)), rnd((planes,)),
                rnd((planes,)), 1.0 + jnp.abs(rnd((planes,))))

    p["bn1"], p["bn2"] = bn(), bn()
    if stride != 1 or in_planes != planes:                 # option 'B' shortcut
        p["sc_w"] = rnd((planes, in_planes))
        p["sc_bn"] = bn()
    return p


def prepare_params(tp):
    """Convert torch-layout params to kernel layouts (done once, offline):
    fc1 column permutation, grouped fc2 permutation, BN folding, bf16 MXU operands."""
    eps = 1e-5
    in_planes, planes = tp["in_planes"], tp["planes"]
    assert in_planes % G_ == 0 and planes % G_ == 0
    inp_gap = tp["reduce_w"].shape[0]

    kp = {"reduce_w": tp["reduce_w"].T.astype(jnp.bfloat16),   # (in, out), bf16 MXU side
          "reduce_b": tp["reduce_b"].reshape(1, -1)}

    def prep_weightnet(wn, inp, oup):
        fc1_w, fc1_b, fc2_w = wn
        # fc1 columns: torch order (u, s, c)  ->  kernel order (c, s, u)
        f1w = fc1_w.T.reshape(inp_gap, oup, G_, M_ // G_)
        f1w = jnp.transpose(f1w, (0, 3, 2, 1)).reshape(inp_gap, M_ * oup)
        f1b = fc1_b.reshape(oup, G_, M_ // G_)
        f1b = jnp.transpose(f1b, (2, 1, 0)).reshape(1, M_ * oup)
        # grouped fc2 weight pre-permuted to (c, tap, in_channel, out_channel)
        wp = fc2_w.reshape(oup, inp, 9, M_ // G_)
        wp = jnp.transpose(wp, (3, 2, 1, 0))                   # (M/G, 9, inp, oup), f32
        return f1w.astype(jnp.bfloat16), f1b, wp

    kp["fc1_w1"], kp["fc1_b1"], kp["wp1"] = prep_weightnet(tp["wn1"], in_planes, planes)
    kp["fc1_w2"], kp["fc1_b2"], kp["wp2"] = prep_weightnet(tp["wn2"], planes, planes)

    def fold_bn(bn):
        gamma, beta, mean, var = bn
        s = gamma / jnp.sqrt(var + eps)
        return s.reshape(1, -1), (beta - mean * s).reshape(1, -1)

    kp["bn1_scale"], kp["bn1_shift"] = fold_bn(tp["bn1"])
    kp["bn2_scale"], kp["bn2_shift"] = fold_bn(tp["bn2"])
    if "sc_w" in tp:
        s_sc, t_sc = fold_bn(tp["sc_bn"])
        kp["sc_w"] = (tp["sc_w"].T * s_sc).astype(jnp.bfloat16)  # (in, out), BN folded
        kp["sc_shift"] = t_sc
    return kp


# --------------------------------------------------------------------------- #
# Pure-JAX (XLA) reference implementing the torch semantics (eval-mode BN)
# --------------------------------------------------------------------------- #

def reference_forward(x_nchw, tp):
    eps = 1e-5
    stride = tp["stride"]
    x = x_nchw.astype(jnp.float32)
    B, Cin, H, W = x.shape
    planes = tp["planes"]

    x_gap = x.mean(axis=(2, 3))                                            # (B, Cin)
    g = jnp.dot(x_gap, tp["reduce_w"].T, precision=HIGHEST) + tp["reduce_b"]

    def gen_w(wn, inp, oup):
        fc1_w, fc1_b, fc2_w = wn
        a = jax.nn.sigmoid(jnp.dot(g, fc1_w.T, precision=HIGHEST) + fc1_b)  # (B, M*oup)
        a_g = a.reshape(B, G_ * oup, M_ // G_)
        w_g = fc2_w.reshape(G_ * oup, (oup * inp * 9) // (G_ * oup), M_ // G_)
        wf = jnp.einsum("bgc,gjc->bgj", a_g, w_g, precision=HIGHEST)
        return wf.reshape(B, oup, inp, 3, 3)

    def conv_one(xi, wi, s):
        return jax.lax.conv_general_dilated(
            xi[None], wi, (s, s), ((1, 1), (1, 1)),
            dimension_numbers=("NCHW", "OIHW", "NCHW"), precision=HIGHEST)[0]

    def bn(y, p):
        gamma, beta, mean, var = p
        return (gamma[None, :, None, None] * (y - mean[None, :, None, None])
                / jnp.sqrt(var[None, :, None, None] + eps) + beta[None, :, None, None])

    w1 = gen_w(tp["wn1"], Cin, planes)
    y1 = jax.vmap(lambda xi, wi: conv_one(xi, wi, stride))(x, w1)
    y1 = jax.nn.relu(bn(y1, tp["bn1"]))

    if stride == 1 and Cin == planes:
        sc = x
    else:
        sub = x[:, :, ::stride, ::stride]
        ysc = jnp.einsum("bchw,oc->bohw", sub, tp["sc_w"], precision=HIGHEST)
        sc = bn(ysc, tp["sc_bn"])

    w2 = gen_w(tp["wn2"], planes, planes)
    y2 = jax.vmap(lambda xi, wi: conv_one(xi, wi, 1))(y1, w2)
    return jax.nn.relu(bn(y2, tp["bn2"]) + sc)


# --------------------------------------------------------------------------- #

if __name__ == "__main__":
    B, H, W = 2, 8, 8
    configs = [
        (16, 16, 1),   # identity shortcut
        (16, 32, 1),   # option 'B' projection shortcut (in_planes != planes)
    ]

    key = jax.random.PRNGKey(0)
    for in_planes, planes, stride in configs:
        key, kx, kparam = jax.random.split(key, 3)
        x = jax.random.normal(kx, (B, in_planes, H, W), jnp.float32)

        tparams = make_torch_params(kparam, in_planes, planes, stride)
        kparams = prepare_params(tparams)

        fwd = jax.jit(functools.partial(basic_block_forward, stride=stride))
        out = jax.block_until_ready(fwd(x, kparams))

        ref = reference_forward(x, tparams)
        Ho = (H - 1) // stride + 1
        assert out.shape == ref.shape == (B, planes, Ho, Ho), (out.shape, ref.shape)
        # bf16 MXU operands in the kernel vs f32/HIGHEST reference -> relaxed tolerance.
        max_err = float(jnp.max(jnp.abs(out - ref)))
        assert max_err < 1e-1, f"max abs err {max_err}"

    print("KERNEL_OK")
</pallas_src>

<mosaic_0001>
module attributes {stable_mosaic.version = 11 : i64} {
  func.func @_block_kernel(%arg0: i32, %arg1: memref<1x8x8x16xf32, #tpu.memory_space<vmem>>, %arg2: memref<16x16xbf16, #tpu.memory_space<vmem>>, %arg3: memref<1x16xf32, #tpu.memory_space<vmem>>, %arg4: memref<16x256xbf16, #tpu.memory_space<vmem>>, %arg5: memref<1x256xf32, #tpu.memory_space<vmem>>, %arg6: memref<4x9x16x16xf32, #tpu.memory_space<vmem>>, %arg7: memref<16x256xbf16, #tpu.memory_space<vmem>>, %arg8: memref<1x256xf32, #tpu.memory_space<vmem>>, %arg9: memref<4x9x16x16xf32, #tpu.memory_space<vmem>>, %arg10: memref<1x16xf32, #tpu.memory_space<vmem>>, %arg11: memref<1x16xf32, #tpu.memory_space<vmem>>, %arg12: memref<1x16xf32, #tpu.memory_space<vmem>>, %arg13: memref<1x16xf32, #tpu.memory_space<vmem>>, %arg14: memref<1x8x8x16xf32, #tpu.memory_space<vmem>>, %arg15: memref<10x10x16xbf16, #tpu.memory_space<vmem>>, %arg16: memref<10x10x16xbf16, #tpu.memory_space<vmem>>, %arg17: memref<64x144xbf16, #tpu.memory_space<vmem>>, %arg18: memref<64x144xbf16, #tpu.memory_space<vmem>>) attributes {dimension_semantics = [#tpu.dimension_semantics<parallel>], iteration_bounds = array<i64: 2>, scalar_prefetch = 0 : i64, scratch_operands = 4 : i64, tpu.core_type = #tpu.core_type<tc>, window_params = [{transform_indices = @transform_0, window_bounds = array<i64: 1, 8, 8, 16>}, {pipeline_mode = #tpu.pipeline_mode<synchronous>, transform_indices = @transform_1, window_bounds = array<i64: 16, 16>}, {pipeline_mode = #tpu.pipeline_mode<synchronous>, transform_indices = @transform_2, window_bounds = array<i64: 1, 16>}, {pipeline_mode = #tpu.pipeline_mode<synchronous>, transform_indices = @transform_3, window_bounds = array<i64: 16, 256>}, {pipeline_mode = #tpu.pipeline_mode<synchronous>, transform_indices = @transform_4, window_bounds = array<i64: 1, 256>}, {pipeline_mode = #tpu.pipeline_mode<synchronous>, transform_indices = @transform_5, window_bounds = array<i64: 4, 9, 16, 16>}, {pipeline_mode = #tpu.pipeline_mode<synchronous>, transform_indices = @transform_6, window_bounds = array<i64: 16, 256>}, {pipeline_mode = #tpu.pipeline_mode<synchronous>, transform_indices = @transform_7, window_bounds = array<i64: 1, 256>}, {pipeline_mode = #tpu.pipeline_mode<synchronous>, transform_indices = @transform_8, window_bounds = array<i64: 4, 9, 16, 16>}, {pipeline_mode = #tpu.pipeline_mode<synchronous>, transform_indices = @transform_9, window_bounds = array<i64: 1, 16>}, {pipeline_mode = #tpu.pipeline_mode<synchronous>, transform_indices = @transform_10, window_bounds = array<i64: 1, 16>}, {pipeline_mode = #tpu.pipeline_mode<synchronous>, transform_indices = @transform_11, window_bounds = array<i64: 1, 16>}, {pipeline_mode = #tpu.pipeline_mode<synchronous>, transform_indices = @transform_12, window_bounds = array<i64: 1, 16>}, {transform_indices = @transform_13, window_bounds = array<i64: 1, 8, 8, 16>}]} {
    %c0 = arith.constant 0 : index
    %c0_0 = arith.constant 0 : index
    %c0_1 = arith.constant 0 : index
    %c0_2 = arith.constant 0 : index
    %0 = vector.load %arg1[%c0, %c0_0, %c0_1, %c0_2] : memref<1x8x8x16xf32, #tpu.memory_space<vmem>>, vector<1x8x8x16xf32>
    %1 = vector.shape_cast %0 : vector<1x8x8x16xf32> to vector<8x8x16xf32>
    %2 = vector.shape_cast %1 : vector<8x8x16xf32> to vector<64x16xf32>
    %cst = arith.constant dense<0.000000e+00> : vector<16xf32>
    %3 = vector.multi_reduction <add>, %2, %cst [0] : vector<64x16xf32> to vector<16xf32>
    %4 = vector.shape_cast %3 : vector<16xf32> to vector<1x16xf32>
    %cst_3 = arith.constant 6.400000e+01 : f32
    %5 = vector.broadcast %cst_3 : f32 to vector<1x16xf32>
    %6 = arith.divf %4, %5 : vector<1x16xf32>
    %7 = arith.truncf %6 : vector<1x16xf32> to vector<1x16xbf16>
    %c0_4 = arith.constant 0 : index
    %c0_5 = arith.constant 0 : index
    %8 = vector.load %arg2[%c0_4, %c0_5] : memref<16x16xbf16, #tpu.memory_space<vmem>>, vector<16x16xbf16>
    %cst_6 = arith.constant dense<0.000000e+00> : vector<1x16xf32>
    %9 = tpu.matmul %7, %8, %cst_6 {dimension_numbers = #tpu.dot_dimension_numbers<[1], [0], [0], [1], [0, 0, 1, 1], [], []>} : vector<1x16xbf16>, vector<16x16xbf16>, vector<1x16xf32> -> vector<1x16xf32>
    %c0_7 = arith.constant 0 : index
    %c0_8 = arith.constant 0 : index
    %10 = vector.load %arg3[%c0_7, %c0_8] : memref<1x16xf32, #tpu.memory_space<vmem>>, vector<1x16xf32>
    %11 = arith.addf %9, %10 : vector<1x16xf32>
    %12 = arith.truncf %11 : vector<1x16xf32> to vector<1x16xbf16>
    %c0_9 = arith.constant 0 : index
    %c0_10 = arith.constant 0 : index
    %13 = vector.load %arg4[%c0_9, %c0_10] : memref<16x256xbf16, #tpu.memory_space<vmem>>, vector<16x256xbf16>
    %cst_11 = arith.constant dense<0.000000e+00> : vector<1x256xf32>
    %14 = tpu.matmul %12, %13, %cst_11 {dimension_numbers = #tpu.dot_dimension_numbers<[1], [0], [0], [1], [0, 0, 1, 1], [], []>} : vector<1x16xbf16>, vector<16x256xbf16>, vector<1x256xf32> -> vector<1x256xf32>
    %c0_12 = arith.constant 0 : index
    %c0_13 = arith.constant 0 : index
    %15 = vector.load %arg5[%c0_12, %c0_13] : memref<1x256xf32, #tpu.memory_space<vmem>>, vector<1x256xf32>
    %16 = arith.addf %14, %15 : vector<1x256xf32>
    %17 = arith.negf %16 : vector<1x256xf32>
    %18 = math.exp %17 : vector<1x256xf32>
    %cst_14 = arith.constant 1.000000e+00 : f32
    %19 = vector.broadcast %cst_14 : f32 to vector<1x256xf32>
    %20 = arith.addf %19, %18 : vector<1x256xf32>
    %21 = arith.divf %19, %20 : vector<1x256xf32>
    %22 = vector.extract_strided_slice %21 {offsets = [0, 0], sizes = [1, 16], strides = [1, 1]} : vector<1x256xf32> to vector<1x16xf32>
    %23 = vector.shape_cast %22 : vector<1x16xf32> to vector<1x16xf32>
    %24 = vector.broadcast %23 : vector<1x16xf32> to vector<4x16xf32>
    %25 = vector.extract_strided_slice %21 {offsets = [0, 16], sizes = [1, 16], strides = [1, 1]} : vector<1x256xf32> to vector<1x16xf32>
    %26 = vector.shape_cast %25 : vector<1x16xf32> to vector<1x16xf32>
    %27 = vector.broadcast %26 : vector<1x16xf32> to vector<4x16xf32>
    %28 = vector.extract_strided_slice %21 {offsets = [0, 32], sizes = [1, 16], strides = [1, 1]} : vector<1x256xf32> to vector<1x16xf32>
    %29 = vector.shape_cast %28 : vector<1x16xf32> to vector<1x16xf32>
    %30 = vector.broadcast %29 : vector<1x16xf32> to vector<4x16xf32>
    %31 = vector.extract_strided_slice %21 {offsets = [0, 48], sizes = [1, 16], strides = [1, 1]} : vector<1x256xf32> to vector<1x16xf32>
    %32 = vector.shape_cast %31 : vector<1x16xf32> to vector<1x16xf32>
    %33 = vector.broadcast %32 : vector<1x16xf32> to vector<4x16xf32>
    %34 = tpu.concatenate %24, %27, %30, %33 in 0 : vector<4x16xf32>, vector<4x16xf32>, vector<4x16xf32>, vector<4x16xf32> -> vector<16x16xf32>
    %c0_15 = arith.constant 0 : index
    %c0_16 = arith.constant 0 : index
    %c0_17 = arith.constant 0 : index
    %c0_18 = arith.constant 0 : index
    %35 = vector.load %arg6[%c0_15, %c0_16, %c0_17, %c0_18] : memref<4x9x16x16xf32, #tpu.memory_space<vmem>>, vector<1x9x16x16xf32>
    %36 = vector.shape_cast %35 : vector<1x9x16x16xf32> to vector<9x16x16xf32>
    %37 = vector.shape_cast %34 : vector<16x16xf32> to vector<1x16x16xf32>
    %38 = vector.broadcast %37 : vector<1x16x16xf32> to vector<9x16x16xf32>
    %39 = arith.mulf %36, %38 : vector<9x16x16xf32>
    %40 = vector.extract_strided_slice %21 {offsets = [0, 64], sizes = [1, 16], strides = [1, 1]} : vector<1x256xf32> to vector<1x16xf32>
    %41 = vector.shape_cast %40 : vector<1x16xf32> to vector<1x16xf32>
    %42 = vector.broadcast %41 : vector<1x16xf32> to vector<4x16xf32>
    %43 = vector.extract_strided_slice %21 {offsets = [0, 80], sizes = [1, 16], strides = [1, 1]} : vector<1x256xf32> to vector<1x16xf32>
    %44 = vector.shape_cast %43 : vector<1x16xf32> to vector<1x16xf32>
    %45 = vector.broadcast %44 : vector<1x16xf32> to vector<4x16xf32>
    %46 = vector.extract_strided_slice %21 {offsets = [0, 96], sizes = [1, 16], strides = [1, 1]} : vector<1x256xf32> to vector<1x16xf32>
    %47 = vector.shape_cast %46 : vector<1x16xf32> to vector<1x16xf32>
    %48 = vector.broadcast %47 : vector<1x16xf32> to vector<4x16xf32>
    %49 = vector.extract_strided_slice %21 {offsets = [0, 112], sizes = [1, 16], strides = [1, 1]} : vector<1x256xf32> to vector<1x16xf32>
    %50 = vector.shape_cast %49 : vector<1x16xf32> to vector<1x16xf32>
    %51 = vector.broadcast %50 : vector<1x16xf32> to vector<4x16xf32>
    %52 = tpu.concatenate %42, %45, %48, %51 in 0 : vector<4x16xf32>, vector<4x16xf32>, vector<4x16xf32>, vector<4x16xf32> -> vector<16x16xf32>
    %c1 = arith.constant 1 : index
    %c0_19 = arith.constant 0 : index
    %c0_20 = arith.constant 0 : index
    %c0_21 = arith.constant 0 : index
    %53 = vector.load %arg6[%c1, %c0_19, %c0_20, %c0_21] : memref<4x9x16x16xf32, #tpu.memory_space<vmem>>, vector<1x9x16x16xf32>
    %54 = vector.shape_cast %53 : vector<1x9x16x16xf32> to vector<9x16x16xf32>
    %55 = vector.shape_cast %52 : vector<16x16xf32> to vector<1x16x16xf32>
    %56 = vector.broadcast %55 : vector<1x16x16xf32> to vector<9x16x16xf32>
    %57 = arith.mulf %54, %56 : vector<9x16x16xf32>
    %58 = arith.addf %39, %57 : vector<9x16x16xf32>
    %59 = vector.extract_strided_slice %21 {offsets = [0, 128], sizes = [1, 16], strides = [1, 1]} : vector<1x256xf32> to vector<1x16xf32>
    %60 = vector.shape_cast %59 : vector<1x16xf32> to vector<1x16xf32>
    %61 = vector.broadcast %60 : vector<1x16xf32> to vector<4x16xf32>
    %62 = vector.extract_strided_slice %21 {offsets = [0, 144], sizes = [1, 16], strides = [1, 1]} : vector<1x256xf32> to vector<1x16xf32>
    %63 = vector.shape_cast %62 : vector<1x16xf32> to vector<1x16xf32>
    %64 = vector.broadcast %63 : vector<1x16xf32> to vector<4x16xf32>
    %65 = vector.extract_strided_slice %21 {offsets = [0, 160], sizes = [1, 16], strides = [1, 1]} : vector<1x256xf32> to vector<1x16xf32>
    %66 = vector.shape_cast %65 : vector<1x16xf32> to vector<1x16xf32>
    %67 = vector.broadcast %66 : vector<1x16xf32> to vector<4x16xf32>
    %68 = vector.extract_strided_slice %21 {offsets = [0, 176], sizes = [1, 16], strides = [1, 1]} : vector<1x256xf32> to vector<1x16xf32>
    %69 = vector.shape_cast %68 : vector<1x16xf32> to vector<1x16xf32>
    %70 = vector.broadcast %69 : vector<1x16xf32> to vector<4x16xf32>
    %71 = tpu.concatenate %61, %64, %67, %70 in 0 : vector<4x16xf32>, vector<4x16xf32>, vector<4x16xf32>, vector<4x16xf32> -> vector<16x16xf32>
    %c2 = arith.constant 2 : index
    %c0_22 = arith.constant 0 : index
    %c0_23 = arith.constant 0 : index
    %c0_24 = arith.constant 0 : index
    %72 = vector.load %arg6[%c2, %c0_22, %c0_23, %c0_24] : memref<4x9x16x16xf32, #tpu.memory_space<vmem>>, vector<1x9x16x16xf32>
    %73 = vector.shape_cast %72 : vector<1x9x16x16xf32> to vector<9x16x16xf32>
    %74 = vector.shape_cast %71 : vector<16x16xf32> to vector<1x16x16xf32>
    %75 = vector.broadcast %74 : vector<1x16x16xf32> to vector<9x16x16xf32>
    %76 = arith.mulf %73, %75 : vector<9x16x16xf32>
    %77 = arith.addf %58, %76 : vector<9x16x16xf32>
    %78 = vector.extract_strided_slice %21 {offsets = [0, 192], sizes = [1, 16], strides = [1, 1]} : vector<1x256xf32> to vector<1x16xf32>
    %79 = vector.shape_cast %78 : vector<1x16xf32> to vector<1x16xf32>
    %80 = vector.broadcast %79 : vector<1x16xf32> to vector<4x16xf32>
    %81 = vector.extract_strided_slice %21 {offsets = [0, 208], sizes = [1, 16], strides = [1, 1]} : vector<1x256xf32> to vector<1x16xf32>
    %82 = vector.shape_cast %81 : vector<1x16xf32> to vector<1x16xf32>
    %83 = vector.broadcast %82 : vector<1x16xf32> to vector<4x16xf32>
    %84 = vector.extract_strided_slice %21 {offsets = [0, 224], sizes = [1, 16], strides = [1, 1]} : vector<1x256xf32> to vector<1x16xf32>
    %85 = vector.shape_cast %84 : vector<1x16xf32> to vector<1x16xf32>
    %86 = vector.broadcast %85 : vector<1x16xf32> to vector<4x16xf32>
    %87 = vector.extract_strided_slice %21 {offsets = [0, 240], sizes = [1, 16], strides = [1, 1]} : vector<1x256xf32> to vector<1x16xf32>
    %88 = vector.shape_cast %87 : vector<1x16xf32> to vector<1x16xf32>
    %89 = vector.broadcast %88 : vector<1x16xf32> to vector<4x16xf32>
    %90 = tpu.concatenate %80, %83, %86, %89 in 0 : vector<4x16xf32>, vector<4x16xf32>, vector<4x16xf32>, vector<4x16xf32> -> vector<16x16xf32>
    %c3 = arith.constant 3 : index
    %c0_25 = arith.constant 0 : index
    %c0_26 = arith.constant 0 : index
    %c0_27 = arith.constant 0 : index
    %91 = vector.load %arg6[%c3, %c0_25, %c0_26, %c0_27] : memref<4x9x16x16xf32, #tpu.memory_space<vmem>>, vector<1x9x16x16xf32>
    %92 = vector.shape_cast %91 : vector<1x9x16x16xf32> to vector<9x16x16xf32>
    %93 = vector.shape_cast %90 : vector<16x16xf32> to vector<1x16x16xf32>
    %94 = vector.broadcast %93 : vector<1x16x16xf32> to vector<9x16x16xf32>
    %95 = arith.mulf %92, %94 : vector<9x16x16xf32>
    %96 = arith.addf %77, %95 : vector<9x16x16xf32>
    %97 = vector.shape_cast %96 : vector<9x16x16xf32> to vector<144x16xf32>
    %98 = arith.truncf %97 : vector<144x16xf32> to vector<144x16xbf16>
    %c0_28 = arith.constant 0 : index
    %c0_29 = arith.constant 0 : index
    %99 = vector.load %arg7[%c0_28, %c0_29] : memref<16x256xbf16, #tpu.memory_space<vmem>>, vector<16x256xbf16>
    %cst_30 = arith.constant dense<0.000000e+00> : vector<1x256xf32>
    %100 = tpu.matmul %12, %99, %cst_30 {dimension_numbers = #tpu.dot_dimension_numbers<[1], [0], [0], [1], [0, 0, 1, 1], [], []>} : vector<1x16xbf16>, vector<16x256xbf16>, vector<1x256xf32> -> vector<1x256xf32>
    %c0_31 = arith.constant 0 : index
    %c0_32 = arith.constant 0 : index
    %101 = vector.load %arg8[%c0_31, %c0_32] : memref<1x256xf32, #tpu.memory_space<vmem>>, vector<1x256xf32>
    %102 = arith.addf %100, %101 : vector<1x256xf32>
    %103 = arith.negf %102 : vector<1x256xf32>
    %104 = math.exp %103 : vector<1x256xf32>
    %cst_33 = arith.constant 1.000000e+00 : f32
    %105 = vector.broadcast %cst_33 : f32 to vector<1x256xf32>
    %106 = arith.addf %105, %104 : vector<1x256xf32>
    %107 = arith.divf %105, %106 : vector<1x256xf32>
    %108 = vector.extract_strided_slice %107 {offsets = [0, 0], sizes = [1, 16], strides = [1, 1]} : vector<1x256xf32> to vector<1x16xf32>
    %109 = vector.shape_cast %108 : vector<1x16xf32> to vector<1x16xf32>
    %110 = vector.broadcast %109 : vector<1x16xf32> to vector<4x16xf32>
    %111 = vector.extract_strided_slice %107 {offsets = [0, 16], sizes = [1, 16], strides = [1, 1]} : vector<1x256xf32> to vector<1x16xf32>
    %112 = vector.shape_cast %111 : vector<1x16xf32> to vector<1x16xf32>
    %113 = vector.broadcast %112 : vector<1x16xf32> to vector<4x16xf32>
    %114 = vector.extract_strided_slice %107 {offsets = [0, 32], sizes = [1, 16], strides = [1, 1]} : vector<1x256xf32> to vector<1x16xf32>
    %115 = vector.shape_cast %114 : vector<1x16xf32> to vector<1x16xf32>
    %116 = vector.broadcast %115 : vector<1x16xf32> to vector<4x16xf32>
    %117 = vector.extract_strided_slice %107 {offsets = [0, 48], sizes = [1, 16], strides = [1, 1]} : vector<1x256xf32> to vector<1x16xf32>
    %118 = vector.shape_cast %117 : vector<1x16xf32> to vector<1x16xf32>
    %119 = vector.broadcast %118 : vector<1x16xf32> to vector<4x16xf32>
    %120 = tpu.concatenate %110, %113, %116, %119 in 0 : vector<4x16xf32>, vector<4x16xf32>, vector<4x16xf32>, vector<4x16xf32> -> vector<16x16xf32>
    %c0_34 = arith.constant 0 : index
    %c0_35 = arith.constant 0 : index
    %c0_36 = arith.constant 0 : index
    %c0_37 = arith.constant 0 : index
    %121 = vector.load %arg9[%c0_34, %c0_35, %c0_36, %c0_37] : memref<4x9x16x16xf32, #tpu.memory_space<vmem>>, vector<1x9x16x16xf32>
    %122 = vector.shape_cast %121 : vector<1x9x16x16xf32> to vector<9x16x16xf32>
    %123 = vector.shape_cast %120 : vector<16x16xf32> to vector<1x16x16xf32>
    %124 = vector.broadcast %123 : vector<1x16x16xf32> to vector<9x16x16xf32>
    %125 = arith.mulf %122, %124 : vector<9x16x16xf32>
    %126 = vector.extract_strided_slice %107 {offsets = [0, 64], sizes = [1, 16], strides = [1, 1]} : vector<1x256xf32> to vector<1x16xf32>
    %127 = vector.shape_cast %126 : vector<1x16xf32> to vector<1x16xf32>
    %128 = vector.broadcast %127 : vector<1x16xf32> to vector<4x16xf32>
    %129 = vector.extract_strided_slice %107 {offsets = [0, 80], sizes = [1, 16], strides = [1, 1]} : vector<1x256xf32> to vector<1x16xf32>
    %130 = vector.shape_cast %129 : vector<1x16xf32> to vector<1x16xf32>
    %131 = vector.broadcast %130 : vector<1x16xf32> to vector<4x16xf32>
    %132 = vector.extract_strided_slice %107 {offsets = [0, 96], sizes = [1, 16], strides = [1, 1]} : vector<1x256xf32> to vector<1x16xf32>
    %133 = vector.shape_cast %132 : vector<1x16xf32> to vector<1x16xf32>
    %134 = vector.broadcast %133 : vector<1x16xf32> to vector<4x16xf32>
    %135 = vector.extract_strided_slice %107 {offsets = [0, 112], sizes = [1, 16], strides = [1, 1]} : vector<1x256xf32> to vector<1x16xf32>
    %136 = vector.shape_cast %135 : vector<1x16xf32> to vector<1x16xf32>
    %137 = vector.broadcast %136 : vector<1x16xf32> to vector<4x16xf32>
    %138 = tpu.concatenate %128, %131, %134, %137 in 0 : vector<4x16xf32>, vector<4x16xf32>, vector<4x16xf32>, vector<4x16xf32> -> vector<16x16xf32>
    %c1_38 = arith.constant 1 : index
    %c0_39 = arith.constant 0 : index
    %c0_40 = arith.constant 0 : index
    %c0_41 = arith.constant 0 : index
    %139 = vector.load %arg9[%c1_38, %c0_39, %c0_40, %c0_41] : memref<4x9x16x16xf32, #tpu.memory_space<vmem>>, vector<1x9x16x16xf32>
    %140 = vector.shape_cast %139 : vector<1x9x16x16xf32> to vector<9x16x16xf32>
    %141 = vector.shape_cast %138 : vector<16x16xf32> to vector<1x16x16xf32>
    %142 = vector.broadcast %141 : vector<1x16x16xf32> to vector<9x16x16xf32>
    %143 = arith.mulf %140, %142 : vector<9x16x16xf32>
    %144 = arith.addf %125, %143 : vector<9x16x16xf32>
    %145 = vector.extract_strided_slice %107 {offsets = [0, 128], sizes = [1, 16], strides = [1, 1]} : vector<1x256xf32> to vector<1x16xf32>
    %146 = vector.shape_cast %145 : vector<1x16xf32> to vector<1x16xf32>
    %147 = vector.broadcast %146 : vector<1x16xf32> to vector<4x16xf32>
    %148 = vector.extract_strided_slice %107 {offsets = [0, 144], sizes = [1, 16], strides = [1, 1]} : vector<1x256xf32> to vector<1x16xf32>
    %149 = vector.shape_cast %148 : vector<1x16xf32> to vector<1x16xf32>
    %150 = vector.broadcast %149 : vector<1x16xf32> to vector<4x16xf32>
    %151 = vector.extract_strided_slice %107 {offsets = [0, 160], sizes = [1, 16], strides = [1, 1]} : vector<1x256xf32> to vector<1x16xf32>
    %152 = vector.shape_cast %151 : vector<1x16xf32> to vector<1x16xf32>
    %153 = vector.broadcast %152 : vector<1x16xf32> to vector<4x16xf32>
    %154 = vector.extract_strided_slice %107 {offsets = [0, 176], sizes = [1, 16], strides = [1, 1]} : vector<1x256xf32> to vector<1x16xf32>
    %155 = vector.shape_cast %154 : vector<1x16xf32> to vector<1x16xf32>
    %156 = vector.broadcast %155 : vector<1x16xf32> to vector<4x16xf32>
    %157 = tpu.concatenate %147, %150, %153, %156 in 0 : vector<4x16xf32>, vector<4x16xf32>, vector<4x16xf32>, vector<4x16xf32> -> vector<16x16xf32>
    %c2_42 = arith.constant 2 : index
    %c0_43 = arith.constant 0 : index
    %c0_44 = arith.constant 0 : index
    %c0_45 = arith.constant 0 : index
    %158 = vector.load %arg9[%c2_42, %c0_43, %c0_44, %c0_45] : memref<4x9x16x16xf32, #tpu.memory_space<vmem>>, vector<1x9x16x16xf32>
    %159 = vector.shape_cast %158 : vector<1x9x16x16xf32> to vector<9x16x16xf32>
    %160 = vector.shape_cast %157 : vector<16x16xf32> to vector<1x16x16xf32>
    %161 = vector.broadcast %160 : vector<1x16x16xf32> to vector<9x16x16xf32>
    %162 = arith.mulf %159, %161 : vector<9x16x16xf32>
    %163 = arith.addf %144, %162 : vector<9x16x16xf32>
    %164 = vector.extract_strided_slice %107 {offsets = [0, 192], sizes = [1, 16], strides = [1, 1]} : vector<1x256xf32> to vector<1x16xf32>
    %165 = vector.shape_cast %164 : vector<1x16xf32> to vector<1x16xf32>
    %166 = vector.broadcast %165 : vector<1x16xf32> to vector<4x16xf32>
    %167 = vector.extract_strided_slice %107 {offsets = [0, 208], sizes = [1, 16], strides = [1, 1]} : vector<1x256xf32> to vector<1x16xf32>
    %168 = vector.shape_cast %167 : vector<1x16xf32> to vector<1x16xf32>
    %169 = vector.broadcast %168 : vector<1x16xf32> to vector<4x16xf32>
    %170 = vector.extract_strided_slice %107 {offsets = [0, 224], sizes = [1, 16], strides = [1, 1]} : vector<1x256xf32> to vector<1x16xf32>
    %171 = vector.shape_cast %170 : vector<1x16xf32> to vector<1x16xf32>
    %172 = vector.broadcast %171 : vector<1x16xf32> to vector<4x16xf32>
    %173 = vector.extract_strided_slice %107 {offsets = [0, 240], sizes = [1, 16], strides = [1, 1]} : vector<1x256xf32> to vector<1x16xf32>
    %174 = vector.shape_cast %173 : vector<1x16xf32> to vector<1x16xf32>
    %175 = vector.broadcast %174 : vector<1x16xf32> to vector<4x16xf32>
    %176 = tpu.concatenate %166, %169, %172, %175 in 0 : vector<4x16xf32>, vector<4x16xf32>, vector<4x16xf32>, vector<4x16xf32> -> vector<16x16xf32>
    %c3_46 = arith.constant 3 : index
    %c0_47 = arith.constant 0 : index
    %c0_48 = arith.constant 0 : index
    %c0_49 = arith.constant 0 : index
    %177 = vector.load %arg9[%c3_46, %c0_47, %c0_48, %c0_49] : memref<4x9x16x16xf32, #tpu.memory_space<vmem>>, vector<1x9x16x16xf32>
    %178 = vector.shape_cast %177 : vector<1x9x16x16xf32> to vector<9x16x16xf32>
    %179 = vector.shape_cast %176 : vector<16x16xf32> to vector<1x16x16xf32>
    %180 = vector.broadcast %179 : vector<1x16x16xf32> to vector<9x16x16xf32>
    %181 = arith.mulf %178, %180 : vector<9x16x16xf32>
    %182 = arith.addf %163, %181 : vector<9x16x16xf32>
    %183 = vector.shape_cast %182 : vector<9x16x16xf32> to vector<144x16xf32>
    %184 = arith.truncf %183 : vector<144x16xf32> to vector<144x16xbf16>
    %cst_50 = arith.constant 0.000000e+00 : bf16
    %185 = vector.broadcast %cst_50 : bf16 to vector<1x10x16xbf16>
    %cst_51 = arith.constant 0.000000e+00 : bf16
    %186 = vector.broadcast %cst_51 : bf16 to vector<10x1x16xbf16>
    %c0_52 = arith.constant 0 : index
    %c0_53 = arith.constant 0 : index
    %c0_54 = arith.constant 0 : index
    %187 = vector.load %arg15[%c0_52, %c0_53, %c0_54] : memref<10x10x16xbf16, #tpu.memory_space<vmem>>, vector<1x10x16xbf16>
    tpu.vector_store %arg15[%c0_52, %c0_53, %c0_54], %185 {strides = array<i32>} : memref<10x10x16xbf16, #tpu.memory_space<vmem>>, vector<1x10x16xbf16>,
    %c9 = arith.constant 9 : index
    %c0_55 = arith.constant 0 : index
    %c0_56 = arith.constant 0 : index
    %188 = vector.load %arg15[%c9, %c0_55, %c0_56] : memref<10x10x16xbf16, #tpu.memory_space<vmem>>, vector<1x10x16xbf16>
    tpu.vector_store %arg15[%c9, %c0_55, %c0_56], %185 {strides = array<i32>} : memref<10x10x16xbf16, #tpu.memory_space<vmem>>, vector<1x10x16xbf16>,
    %c0_57 = arith.constant 0 : index
    %c0_58 = arith.constant 0 : index
    %c0_59 = arith.constant 0 : index
    %189 = vector.load %arg15[%c0_57, %c0_58, %c0_59] : memref<10x10x16xbf16, #tpu.memory_space<vmem>>, vector<10x1x16xbf16>
    tpu.vector_store %arg15[%c0_57, %c0_58, %c0_59], %186 {strides = array<i32>} : memref<10x10x16xbf16, #tpu.memory_space<vmem>>, vector<10x1x16xbf16>,
    %c0_60 = arith.constant 0 : index
    %c9_61 = arith.constant 9 : index
    %c0_62 = arith.constant 0 : index
    %190 = vector.load %arg15[%c0_60, %c9_61, %c0_62] : memref<10x10x16xbf16, #tpu.memory_space<vmem>>, vector<10x1x16xbf16>
    tpu.vector_store %arg15[%c0_60, %c9_61, %c0_62], %186 {strides = array<i32>} : memref<10x10x16xbf16, #tpu.memory_space<vmem>>, vector<10x1x16xbf16>,
    %191 = arith.truncf %1 : vector<8x8x16xf32> to vector<8x8x16xbf16>
    %c1_63 = arith.constant 1 : index
    %c1_64 = arith.constant 1 : index
    %c0_65 = arith.constant 0 : index
    %192 = vector.load %arg15[%c1_63, %c1_64, %c0_65] : memref<10x10x16xbf16, #tpu.memory_space<vmem>>, vector<8x8x16xbf16>
    tpu.vector_store %arg15[%c1_63, %c1_64, %c0_65], %191 {strides = array<i32>} : memref<10x10x16xbf16, #tpu.memory_space<vmem>>, vector<8x8x16xbf16>,
    %c0_66 = arith.constant 0 : index
    %c0_67 = arith.constant 0 : index
    %c0_68 = arith.constant 0 : index
    %193 = vector.load %arg15[%c0_66, %c0_67, %c0_68] : memref<10x10x16xbf16, #tpu.memory_space<vmem>>, vector<8x8x16xbf16>
    %194 = vector.shape_cast %193 : vector<8x8x16xbf16> to vector<64x16xbf16>
    %c0_69 = arith.constant 0 : index
    %c0_70 = arith.constant 0 : index
    %195 = vector.load %arg17[%c0_69, %c0_70] : memref<64x144xbf16, #tpu.memory_space<vmem>>, vector<64x16xbf16>
    tpu.vector_store %arg17[%c0_69, %c0_70], %194 {strides = array<i32>} : memref<64x144xbf16, #tpu.memory_space<vmem>>, vector<64x16xbf16>,
    %c0_71 = arith.constant 0 : index
    %c1_72 = arith.constant 1 : index
    %c0_73 = arith.constant 0 : index
    %196 = vector.load %arg15[%c0_71, %c1_72, %c0_73] : memref<10x10x16xbf16, #tpu.memory_space<vmem>>, vector<8x8x16xbf16>
    %197 = vector.shape_cast %196 : vector<8x8x16xbf16> to vector<64x16xbf16>
    %c0_74 = arith.constant 0 : index
    %c16 = arith.constant 16 : index
    %198 = vector.load %arg17[%c0_74, %c16] : memref<64x144xbf16, #tpu.memory_space<vmem>>, vector<64x16xbf16>
    tpu.vector_store %arg17[%c0_74, %c16], %197 {strides = array<i32>} : memref<64x144xbf16, #tpu.memory_space<vmem>>, vector<64x16xbf16>,
    %c0_75 = arith.constant 0 : index
    %c2_76 = arith.constant 2 : index
    %c0_77 = arith.constant 0 : index
    %199 = vector.load %arg15[%c0_75, %c2_76, %c0_77] : memref<10x10x16xbf16, #tpu.memory_space<vmem>>, vector<8x8x16xbf16>
    %200 = vector.shape_cast %199 : vector<8x8x16xbf16> to vector<64x16xbf16>
    %c0_78 = arith.constant 0 : index
    %c32 = arith.constant 32 : index
    %201 = vector.load %arg17[%c0_78, %c32] : memref<64x144xbf16, #tpu.memory_space<vmem>>, vector<64x16xbf16>
    tpu.vector_store %arg17[%c0_78, %c32], %200 {strides = array<i32>} : memref<64x144xbf16, #tpu.memory_space<vmem>>, vector<64x16xbf16>,
    %c1_79 = arith.constant 1 : index
    %c0_80 = arith.constant 0 : index
    %c0_81 = arith.constant 0 : index
    %202 = vector.load %arg15[%c1_79, %c0_80, %c0_81] : memref<10x10x16xbf16, #tpu.memory_space<vmem>>, vector<8x8x16xbf16>
    %203 = vector.shape_cast %202 : vector<8x8x16xbf16> to vector<64x16xbf16>
    %c0_82 = arith.constant 0 : index
    %c48 = arith.constant 48 : index
    %204 = vector.load %arg17[%c0_82, %c48] : memref<64x144xbf16, #tpu.memory_space<vmem>>, vector<64x16xbf16>
    tpu.vector_store %arg17[%c0_82, %c48], %203 {strides = array<i32>} : memref<64x144xbf16, #tpu.memory_space<vmem>>, vector<64x16xbf16>,
    %c1_83 = arith.constant 1 : index
    %c1_84 = arith.constant 1 : index
    %c0_85 = arith.constant 0 : index
    %205 = vector.load %arg15[%c1_83, %c1_84, %c0_85] : memref<10x10x16xbf16, #tpu.memory_space<vmem>>, vector<8x8x16xbf16>
    %206 = vector.shape_cast %205 : vector<8x8x16xbf16> to vector<64x16xbf16>
    %c0_86 = arith.constant 0 : index
    %c64 = arith.constant 64 : index
    %207 = vector.load %arg17[%c0_86, %c64] : memref<64x144xbf16, #tpu.memory_space<vmem>>, vector<64x16xbf16>
    tpu.vector_store %arg17[%c0_86, %c64], %206 {strides = array<i32>} : memref<64x144xbf16, #tpu.memory_space<vmem>>, vector<64x16xbf16>,
    %c1_87 = arith.constant 1 : index
    %c2_88 = arith.constant 2 : index
    %c0_89 = arith.constant 0 : index
    %208 = vector.load %arg15[%c1_87, %c2_88, %c0_89] : memref<10x10x16xbf16, #tpu.memory_space<vmem>>, vector<8x8x16xbf16>
    %209 = vector.shape_cast %208 : vector<8x8x16xbf16> to vector<64x16xbf16>
    %c0_90 = arith.constant 0 : index
    %c80 = arith.constant 80 : index
    %210 = vector.load %arg17[%c0_90, %c80] : memref<64x144xbf16, #tpu.memory_space<vmem>>, vector<64x16xbf16>
    tpu.vector_store %arg17[%c0_90, %c80], %209 {strides = array<i32>} : memref<64x144xbf16, #tpu.memory_space<vmem>>, vector<64x16xbf16>,
    %c2_91 = arith.constant 2 : index
    %c0_92 = arith.constant 0 : index
    %c0_93 = arith.constant 0 : index
    %211 = vector.load %arg15[%c2_91, %c0_92, %c0_93] : memref<10x10x16xbf16, #tpu.memory_space<vmem>>, vector<8x8x16xbf16>
    %212 = vector.shape_cast %211 : vector<8x8x16xbf16> to vector<64x16xbf16>
    %c0_94 = arith.constant 0 : index
    %c96 = arith.constant 96 : index
    %213 = vector.load %arg17[%c0_94, %c96] : memref<64x144xbf16, #tpu.memory_space<vmem>>, vector<64x16xbf16>
    tpu.vector_store %arg17[%c0_94, %c96], %212 {strides = array<i32>} : memref<64x144xbf16, #tpu.memory_space<vmem>>, vector<64x16xbf16>,
    %c2_95 = arith.constant 2 : index
    %c1_96 = arith.constant 1 : index
    %c0_97 = arith.constant 0 : index
    %214 = vector.load %arg15[%c2_95, %c1_96, %c0_97] : memref<10x10x16xbf16, #tpu.memory_space<vmem>>, vector<8x8x16xbf16>
    %215 = vector.shape_cast %214 : vector<8x8x16xbf16> to vector<64x16xbf16>
    %c0_98 = arith.constant 0 : index
    %c112 = arith.constant 112 : index
    %216 = vector.load %arg17[%c0_98, %c112] : memref<64x144xbf16, #tpu.memory_space<vmem>>, vector<64x16xbf16>
    tpu.vector_store %arg17[%c0_98, %c112], %215 {strides = array<i32>} : memref<64x144xbf16, #tpu.memory_space<vmem>>, vector<64x16xbf16>,
    %c2_99 = arith.constant 2 : index
    %c2_100 = arith.constant 2 : index
    %c0_101 = arith.constant 0 : index
    %217 = vector.load %arg15[%c2_99, %c2_100, %c0_101] : memref<10x10x16xbf16, #tpu.memory_space<vmem>>, vector<8x8x16xbf16>
    %218 = vector.shape_cast %217 : vector<8x8x16xbf16> to vector<64x16xbf16>
    %c0_102 = arith.constant 0 : index
    %c128 = arith.constant 128 : index
    %219 = vector.load %arg17[%c0_102, %c128] : memref<64x144xbf16, #tpu.memory_space<vmem>>, vector<64x16xbf16>
    tpu.vector_store %arg17[%c0_102, %c128], %218 {strides = array<i32>} : memref<64x144xbf16, #tpu.memory_space<vmem>>, vector<64x16xbf16>,
    %c0_103 = arith.constant 0 : index
    %c0_104 = arith.constant 0 : index
    %220 = vector.load %arg17[%c0_103, %c0_104] : memref<64x144xbf16, #tpu.memory_space<vmem>>, vector<64x144xbf16>
    %cst_105 = arith.constant dense<0.000000e+00> : vector<64x16xf32>
    %221 = tpu.matmul %220, %98, %cst_105 {dimension_numbers = #tpu.dot_dimension_numbers<[1], [0], [0], [1], [0, 0, 1, 1], [], []>} : vector<64x144xbf16>, vector<144x16xbf16>, vector<64x16xf32> -> vector<64x16xf32>
    %c0_106 = arith.constant 0 : index
    %c0_107 = arith.constant 0 : index
    %222 = vector.load %arg10[%c0_106, %c0_107] : memref<1x16xf32, #tpu.memory_space<vmem>>, vector<1x16xf32>
    %223 = vector.broadcast %222 : vector<1x16xf32> to vector<64x16xf32>
    %224 = arith.mulf %221, %223 : vector<64x16xf32>
    %c0_108 = arith.constant 0 : index
    %c0_109 = arith.constant 0 : index
    %225 = vector.load %arg11[%c0_108, %c0_109] : memref<1x16xf32, #tpu.memory_space<vmem>>, vector<1x16xf32>
    %226 = vector.broadcast %225 : vector<1x16xf32> to vector<64x16xf32>
    %227 = arith.addf %224, %226 : vector<64x16xf32>
    %cst_110 = arith.constant 0.000000e+00 : f32
    %228 = vector.broadcast %cst_110 : f32 to vector<64x16xf32>
    %229 = arith.maximumf %227, %228 : vector<64x16xf32>
    %230 = vector.shape_cast %229 : vector<64x16xf32> to vector<8x8x16xf32>
    %cst_111 = arith.constant 0.000000e+00 : bf16
    %231 = vector.broadcast %cst_111 : bf16 to vector<1x10x16xbf16>
    %cst_112 = arith.constant 0.000000e+00 : bf16
    %232 = vector.broadcast %cst_112 : bf16 to vector<10x1x16xbf16>
    %c0_113 = arith.constant 0 : index
    %c0_114 = arith.constant 0 : index
    %c0_115 = arith.constant 0 : index
    %233 = vector.load %arg16[%c0_113, %c0_114, %c0_115] : memref<10x10x16xbf16, #tpu.memory_space<vmem>>, vector<1x10x16xbf16>
    tpu.vector_store %arg16[%c0_113, %c0_114, %c0_115], %231 {strides = array<i32>} : memref<10x10x16xbf16, #tpu.memory_space<vmem>>, vector<1x10x16xbf16>,
    %c9_116 = arith.constant 9 : index
    %c0_117 = arith.constant 0 : index
    %c0_118 = arith.constant 0 : index
    %234 = vector.load %arg16[%c9_116, %c0_117, %c0_118] : memref<10x10x16xbf16, #tpu.memory_space<vmem>>, vector<1x10x16xbf16>
    tpu.vector_store %arg16[%c9_116, %c0_117, %c0_118], %231 {strides = array<i32>} : memref<10x10x16xbf16, #tpu.memory_space<vmem>>, vector<1x10x16xbf16>,
    %c0_119 = arith.constant 0 : index
    %c0_120 = arith.constant 0 : index
    %c0_121 = arith.constant 0 : index
    %235 = vector.load %arg16[%c0_119, %c0_120, %c0_121] : memref<10x10x16xbf16, #tpu.memory_space<vmem>>, vector<10x1x16xbf16>
    tpu.vector_store %arg16[%c0_119, %c0_120, %c0_121], %232 {strides = array<i32>} : memref<10x10x16xbf16, #tpu.memory_space<vmem>>, vector<10x1x16xbf16>,
    %c0_122 = arith.constant 0 : index
    %c9_123 = arith.constant 9 : index
    %c0_124 = arith.constant 0 : index
    %236 = vector.load %arg16[%c0_122, %c9_123, %c0_124] : memref<10x10x16xbf16, #tpu.memory_space<vmem>>, vector<10x1x16xbf16>
    tpu.vector_store %arg16[%c0_122, %c9_123, %c0_124], %232 {strides = array<i32>} : memref<10x10x16xbf16, #tpu.memory_space<vmem>>, vector<10x1x16xbf16>,
    %237 = arith.truncf %230 : vector<8x8x16xf32> to vector<8x8x16xbf16>
    %c1_125 = arith.constant 1 : index
    %c1_126 = arith.constant 1 : index
    %c0_127 = arith.constant 0 : index
    %238 = vector.load %arg16[%c1_125, %c1_126, %c0_127] : memref<10x10x16xbf16, #tpu.memory_space<vmem>>, vector<8x8x16xbf16>
    tpu.vector_store %arg16[%c1_125, %c1_126, %c0_127], %237 {strides = array<i32>} : memref<10x10x16xbf16, #tpu.memory_space<vmem>>, vector<8x8x16xbf16>,
    %c0_128 = arith.constant 0 : index
    %c0_129 = arith.constant 0 : index
    %c0_130 = arith.constant 0 : index
    %239 = vector.load %arg16[%c0_128, %c0_129, %c0_130] : memref<10x10x16xbf16, #tpu.memory_space<vmem>>, vector<8x8x16xbf16>
    %240 = vector.shape_cast %239 : vector<8x8x16xbf16> to vector<64x16xbf16>
    %c0_131 = arith.constant 0 : index
    %c0_132 = arith.constant 0 : index
    %241 = vector.load %arg18[%c0_131, %c0_132] : memref<64x144xbf16, #tpu.memory_space<vmem>>, vector<64x16xbf16>
    tpu.vector_store %arg18[%c0_131, %c0_132], %240 {strides = array<i32>} : memref<64x144xbf16, #tpu.memory_space<vmem>>, vector<64x16xbf16>,
    %c0_133 = arith.constant 0 : index
    %c1_134 = arith.constant 1 : index
    %c0_135 = arith.constant 0 : index
    %242 = vector.load %arg16[%c0_133, %c1_134, %c0_135] : memref<10x10x16xbf16, #tpu.memory_space<vmem>>, vector<8x8x16xbf16>
    %243 = vector.shape_cast %242 : vector<8x8x16xbf16> to vector<64x16xbf16>
    %c0_136 = arith.constant 0 : index
    %c16_137 = arith.constant 16 : index
    %244 = vector.load %arg18[%c0_136, %c16_137] : memref<64x144xbf16, #tpu.memory_space<vmem>>, vector<64x16xbf16>
    tpu.vector_store %arg18[%c0_136, %c16_137], %243 {strides = array<i32>} : memref<64x144xbf16, #tpu.memory_space<vmem>>, vector<64x16xbf16>,
    %c0_138 = arith.constant 0 : index
    %c2_139 = arith.constant 2 : index
    %c0_140 = arith.constant 0 : index
    %245 = vector.load %arg16[%c0_138, %c2_139, %c0_140] : memref<10x10x16xbf16, #tpu.memory_space<vmem>>, vector<8x8x16xbf16>
    %246 = vector.shape_cast %245 : vector<8x8x16xbf16> to vector<64x16xbf16>
    %c0_141 = arith.constant 0 : index
    %c32_142 = arith.constant 32 : index
    %247 = vector.load %arg18[%c0_141, %c32_142] : memref<64x144xbf16, #tpu.memory_space<vmem>>, vector<64x16xbf16>
    tpu.vector_store %arg18[%c0_141, %c32_142], %246 {strides = array<i32>} : memref<64x144xbf16, #tpu.memory_space<vmem>>, vector<64x16xbf16>,
    %c1_143 = arith.constant 1 : index
    %c0_144 = arith.constant 0 : index
    %c0_145 = arith.constant 0 : index
    %248 = vector.load %arg16[%c1_143, %c0_144, %c0_145] : memref<10x10x16xbf16, #tpu.memory_space<vmem>>, vector<8x8x16xbf16>
    %249 = vector.shape_cast %248 : vector<8x8x16xbf16> to vector<64x16xbf16>
    %c0_146 = arith.constant 0 : index
    %c48_147 = arith.constant 48 : index
    %250 = vector.load %arg18[%c0_146, %c48_147] : memref<64x144xbf16, #tpu.memory_space<vmem>>, vector<64x16xbf16>
    tpu.vector_store %arg18[%c0_146, %c48_147], %249 {strides = array<i32>} : memref<64x144xbf16, #tpu.memory_space<vmem>>, vector<64x16xbf16>,
    %c1_148 = arith.constant 1 : index
    %c1_149 = arith.constant 1 : index
    %c0_150 = arith.constant 0 : index
    %251 = vector.load %arg16[%c1_148, %c1_149, %c0_150] : memref<10x10x16xbf16, #tpu.memory_space<vmem>>, vector<8x8x16xbf16>
    %252 = vector.shape_cast %251 : vector<8x8x16xbf16> to vector<64x16xbf16>
    %c0_151 = arith.constant 0 : index
    %c64_152 = arith.constant 64 : index
    %253 = vector.load %arg18[%c0_151, %c64_152] : memref<64x144xbf16, #tpu.memory_space<vmem>>, vector<64x16xbf16>
    tpu.vector_store %arg18[%c0_151, %c64_152], %252 {strides = array<i32>} : memref<64x144xbf16, #tpu.memory_space<vmem>>, vector<64x16xbf16>,
    %c1_153 = arith.constant 1 : index
    %c2_154 = arith.constant 2 : index
    %c0_155 = arith.constant 0 : index
    %254 = vector.load %arg16[%c1_153, %c2_154, %c0_155] : memref<10x10x16xbf16, #tpu.memory_space<vmem>>, vector<8x8x16xbf16>
    %255 = vector.shape_cast %254 : vector<8x8x16xbf16> to vector<64x16xbf16>
    %c0_156 = arith.constant 0 : index
    %c80_157 = arith.constant 80 : index
    %256 = vector.load %arg18[%c0_156, %c80_157] : memref<64x144xbf16, #tpu.memory_space<vmem>>, vector<64x16xbf16>
    tpu.vector_store %arg18[%c0_156, %c80_157], %255 {strides = array<i32>} : memref<64x144xbf16, #tpu.memory_space<vmem>>, vector<64x16xbf16>,
    %c2_158 = arith.constant 2 : index
    %c0_159 = arith.constant 0 : index
    %c0_160 = arith.constant 0 : index
    %257 = vector.load %arg16[%c2_158, %c0_159, %c0_160] : memref<10x10x16xbf16, #tpu.memory_space<vmem>>, vector<8x8x16xbf16>
    %258 = vector.shape_cast %257 : vector<8x8x16xbf16> to vector<64x16xbf16>
    %c0_161 = arith.constant 0 : index
    %c96_162 = arith.constant 96 : index
    %259 = vector.load %arg18[%c0_161, %c96_162] : memref<64x144xbf16, #tpu.memory_space<vmem>>, vector<64x16xbf16>
    tpu.vector_store %arg18[%c0_161, %c96_162], %258 {strides = array<i32>} : memref<64x144xbf16, #tpu.memory_space<vmem>>, vector<64x16xbf16>,
    %c2_163 = arith.constant 2 : index
    %c1_164 = arith.constant 1 : index
    %c0_165 = arith.constant 0 : index
    %260 = vector.load %arg16[%c2_163, %c1_164, %c0_165] : memref<10x10x16xbf16, #tpu.memory_space<vmem>>, vector<8x8x16xbf16>
    %261 = vector.shape_cast %260 : vector<8x8x16xbf16> to vector<64x16xbf16>
    %c0_166 = arith.constant 0 : index
    %c112_167 = arith.constant 112 : index
    %262 = vector.load %arg18[%c0_166, %c112_167] : memref<64x144xbf16, #tpu.memory_space<vmem>>, vector<64x16xbf16>
    tpu.vector_store %arg18[%c0_166, %c112_167], %261 {strides = array<i32>} : memref<64x144xbf16, #tpu.memory_space<vmem>>, vector<64x16xbf16>,
    %c2_168 = arith.constant 2 : index
    %c2_169 = arith.constant 2 : index
    %c0_170 = arith.constant 0 : index
    %263 = vector.load %arg16[%c2_168, %c2_169, %c0_170] : memref<10x10x16xbf16, #tpu.memory_space<vmem>>, vector<8x8x16xbf16>
    %264 = vector.shape_cast %263 : vector<8x8x16xbf16> to vector<64x16xbf16>
    %c0_171 = arith.constant 0 : index
    %c128_172 = arith.constant 128 : index
    %265 = vector.load %arg18[%c0_171, %c128_172] : memref<64x144xbf16, #tpu.memory_space<vmem>>, vector<64x16xbf16>
    tpu.vector_store %arg18[%c0_171, %c128_172], %264 {strides = array<i32>} : memref<64x144xbf16, #tpu.memory_space<vmem>>, vector<64x16xbf16>,
    %c0_173 = arith.constant 0 : index
    %c0_174 = arith.constant 0 : index
    %266 = vector.load %arg18[%c0_173, %c0_174] : memref<64x144xbf16, #tpu.memory_space<vmem>>, vector<64x144xbf16>
    %cst_175 = arith.constant dense<0.000000e+00> : vector<64x16xf32>
    %267 = tpu.matmul %266, %184, %cst_175 {dimension_numbers = #tpu.dot_dimension_numbers<[1], [0], [0], [1], [0, 0, 1, 1], [], []>} : vector<64x144xbf16>, vector<144x16xbf16>, vector<64x16xf32> -> vector<64x16xf32>
    %c0_176 = arith.constant 0 : index
    %c0_177 = arith.constant 0 : index
    %268 = vector.load %arg12[%c0_176, %c0_177] : memref<1x16xf32, #tpu.memory_space<vmem>>, vector<1x16xf32>
    %269 = vector.broadcast %268 : vector<1x16xf32> to vector<64x16xf32>
    %270 = arith.mulf %267, %269 : vector<64x16xf32>
    %c0_178 = arith.constant 0 : index
    %c0_179 = arith.constant 0 : index
    %271 = vector.load %arg13[%c0_178, %c0_179] : memref<1x16xf32, #tpu.memory_space<vmem>>, vector<1x16xf32>
    %272 = vector.broadcast %271 : vector<1x16xf32> to vector<64x16xf32>
    %273 = arith.addf %270, %272 : vector<64x16xf32>
    %274 = vector.shape_cast %1 : vector<8x8x16xf32> to vector<64x16xf32>
    %275 = arith.addf %273, %274 : vector<64x16xf32>
    %cst_180 = arith.constant 0.000000e+00 : f32
    %276 = vector.broadcast %cst_180 : f32 to vector<64x16xf32>
    %277 = arith.maximumf %275, %276 : vector<64x16xf32>
    %278 = vector.shape_cast %277 : vector<64x16xf32> to vector<8x8x16xf32>
    %c0_181 = arith.constant 0 : index
    %c0_182 = arith.constant 0 : index
    %c0_183 = arith.constant 0 : index
    %c0_184 = arith.constant 0 : index
    %279 = vector.load %arg14[%c0_181, %c0_182, %c0_183, %c0_184] : memref<1x8x8x16xf32, #tpu.memory_space<vmem>>, vector<1x8x8x16xf32>
    %280 = vector.shape_cast %279 : vector<1x8x8x16xf32> to vector<8x8x16xf32>
    %281 = vector.shape_cast %278 : vector<8x8x16xf32> to vector<1x8x8x16xf32>
    tpu.vector_store %arg14[%c0_181, %c0_182, %c0_183, %c0_184], %281 {strides = array<i32>} : memref<1x8x8x16xf32, #tpu.memory_space<vmem>>, vector<1x8x8x16xf32>,
    return
  }
  func.func @transform_0(%arg0: i32) -> (i32, i32, i32, i32) {
    %c0_i32 = arith.constant 0 : i32
    %c0_i32_0 = arith.constant 0 : i32
    %c0_i32_1 = arith.constant 0 : i32
    %c0_i32_2 = arith.constant 0 : i32
    return %arg0, %c0_i32, %c0_i32_0, %c0_i32_1 : i32, i32, i32, i32
  }
  func.func @transform_1(%arg0: i32) -> (i32, i32) {
    %c0_i32 = arith.constant 0 : i32
    %c0_i32_0 = arith.constant 0 : i32
    %c0_i32_1 = arith.constant 0 : i32
    return %c0_i32, %c0_i32_0 : i32, i32
  }
  func.func @transform_2(%arg0: i32) -> (i32, i32) {
    %c0_i32 = arith.constant 0 : i32
    %c0_i32_0 = arith.constant 0 : i32
    %c0_i32_1 = arith.constant 0 : i32
    return %c0_i32, %c0_i32_0 : i32, i32
  }
  func.func @transform_3(%arg0: i32) -> (i32, i32) {
    %c0_i32 = arith.constant 0 : i32
    %c0_i32_0 = arith.constant 0 : i32
    %c0_i32_1 = arith.constant 0 : i32
    return %c0_i32, %c0_i32_0 : i32, i32
  }
  func.func @transform_4(%arg0: i32) -> (i32, i32) {
    %c0_i32 = arith.constant 0 : i32
    %c0_i32_0 = arith.constant 0 : i32
    %c0_i32_1 = arith.constant 0 : i32
    return %c0_i32, %c0_i32_0 : i32, i32
  }
  func.func @transform_5(%arg0: i32) -> (i32, i32, i32, i32) {
    %c0_i32 = arith.constant 0 : i32
    %c0_i32_0 = arith.constant 0 : i32
    %c0_i32_1 = arith.constant 0 : i32
    %c0_i32_2 = arith.constant 0 : i32
    %c0_i32_3 = arith.constant 0 : i32
    return %c0_i32, %c0_i32_0, %c0_i32_1, %c0_i32_2 : i32, i32, i32, i32
  }
  func.func @transform_6(%arg0: i32) -> (i32, i32) {
    %c0_i32 = arith.constant 0 : i32
    %c0_i32_0 = arith.constant 0 : i32
    %c0_i32_1 = arith.constant 0 : i32
    return %c0_i32, %c0_i32_0 : i32, i32
  }
  func.func @transform_7(%arg0: i32) -> (i32, i32) {
    %c0_i32 = arith.constant 0 : i32
    %c0_i32_0 = arith.constant 0 : i32
    %c0_i32_1 = arith.constant 0 : i32
    return %c0_i32, %c0_i32_0 : i32, i32
  }
  func.func @transform_8(%arg0: i32) -> (i32, i32, i32, i32) {
    %c0_i32 = arith.constant 0 : i32
    %c0_i32_0 = arith.constant 0 : i32
    %c0_i32_1 = arith.constant 0 : i32
    %c0_i32_2 = arith.constant 0 : i32
    %c0_i32_3 = arith.constant 0 : i32
    return %c0_i32, %c0_i32_0, %c0_i32_1, %c0_i32_2 : i32, i32, i32, i32
  }
  func.func @transform_9(%arg0: i32) -> (i32, i32) {
    %c0_i32 = arith.constant 0 : i32
    %c0_i32_0 = arith.constant 0 : i32
    %c0_i32_1 = arith.constant 0 : i32
    return %c0_i32, %c0_i32_0 : i32, i32
  }
  func.func @transform_10(%arg0: i32) -> (i32, i32) {
    %c0_i32 = arith.constant 0 : i32
    %c0_i32_0 = arith.constant 0 : i32
    %c0_i32_1 = arith.constant 0 : i32
    return %c0_i32, %c0_i32_0 : i32, i32
  }
  func.func @transform_11(%arg0: i32) -> (i32, i32) {
    %c0_i32 = arith.constant 0 : i32
    %c0_i32_0 = arith.constant 0 : i32
    %c0_i32_1 = arith.constant 0 : i32
    return %c0_i32, %c0_i32_0 : i32, i32
  }
  func.func @transform_12(%arg0: i32) -> (i32, i32) {
    %c0_i32 = arith.constant 0 : i32
    %c0_i32_0 = arith.constant 0 : i32
    %c0_i32_1 = arith.constant 0 : i32
    return %c0_i32, %c0_i32_0 : i32, i32
  }
  func.func @transform_13(%arg0: i32) -> (i32, i32, i32, i32) {
    %c0_i32 = arith.constant 0 : i32
    %c0_i32_0 = arith.constant 0 : i32
    %c0_i32_1 = arith.constant 0 : i32
    %c0_i32_2 = arith.constant 0 : i32
    return %arg0, %c0_i32, %c0_i32_0, %c0_i32_1 : i32, i32, i32, i32
  }
}

</mosaic_0001>

<llo_original>
// kernel: basic_block_forward.1
$region0: #{basic_block_forward.1}
  #allocation0 [shape = 'u32[]', space=smem, size = 0x4, offset = 0x4, fixed_abs, tag = 'smem constant byte address 0x4 - core index']
  #allocation1 [shape = 'u32[144,128]{1,0:T(1,128)}', space=vmem, size = 0x12000, scoped, tag = 'internal scratch']
  #allocation2 [shape = 'bf16[10,10,16]{2,1,0:T(8,128)(2,1)}', space=vmem, size = 0xa000, scoped, tag = 'scratch operand']
  #allocation3 [shape = 'bf16[10,10,16]{2,1,0:T(8,128)(2,1)}', space=vmem, size = 0xa000, scoped, tag = 'scratch operand']
  #allocation4 [shape = 'bf16[64,144]{1,0:T(16,128)(2,1)}', space=vmem, size = 0x8000, scoped, tag = 'scratch operand']
  #allocation5 [shape = 'bf16[64,144]{1,0:T(16,128)(2,1)}', space=vmem, size = 0x8000, scoped, tag = 'scratch operand']
  %s0 = inlined_call_operand.hbm [shape: f32[2,8,8,16], index: 0, kind: input, shape index: {}]
  %s1 = inlined_call_operand.vmem [shape: bf16[16,16], index: 1, kind: input, shape index: {}]
  %s2 = inlined_call_operand.vmem [shape: f32[1,16], index: 2, kind: input, shape index: {}]
  %s3 = inlined_call_operand.vmem [shape: bf16[16,256], index: 3, kind: input, shape index: {}]
  %s4 = inlined_call_operand.hbm [shape: f32[1,256], index: 4, kind: input, shape index: {}]
  %s5 = inlined_call_operand.hbm [shape: f32[4,9,16,16], index: 5, kind: input, shape index: {}]
  %s6 = inlined_call_operand.vmem [shape: bf16[16,256], index: 6, kind: input, shape index: {}]
  %s7 = inlined_call_operand.hbm [shape: f32[1,256], index: 7, kind: input, shape index: {}]
  %s8 = inlined_call_operand.hbm [shape: f32[4,9,16,16], index: 8, kind: input, shape index: {}]
  %s9 = inlined_call_operand.hbm [shape: f32[1,16], index: 9, kind: input, shape index: {}]
  %s10 = inlined_call_operand.hbm [shape: f32[1,16], index: 10, kind: input, shape index: {}]
  %s11 = inlined_call_operand.hbm [shape: f32[1,16], index: 11, kind: input, shape index: {}]
  %s12 = inlined_call_operand.hbm [shape: f32[1,16], index: 12, kind: input, shape index: {}]
  %s13 = inlined_call_operand.hbm [shape: f32[2,8,8,16], index: 13, kind: output, shape index: {}]
  %s14 = sld [smem:[#allocation0]]
  $region121: #{basic_block_forward.1} parent=0
    _
  %s16 = ssub.s32 1, %s14
  %s17 = scalar_select 0, %s16, %s14
  $region1: #{basic_block_forward.1} parent=0
    #allocation6 [shape = 'u8[65536]{0}', space=vmem, size = 0x10000, scoped, tag = 'input window, operand 0']
    #allocation7 [shape = 's32[2]{0}', space=sflag, size = 0x8, scoped, tag = 'scoped memory for basic_block_forward.1']
    #allocation8 [shape = 's32[2]{0}', space=sflag, size = 0x8, scoped, tag = 'scoped memory for basic_block_forward.1']
    #allocation9 [shape = 'u8[1024]{0}', space=vmem, size = 0x400, scoped, tag = 'input window, operand 4, single buffered']
    #allocation10 [shape = 's32[1]{0}', space=sflag, size = 0x4, scoped, tag = 'scoped memory for basic_block_forward.1']
    #allocation11 [shape = 'u8[294912]{0}', space=vmem, size = 0x48000, scoped, tag = 'input window, operand 5, single buffered']
    #allocation12 [shape = 'u8[1024]{0}', space=vmem, size = 0x400, scoped, tag = 'input window, operand 7, single buffered']
    #allocation13 [shape = 's32[1]{0}', space=sflag, size = 0x4, scoped, tag = 'scoped memory for basic_block_forward.1']
    #allocation14 [shape = 'u8[294912]{0}', space=vmem, size = 0x48000, scoped, tag = 'input window, operand 8, single buffered']
    #allocation15 [shape = 'u8[512]{0}', space=vmem, size = 0x400, scoped, tag = 'input window, operand 9, single buffered']
    #allocation16 [shape = 's32[1]{0}', space=sflag, size = 0x4, scoped, tag = 'scoped memory for basic_block_forward.1']
    #allocation17 [shape = 'u8[512]{0}', space=vmem, size = 0x400, scoped, tag = 'input window, operand 10, single buffered']
    #allocation18 [shape = 'u8[512]{0}', space=vmem, size = 0x400, scoped, tag = 'input window, operand 11, single buffered']
    #allocation19 [shape = 's32[1]{0}', space=sflag, size = 0x4, scoped, tag = 'scoped memory for basic_block_forward.1']
    #allocation20 [shape = 'u8[512]{0}', space=vmem, size = 0x400, scoped, tag = 'input window, operand 12, single buffered']
    #allocation21 [shape = 'u8[65536]{0}', space=vmem, size = 0x10000, scoped, tag = 'output window, operand 0']
    %18 = vsyncpa [#allocation7], 0
    %s19 = scalar_lea.sflag [#allocation7], 1
    %20 = vsyncpa %s19, 0
    %21 = vsyncpa [#allocation10], 0
    %22 = vsyncpa [#allocation13], 0
    %23 = vsyncpa [#allocation16], 0
    %24 = vsyncpa [#allocation19], 0
    %25 = vsyncpa [#allocation8], 0
    %s26 = scalar_lea.sflag [#allocation8], 1
    %27 = vsyncpa %s26, 0
    loop: start=0, step=1, limit=4
    $region2: #{basic_block_forward.1} parent=1 // loop_pre_header
      _
    $region3: #{basic_block_forward.1} parent=1 // loop_header
      %s29 = sphi 0, %s33
      %p30 = scmp.ge.s32.totalorder %s29, 4
      %s39 = sphi 0, %s41
      %s42 = sphi 0, %s39
      %s43 = sphi 0, %s42
      %s59 = sphi 0, %s43
      %s63 = sphi 0, %s63
      %s65 = sphi 0, %s63
      %s66 = sphi 0, %s65
      %s80 = sphi 0, %s66
      %s84 = sphi 0, %s84
      %s86 = sphi 0, %s84
      %s87 = sphi 0, %s86
      %s101 = sphi 0, %s87
      %s105 = sphi 0, %s105
      %s107 = sphi 0, %s105
      %s108 = sphi 0, %s107
      %s122 = sphi 0, %s108
      %s126 = sphi 0, %s126
      %s128 = sphi 0, %s126
      %s129 = sphi 0, %s128
      %s143 = sphi 0, %s129
      %s147 = sphi 0, %s147
      %s149 = sphi 0, %s147
      %s150 = sphi 0, %s149
      %s164 = sphi 0, %s150
      %s168 = sphi 0, %s168
      %s170 = sphi 0, %s168
      %s171 = sphi 0, %s170
      %s185 = sphi 0, %s171
      %s189 = sphi 0, %s189
      %s191 = sphi 0, %s189
      %s192 = sphi 0, %s191
      %s206 = sphi 0, %s192
      %s210 = sphi 0, %s210
      %s212 = sphi 0, %s210
      %s213 = sphi 0, %s212
      %s227 = sphi 0, %s213
      %s231 = sphi 0, %s231
      %s233 = sphi 0, %s231
      %s234 = sphi 0, %s233
      %s248 = sphi 0, %s234
      %s252 = sphi 0, %s252
      %s254 = sphi 0, %s252
      %s255 = sphi 0, %s254
      %s269 = sphi 0, %s255
      %s273 = sphi 0, %s273
      %s275 = sphi 0, %s273
      %s276 = sphi 0, %s275
      %s290 = sphi 0, %s276
      %s294 = sphi 0, %s294
      %s296 = sphi 0, %s294
      %s297 = sphi 0, %s296
      %s311 = sphi 0, %s297
      %s317 = sphi 0, %s319
      %s320 = sphi 0, %s317
      %s321 = sphi 0, %s320
      %s337 = sphi 0, %s321
    $region4: #{basic_block_forward.1} parent=1 // loop_header_branch
      %32 = sbr.rel (%p30) target = $region8
    $region5: #{basic_block_forward.1} parent=1 // loop_body
      %s34 = ssub.s32 %s29, 1
      %s35 = ssub.s32 %s29, 2
      %s36 = sadd.s32 %s29, 1
      %s37 = ssub.s32 %s29, %s36
      %p38 = scmp.eq.s32.totalorder %s37, 0
      %s40 = sadd.s32 %s39, 1
      %s41 = scalar_select %p38, %s39, %s40
      %p44 = pneg %p38
      %p45 = scmp.eq.s32.totalorder %s29, 1
      %p46 = por %p44, %p45
      %p47 = scmp.ne.s32.totalorder %s39, %s42
      %p48 = scmp.eq.s32.totalorder %s29, 0
      %p49 = por %p47, %p48
      %p50 = scmp.ne.s32.totalorder %s39, %s42
      %p51 = scmp.eq.s32.totalorder %s34, 1
      %p52 = por %p50, %p51
      %p53 = scmp.ne.s32.totalorder %s42, %s43
      %p54 = scmp.eq.s32.totalorder %s34, 0
      %p55 = por %p53, %p54
      %p56 = scmp.ne.s32.totalorder %s42, %s43
      %p57 = scmp.eq.s32.totalorder %s35, 1
      %p58 = por %p56, %p57
      %p60 = scmp.ne.s32.totalorder %s43, %s59
      %p61 = scmp.eq.s32.totalorder %s35, 0
      %p62 = por %p60, %p61
      %s64 = sadd.s32 %s63, 1
      %p67 = scmp.eq.s32.totalorder %s29, 1
      %p68 = scmp.ne.s32.totalorder %s63, %s65
      %p69 = scmp.eq.s32.totalorder %s29, 0
      %p70 = por %p68, %p69
      %p71 = scmp.ne.s32.totalorder %s63, %s65
      %p72 = scmp.eq.s32.totalorder %s34, 1
      %p73 = por %p71, %p72
      %p74 = scmp.ne.s32.totalorder %s65, %s66
      %p75 = scmp.eq.s32.totalorder %s34, 0
      %p76 = por %p74, %p75
      %p77 = scmp.ne.s32.totalorder %s65, %s66
      %p78 = scmp.eq.s32.totalorder %s35, 1
      %p79 = por %p77, %p78
      %p81 = scmp.ne.s32.totalorder %s66, %s80
      %p82 = scmp.eq.s32.totalorder %s35, 0
      %p83 = por %p81, %p82
      %s85 = sadd.s32 %s84, 1
      %p88 = scmp.eq.s32.totalorder %s29, 1
      %p89 = scmp.ne.s32.totalorder %s84, %s86
      %p90 = scmp.eq.s32.totalorder %s29, 0
      %p91 = por %p89, %p90
      %p92 = scmp.ne.s32.totalorder %s84, %s86
      %p93 = scmp.eq.s32.totalorder %s34, 1
      %p94 = por %p92, %p93
      %p95 = scmp.ne.s32.totalorder %s86, %s87
      %p96 = scmp.eq.s32.totalorder %s34, 0
      %p97 = por %p95, %p96
      %p98 = scmp.ne.s32.totalorder %s86, %s87
      %p99 = scmp.eq.s32.totalorder %s35, 1
      %p100 = por %p98, %p99
      %p102 = scmp.ne.s32.totalorder %s87, %s101
      %p103 = scmp.eq.s32.totalorder %s35, 0
      %p104 = por %p102, %p103
      %s106 = sadd.s32 %s105, 1
      %p109 = scmp.eq.s32.totalorder %s29, 1
      %p110 = scmp.ne.s32.totalorder %s105, %s107
      %p111 = scmp.eq.s32.totalorder %s29, 0
      %p112 = por %p110, %p111
      %p113 = scmp.ne.s32.totalorder %s105, %s107
      %p114 = scmp.eq.s32.totalorder %s34, 1
      %p115 = por %p113, %p114
      %p116 = scmp.ne.s32.totalorder %s107, %s108
      %p117 = scmp.eq.s32.totalorder %s34, 0
      %p118 = por %p116, %p117
      %p119 = scmp.ne.s32.totalorder %s107, %s108
      %p120 = scmp.eq.s32.totalorder %s35, 1
      %p121 = por %p119, %p120
      %p123 = scmp.ne.s32.totalorder %s108, %s122
      %p124 = scmp.eq.s32.totalorder %s35, 0
      %p125 = por %p123, %p124
      %s127 = sadd.s32 %s126, 1
      %p130 = scmp.eq.s32.totalorder %s29, 1
      %p131 = scmp.ne.s32.totalorder %s126, %s128
      %p132 = scmp.eq.s32.totalorder %s29, 0
      %p133 = por %p131, %p132
      %p134 = scmp.ne.s32.totalorder %s126, %s128
      %p135 = scmp.eq.s32.totalorder %s34, 1
      %p136 = por %p134, %p135
      %p137 = scmp.ne.s32.totalorder %s128, %s129
      %p138 = scmp.eq.s32.totalorder %s34, 0
      %p139 = por %p137, %p138
      %p140 = scmp.ne.s32.totalorder %s128, %s129
      %p141 = scmp.eq.s32.totalorder %s35, 1
      %p142 = por %p140, %p141
      %p144 = scmp.ne.s32.totalorder %s129, %s143
      %p145 = scmp.eq.s32.totalorder %s35, 0
      %p146 = por %p144, %p145
      %s148 = sadd.s32 %s147, 1
      %p151 = scmp.eq.s32.totalorder %s29, 1
      %p152 = scmp.ne.s32.totalorder %s147, %s149
      %p153 = scmp.eq.s32.totalorder %s29, 0
      %p154 = por %p152, %p153
      %p155 = scmp.ne.s32.totalorder %s147, %s149
      %p156 = scmp.eq.s32.totalorder %s34, 1
      %p157 = por %p155, %p156
      %p158 = scmp.ne.s32.totalorder %s149, %s150
      %p159 = scmp.eq.s32.totalorder %s34, 0
      %p160 = por %p158, %p159
      %p161 = scmp.ne.s32.totalorder %s149, %s150
      %p162 = scmp.eq.s32.totalorder %s35, 1
      %p163 = por %p161, %p162
      %p165 = scmp.ne.s32.totalorder %s150, %s164
      %p166 = scmp.eq.s32.totalorder %s35, 0
      %p167 = por %p165, %p166
      %s169 = sadd.s32 %s168, 1
      %p172 = scmp.eq.s32.totalorder %s29, 1
      %p173 = scmp.ne.s32.totalorder %s168, %s170
      %p174 = scmp.eq.s32.totalorder %s29, 0
      %p175 = por %p173, %p174
      %p176 = scmp.ne.s32.totalorder %s168, %s170
      %p177 = scmp.eq.s32.totalorder %s34, 1
      %p178 = por %p176, %p177
      %p179 = scmp.ne.s32.totalorder %s170, %s171
      %p180 = scmp.eq.s32.totalorder %s34, 0
      %p181 = por %p179, %p180
      %p182 = scmp.ne.s32.totalorder %s170, %s171
      %p183 = scmp.eq.s32.totalorder %s35, 1
      %p184 = por %p182, %p183
      %p186 = scmp.ne.s32.totalorder %s171, %s185
      %p187 = scmp.eq.s32.totalorder %s35, 0
      %p188 = por %p186, %p187
      %s190 = sadd.s32 %s189, 1
      %p193 = scmp.eq.s32.totalorder %s29, 1
      %p194 = scmp.ne.s32.totalorder %s189, %s191
      %p195 = scmp.eq.s32.totalorder %s29, 0
      %p196 = por %p194, %p195
      %p197 = scmp.ne.s32.totalorder %s189, %s191
      %p198 = scmp.eq.s32.totalorder %s34, 1
      %p199 = por %p197, %p198
      %p200 = scmp.ne.s32.totalorder %s191, %s192
      %p201 = scmp.eq.s32.totalorder %s34, 0
      %p202 = por %p200, %p201
      %p203 = scmp.ne.s32.totalorder %s191, %s192
      %p204 = scmp.eq.s32.totalorder %s35, 1
      %p205 = por %p203, %p204
      %p207 = scmp.ne.s32.totalorder %s192, %s206
      %p208 = scmp.eq.s32.totalorder %s35, 0
      %p209 = por %p207, %p208
      %s211 = sadd.s32 %s210, 1
      %p214 = scmp.eq.s32.totalorder %s29, 1
      %p215 = scmp.ne.s32.totalorder %s210, %s212
      %p216 = scmp.eq.s32.totalorder %s29, 0
      %p217 = por %p215, %p216
      %p218 = scmp.ne.s32.totalorder %s210, %s212
      %p219 = scmp.eq.s32.totalorder %s34, 1
      %p220 = por %p218, %p219
      %p221 = scmp.ne.s32.totalorder %s212, %s213
      %p222 = scmp.eq.s32.totalorder %s34, 0
      %p223 = por %p221, %p222
      %p224 = scmp.ne.s32.totalorder %s212, %s213
      %p225 = scmp.eq.s32.totalorder %s35, 1
      %p226 = por %p224, %p225
      %p228 = scmp.ne.s32.totalorder %s213, %s227
      %p229 = scmp.eq.s32.totalorder %s35, 0
      %p230 = por %p228, %p229
      %s232 = sadd.s32 %s231, 1
      %p235 = scmp.eq.s32.totalorder %s29, 1
      %p236 = scmp.ne.s32.totalorder %s231, %s233
      %p237 = scmp.eq.s32.totalorder %s29, 0
      %p238 = por %p236, %p237
      %p239 = scmp.ne.s32.totalorder %s231, %s233
      %p240 = scmp.eq.s32.totalorder %s34, 1
      %p241 = por %p239, %p240
      %p242 = scmp.ne.s32.totalorder %s233, %s234
      %p243 = scmp.eq.s32.totalorder %s34, 0
      %p244 = por %p242, %p243
      %p245 = scmp.ne.s32.totalorder %s233, %s234
      %p246 = scmp.eq.s32.totalorder %s35, 1
      %p247 = por %p245, %p246
      %p249 = scmp.ne.s32.totalorder %s234, %s248
      %p250 = scmp.eq.s32.totalorder %s35, 0
      %p251 = por %p249, %p250
      %s253 = sadd.s32 %s252, 1
      %p256 = scmp.eq.s32.totalorder %s29, 1
      %p257 = scmp.ne.s32.totalorder %s252, %s254
      %p258 = scmp.eq.s32.totalorder %s29, 0
      %p259 = por %p257, %p258
      %p260 = scmp.ne.s32.totalorder %s252, %s254
      %p261 = scmp.eq.s32.totalorder %s34, 1
      %p262 = por %p260, %p261
      %p263 = scmp.ne.s32.totalorder %s254, %s255
      %p264 = scmp.eq.s32.totalorder %s34, 0
      %p265 = por %p263, %p264
      %p266 = scmp.ne.s32.totalorder %s254, %s255
      %p267 = scmp.eq.s32.totalorder %s35, 1
      %p268 = por %p266, %p267
      %p270 = scmp.ne.s32.totalorder %s255, %s269
      %p271 = scmp.eq.s32.totalorder %s35, 0
      %p272 = por %p270, %p271
      %s274 = sadd.s32 %s273, 1
      %p277 = scmp.eq.s32.totalorder %s29, 1
      %p278 = scmp.ne.s32.totalorder %s273, %s275
      %p279 = scmp.eq.s32.totalorder %s29, 0
      %p280 = por %p278, %p279
      %p281 = scmp.ne.s32.totalorder %s273, %s275
      %p282 = scmp.eq.s32.totalorder %s34, 1
      %p283 = por %p281, %p282
      %p284 = scmp.ne.s32.totalorder %s275, %s276
      %p285 = scmp.eq.s32.totalorder %s34, 0
      %p286 = por %p284, %p285
      %p287 = scmp.ne.s32.totalorder %s275, %s276
      %p288 = scmp.eq.s32.totalorder %s35, 1
      %p289 = por %p287, %p288
      %p291 = scmp.ne.s32.totalorder %s276, %s290
      %p292 = scmp.eq.s32.totalorder %s35, 0
      %p293 = por %p291, %p292
      %s295 = sadd.s32 %s294, 1
      %p298 = scmp.eq.s32.totalorder %s29, 1
      %p299 = scmp.ne.s32.totalorder %s294, %s296
      %p300 = scmp.eq.s32.totalorder %s29, 0
      %p301 = por %p299, %p300
      %p302 = scmp.ne.s32.totalorder %s294, %s296
      %p303 = scmp.eq.s32.totalorder %s34, 1
      %p304 = por %p302, %p303
      %p305 = scmp.ne.s32.totalorder %s296, %s297
      %p306 = scmp.eq.s32.totalorder %s34, 0
      %p307 = por %p305, %p306
      %p308 = scmp.ne.s32.totalorder %s296, %s297
      %p309 = scmp.eq.s32.totalorder %s35, 1
      %p310 = por %p308, %p309
      %p312 = scmp.ne.s32.totalorder %s297, %s311
      %p313 = scmp.eq.s32.totalorder %s35, 0
      %p314 = por %p312, %p313
      %s315 = ssub.s32 %s29, %s36
      %p316 = scmp.eq.s32.totalorder %s315, 0
      %s318 = sadd.s32 %s317, 1
      %s319 = scalar_select %p316, %s317, %s318
      %p322 = pneg %p316
      %p323 = scmp.eq.s32.totalorder %s29, 1
      %p324 = por %p322, %p323
      %p325 = scmp.ne.s32.totalorder %s317, %s320
      %p326 = scmp.eq.s32.totalorder %s29, 0
      %p327 = por %p325, %p326
      %p328 = scmp.ne.s32.totalorder %s317, %s320
      %p329 = scmp.eq.s32.totalorder %s34, 1
      %p330 = por %p328, %p329
      %p331 = scmp.ne.s32.totalorder %s320, %s321
      %p332 = scmp.eq.s32.totalorder %s34, 0
      %p333 = por %p331, %p332
      %p334 = scmp.ne.s32.totalorder %s320, %s321
      %p335 = scmp.eq.s32.totalorder %s35, 1
      %p336 = por %p334, %p335
      %p338 = scmp.ne.s32.totalorder %s321, %s337
      %p339 = scmp.eq.s32.totalorder %s35, 0
      %p340 = por %p338, %p339
      %p341 = scmp.le.s32.totalorder 1, %s29
      %p342 = scmp.lt.s32.totalorder %s29, 3
      %p343 = pnand %p341, %p342
      %p344 = pneg %p343
      // Predicated region
      $region9: #{basic_block_forward.1} parent=5 // pred_check
        _
      $region10: #{basic_block_forward.1} parent=5 // pred_check_branch
        %346 = sbr.rel (%p343) target = $region12
      $region11: #{basic_block_forward.1} parent=5 // pred_region
        %s347 = ssub.s32 %s29, 1
        // Predicated region
        $region13: #{basic_block_forward.1} parent=11 // pred_check
          %p348 = pneg %p76
        $region14: #{basic_block_forward.1} parent=11 // pred_check_branch
          %350 = sbr.rel (%p348) target = $region16
        $region15: #{basic_block_forward.1} parent=11 // pred_region
          _
        $region16: #{basic_block_forward.1} parent=11 // pred_fallthru
          _
        // Predicated region
        $region17: #{basic_block_forward.1} parent=11 // pred_check
          %p351 = pneg %p97
        $region18: #{basic_block_forward.1} parent=11 // pred_check_branch
          %353 = sbr.rel (%p351) target = $region20
        $region19: #{basic_block_forward.1} parent=11 // pred_region
          _
        $region20: #{basic_block_forward.1} parent=11 // pred_fallthru
          _
        // Predicated region
        $region21: #{basic_block_forward.1} parent=11 // pred_check
          %p354 = pneg %p118
        $region22: #{basic_block_forward.1} parent=11 // pred_check_branch
          %356 = sbr.rel (%p354) target = $region24
        $region23: #{basic_block_forward.1} parent=11 // pred_region
          _
        $region24: #{basic_block_forward.1} parent=11 // pred_fallthru
          _
        // Predicated region
        $region25: #{basic_block_forward.1} parent=11 // pred_check
          %p357 = pneg %p139
        $region26: #{basic_block_forward.1} parent=11 // pred_check_branch
          %359 = sbr.rel (%p357) target = $region28
        $region27: #{basic_block_forward.1} parent=11 // pred_region
          %s361 = ssub.s32 32, 32
          %362 = vsyncadd [#allocation10], %s361
          %s364 = sshll.u32 [#allocation9], 4
          %s365 = int_to_ptr.vmem [resolvable:$true] %s364
          %367 = dma.hbm_to_vmem [thread:$0]  %s4, 32, %s365, [#allocation10]
        $region28: #{basic_block_forward.1} parent=11 // pred_fallthru
          _
        // Predicated region
        $region29: #{basic_block_forward.1} parent=11 // pred_check
          %p368 = pneg %p160
        $region30: #{basic_block_forward.1} parent=11 // pred_check_branch
          %370 = sbr.rel (%p368) target = $region32
        $region31: #{basic_block_forward.1} parent=11 // pred_region
          %s372 = ssub.s32 9216, 9216
          %373 = vsyncadd [#allocation10], %s372
          %s374 = sshll.u32 [#allocation11], 4
          %s375 = int_to_ptr.vmem [resolvable:$true] %s374
          %380 = dma.hbm_to_vmem [thread:$0]  %s5, 9216, %s375, [#allocation10], 128, 128, 8
        $region32: #{basic_block_forward.1} parent=11 // pred_fallthru
          _
        // Predicated region
        $region33: #{basic_block_forward.1} parent=11 // pred_check
          %p381 = pneg %p181
        $region34: #{basic_block_forward.1} parent=11 // pred_check_branch
          %383 = sbr.rel (%p381) target = $region36
        $region35: #{basic_block_forward.1} parent=11 // pred_region
          _
        $region36: #{basic_block_forward.1} parent=11 // pred_fallthru
          _
        // Predicated region
        $region37: #{basic_block_forward.1} parent=11 // pred_check
          %p384 = pneg %p202
        $region38: #{basic_block_forward.1} parent=11 // pred_check_branch
          %386 = sbr.rel (%p384) target = $region40
        $region39: #{basic_block_forward.1} parent=11 // pred_region
          %s388 = ssub.s32 32, 32
          %389 = vsyncadd [#allocation13], %s388
          %s391 = sshll.u32 [#allocation12], 4
          %s392 = int_to_ptr.vmem [resolvable:$true] %s391
          %394 = dma.hbm_to_vmem [thread:$0]  %s7, 32, %s392, [#allocation13]
        $region40: #{basic_block_forward.1} parent=11 // pred_fallthru
          _
        // Predicated region
        $region41: #{basic_block_forward.1} parent=11 // pred_check
          %p395 = pneg %p223
        $region42: #{basic_block_forward.1} parent=11 // pred_check_branch
          %397 = sbr.rel (%p395) target = $region44
        $region43: #{basic_block_forward.1} parent=11 // pred_region
          %s399 = ssub.s32 9216, 9216
          %400 = vsyncadd [#allocation13], %s399
          %s401 = sshll.u32 [#allocation14], 4
          %s402 = int_to_ptr.vmem [resolvable:$true] %s401
          %407 = dma.hbm_to_vmem [thread:$0]  %s8, 9216, %s402, [#allocation13], 128, 128, 8
        $region44: #{basic_block_forward.1} parent=11 // pred_fallthru
          _
        // Predicated region
        $region45: #{basic_block_forward.1} parent=11 // pred_check
          %p408 = pneg %p244
        $region46: #{basic_block_forward.1} parent=11 // pred_check_branch
          %410 = sbr.rel (%p408) target = $region48
        $region47: #{basic_block_forward.1} parent=11 // pred_region
          %s412 = ssub.s32 16, 16
          %413 = vsyncadd [#allocation16], %s412
          %s415 = sshll.u32 [#allocation15], 4
          %s416 = int_to_ptr.vmem [resolvable:$true] %s415
          %418 = dma.hbm_to_vmem [thread:$0]  %s9, 16, %s416, [#allocation16]
        $region48: #{basic_block_forward.1} parent=11 // pred_fallthru
          _
        // Predicated region
        $region49: #{basic_block_forward.1} parent=11 // pred_check
          %p419 = pneg %p265
        $region50: #{basic_block_forward.1} parent=11 // pred_check_branch
          %421 = sbr.rel (%p419) target = $region52
        $region51: #{basic_block_forward.1} parent=11 // pred_region
          %s423 = ssub.s32 16, 16
          %424 = vsyncadd [#allocation16], %s423
          %s426 = sshll.u32 [#allocation17], 4
          %s427 = int_to_ptr.vmem [resolvable:$true] %s426
          %429 = dma.hbm_to_vmem [thread:$0]  %s10, 16, %s427, [#allocation16]
        $region52: #{basic_block_forward.1} parent=11 // pred_fallthru
          _
        // Predicated region
        $region53: #{basic_block_forward.1} parent=11 // pred_check
          %p430 = pneg %p286
        $region54: #{basic_block_forward.1} parent=11 // pred_check_branch
          %432 = sbr.rel (%p430) target = $region56
        $region55: #{basic_block_forward.1} parent=11 // pred_region
          %s434 = ssub.s32 16, 16
          %435 = vsyncadd [#allocation19], %s434
          %s437 = sshll.u32 [#allocation18], 4
          %s438 = int_to_ptr.vmem [resolvable:$true] %s437
          %440 = dma.hbm_to_vmem [thread:$0]  %s11, 16, %s438, [#allocation19]
        $region56: #{basic_block_forward.1} parent=11 // pred_fallthru
          _
        // Predicated region
        $region57: #{basic_block_forward.1} parent=11 // pred_check
          %p441 = pneg %p307
        $region58: #{basic_block_forward.1} parent=11 // pred_check_branch
          %443 = sbr.rel (%p441) target = $region60
        $region59: #{basic_block_forward.1} parent=11 // pred_region
          %s445 = ssub.s32 16, 16
          %446 = vsyncadd [#allocation19], %s445
          %s448 = sshll.u32 [#allocation20], 4
          %s449 = int_to_ptr.vmem [resolvable:$true] %s448
          %451 = dma.hbm_to_vmem [thread:$0]  %s12, 16, %s449, [#allocation19]
        $region60: #{basic_block_forward.1} parent=11 // pred_fallthru
          _
      $region12: #{basic_block_forward.1} parent=5 // pred_fallthru
        _
      %p452 = scmp.lt.s32.totalorder %s29, 2
      // Predicated region
      $region61: #{basic_block_forward.1} parent=5 // pred_check
        %p453 = pneg %p452
      $region62: #{basic_block_forward.1} parent=5 // pred_check_branch
        %455 = sbr.rel (%p453) target = $region64
      $region63: #{basic_block_forward.1} parent=5 // pred_region
        // Predicated region
        $region65: #{basic_block_forward.1} parent=63 // pred_check
          %p456 = pneg %p49
        $region66: #{basic_block_forward.1} parent=63 // pred_check_branch
          %458 = sbr.rel (%p456) target = $region68
        $region67: #{basic_block_forward.1} parent=63 // pred_region
          %s459 = sand.u32 %s39, 1
          %s460 = scalar_lea.sflag [#allocation7], %s459
          %s461 = sand.u32 %s39, 1
          %s462 = smul.addr %s461, 64
          %s463 = scalar_lea.vmem [#allocation6], %s462
          %s465 = ssub.s32 1024, 1024
          %466 = vsyncadd %s460, %s465
          %s467 = smul.addr %s29, 8
          %s468 = smul.addr %s467, 128
          %s469 = scalar_lea.hbm %s0, %s468
          %s470 = sshll.u32 %s463, 4
          %s471 = int_to_ptr.vmem [resolvable:$true] %s470
          %476 = dma.hbm_to_vmem [thread:$0]  %s469, 1024, %s471, %s460, 128, 128, 8
        $region68: #{basic_block_forward.1} parent=63 // pred_fallthru
          _
      $region64: #{basic_block_forward.1} parent=5 // pred_fallthru
        _
      %p477 = scmp.le.s32.totalorder 1, %s29
      %p478 = scmp.lt.s32.totalorder %s29, 3
      %p479 = pnand %p477, %p478
      %p480 = pneg %p479
      // Predicated region
      $region69: #{basic_block_forward.1} parent=5 // pred_check
        _
      $region70: #{basic_block_forward.1} parent=5 // pred_check_branch
        %482 = sbr.rel (%p479) target = $region72
      $region71: #{basic_block_forward.1} parent=5 // pred_region
        %s483 = ssub.s32 %s29, 1
        %s484 = sand.u32 %s42, 1
        %s485 = scalar_lea.sflag [#allocation7], %s484
        %s486 = sand.u32 %s42, 1
        %s487 = smul.addr %s486, 64
        %s488 = scalar_lea.vmem [#allocation6], %s487
        // Predicated region
        $region73: #{basic_block_forward.1} parent=71 // pred_check
          %p489 = pneg %p55
        $region74: #{basic_block_forward.1} parent=71 // pred_check_branch
          %491 = sbr.rel (%p489) target = $region76
        $region75: #{basic_block_forward.1} parent=71 // pred_region
          %492 = dma.done %s485, 1024
        $region76: #{basic_block_forward.1} parent=71 // pred_fallthru
          _
        // Predicated region
        $region77: #{basic_block_forward.1} parent=71 // pred_check
          %p493 = pneg %p139
        $region78: #{basic_block_forward.1} parent=71 // pred_check_branch
          %495 = sbr.rel (%p493) target = $region80
        $region79: #{basic_block_forward.1} parent=71 // pred_region
          %496 = dma.done [#allocation10], 32
        $region80: #{basic_block_forward.1} parent=71 // pred_fallthru
          _
        // Predicated region
        $region81: #{basic_block_forward.1} parent=71 // pred_check
          %p497 = pneg %p160
        $region82: #{basic_block_forward.1} parent=71 // pred_check_branch
          %499 = sbr.rel (%p497) target = $region84
        $region83: #{basic_block_forward.1} parent=71 // pred_region
          %500 = dma.done [#allocation10], 9216
        $region84: #{basic_block_forward.1} parent=71 // pred_fallthru
          _
        // Predicated region
        $region85: #{basic_block_forward.1} parent=71 // pred_check
          %p501 = pneg %p202
        $region86: #{basic_block_forward.1} parent=71 // pred_check_branch
          %503 = sbr.rel (%p501) target = $region88
        $region87: #{basic_block_forward.1} parent=71 // pred_region
          %504 = dma.done [#allocation13], 32
        $region88: #{basic_block_forward.1} parent=71 // pred_fallthru
          _
        // Predicated region
        $region89: #{basic_block_forward.1} parent=71 // pred_check
          %p505 = pneg %p223
        $region90: #{basic_block_forward.1} parent=71 // pred_check_branch
          %507 = sbr.rel (%p505) target = $region92
        $region91: #{basic_block_forward.1} parent=71 // pred_region
          %508 = dma.done [#allocation13], 9216
        $region92: #{basic_block_forward.1} parent=71 // pred_fallthru
          _
        // Predicated region
        $region93: #{basic_block_forward.1} parent=71 // pred_check
          %p509 = pneg %p244
        $region94: #{basic_block_forward.1} parent=71 // pred_check_branch
          %511 = sbr.rel (%p509) target = $region96
        $region95: #{basic_block_forward.1} parent=71 // pred_region
          %512 = dma.done [#allocation16], 16
        $region96: #{basic_block_forward.1} parent=71 // pred_fallthru
          _
        // Predicated region
        $region97: #{basic_block_forward.1} parent=71 // pred_check
          %p513 = pneg %p265
        $region98: #{basic_block_forward.1} parent=71 // pred_check_branch
          %515 = sbr.rel (%p513) target = $region100
        $region99: #{basic_block_forward.1} parent=71 // pred_region
          %516 = dma.done [#allocation16], 16
        $region100: #{basic_block_forward.1} parent=71 // pred_fallthru
          _
        // Predicated region
        $region101: #{basic_block_forward.1} parent=71 // pred_check
          %p517 = pneg %p286
        $region102: #{basic_block_forward.1} parent=71 // pred_check_branch
          %519 = sbr.rel (%p517) target = $region104
        $region103: #{basic_block_forward.1} parent=71 // pred_region
          %520 = dma.done [#allocation19], 16
        $region104: #{basic_block_forward.1} parent=71 // pred_fallthru
          _
        // Predicated region
        $region105: #{basic_block_forward.1} parent=71 // pred_check
          %p521 = pneg %p307
        $region106: #{basic_block_forward.1} parent=71 // pred_check_branch
          %523 = sbr.rel (%p521) target = $region108
        $region107: #{basic_block_forward.1} parent=71 // pred_region
          %524 = dma.done [#allocation19], 16
        $region108: #{basic_block_forward.1} parent=71 // pred_fallthru
          _
        %s525 = sand.u32 %s42, 1
        %s526 = scalar_lea.sflag [#allocation7], %s525
        %s527 = sand.u32 %s42, 1
        %s528 = smul.addr %s527, 64
        %s529 = scalar_lea.vmem [#allocation6], %s528
        %p530 = pneg %p55
        %p531 = pneg %p52
        %p532 = pneg %p76
        %p533 = pneg %p73
        %p534 = pneg %p97
        %p535 = pneg %p94
        %p536 = pneg %p118
        %p537 = pneg %p115
        %p538 = pneg %p139
        %p539 = pneg %p136
        %p540 = pneg %p160
        %p541 = pneg %p157
        %p542 = pneg %p181
        %p543 = pneg %p178
        %p544 = pneg %p202
        %p545 = pneg %p199
        %p546 = pneg %p223
        %p547 = pneg %p220
        %p548 = pneg %p244
        %p549 = pneg %p241
        %p550 = pneg %p265
        %p551 = pneg %p262
        %p552 = pneg %p286
        %p553 = pneg %p283
        %p554 = pneg %p307
        %p555 = pneg %p304
        %p556 = pneg %p333
        %p557 = pneg %p330
        %s558 = sand.u32 %s320, 1
        %s559 = scalar_lea.sflag [#allocation8], %s558
        %s560 = sand.u32 %s320, 1
        %s561 = smul.addr %s560, 64
        %s562 = scalar_lea.vmem [#allocation21], %s561
        %v564 = vld [vmem:[%s488] sm:$0xff]
        %v565 = vld [vmem:[%s488 + $0x8] sm:$0xff]
        %v566 = vld [vmem:[%s488 + $0x10] sm:$0xff]
        %v567 = vld [vmem:[%s488 + $0x18] sm:$0xff]
        %v568 = vld [vmem:[%s488 + $0x20] sm:$0xff]
        %v569 = vld [vmem:[%s488 + $0x28] sm:$0xff]
        %v570 = vld [vmem:[%s488 + $0x30] sm:$0xff]
        %v571 = vld [vmem:[%s488 + $0x38] sm:$0xff]
        %vm572 = vcmask 130048
        %v573 = vsel %vm572, %v564, 0.0
        %v574 = vsel %vm572, %v565, 0.0
        %v575 = vadd.f32 %v573, %v574
        %v576 = vsel %vm572, %v566, 0.0
        %v577 = vadd.f32 %v575, %v576
        %v578 = vsel %vm572, %v567, 0.0
        %v579 = vadd.f32 %v577, %v578
        %v580 = vsel %vm572, %v568, 0.0
        %v581 = vadd.f32 %v579, %v580
        %v582 = vsel %vm572, %v569, 0.0
        %v583 = vadd.f32 %v581, %v582
        %v584 = vsel %vm572, %v570, 0.0
        %v585 = vadd.f32 %v583, %v584
        %v586 = vsel %vm572, %v571, 0.0
        %v587 = vadd.f32 %v585, %v586
        %v588 = vrot.slane %v587, 4
        %v589 = vadd.f32 %v587, %v588
        %v590 = vrot.slane %v589, 2
        %v591 = vadd.f32 %v589, %v590
        %v592 = vrot.slane %v591, 1
        %v593 = vadd.f32 %v591, %v592
        %v594 = vrcp.pop 64.0
        %v595 = vmul.f32 %v593, %v594
        %v596 = vpack.c.bf16 %v595, %v595
        %v597 = vld [vmem:[%s1] sm:$0xf]
        %v598 = vld [vmem:[%s1 + $0x4] sm:$0xf]
        %v599 = vld [vmem:[%s2] sm:$0x1]
        %v602 = vunpack.c.l.b16 %v597
        %v603 = vunpack.c.l.b16 %v598
        %v604 = vpack.c.b16 %v603, %v602
        %v607 = vsel %vm572, %v596, 0
        %609 = vmatprep.subr.bf16.mxu0 0
        %610 = vmatpush1.bf16.msra.mxu0 %v604
        %611 = vmatprep.subr.bf16.mxu0 0
        %612 = vmatpush1.bf16.msra.mxu0 0
        %613 = vmatprep.subr.bf16.mxu0 0
        %614 = vmatpush1.bf16.msra.mxu0 0
        %615 = vmatprep.subr.bf16.mxu0 0
        %616 = vmatpush1.bf16.msra.mxu0 0
        %617 = vmatprep.subr.bf16.mxu0 0
        %618 = vmatpush1.bf16.msra.mxu0 0
        %619 = vmatprep.subr.bf16.mxu0 0
        %620 = vmatpush1.bf16.msra.mxu0 0
        %621 = vmatprep.subr.bf16.mxu0 0
        %622 = vmatpush1.bf16.msra.mxu0 0
        %623 = vmatprep.subr.bf16.mxu0 0
        %624 = vmatpush1.bf16.msra.mxu0 0
        %625 = vmatprep.subr.bf16.mxu0 0
        %626 = vmatpush1.bf16.msra.mxu0 0
        %627 = vmatprep.subr.bf16.mxu0 0
        %628 = vmatpush1.bf16.msra.mxu0 0
        %629 = vmatprep.subr.bf16.mxu0 0
        %630 = vmatpush1.bf16.msra.mxu0 0
        %631 = vmatprep.subr.bf16.mxu0 0
        %632 = vmatpush1.bf16.msra.mxu0 0
        %633 = vmatprep.subr.bf16.mxu0 0
        %634 = vmatpush1.bf16.msra.mxu0 0
        %635 = vmatprep.subr.bf16.mxu0 0
        %636 = vmatpush1.bf16.msra.mxu0 0
        %637 = vmatprep.subr.bf16.mxu0 0
        %638 = vmatpush1.bf16.msra.mxu0 0
        %639 = vmatprep.subr.bf16.mxu0 0
        %640 = vmatpush1.bf16.msra.mxu0 0
        %641 = vmatprep.mubr.bf16.mxu0 0
        %642 = vmatmul.mubr.bf16.gmra.mrb[0].mxu0 %v607
        %v643 = vpop.f32.mrb[0].mxu0
        %v644 = vadd.f32 %v599, %v643
        %v645 = vpop.f32.mrb[0].mxu0
        %v646 = vpop.f32.mrb[0].mxu0
        %v647 = vpop.f32.mrb[0].mxu0
        %648 = vdwg.mxu0
        %v649 = vpack.c.bf16 %v644, %v644
        %v650 = vld [vmem:[%s3] sm:$0xff]
        %v651 = vld [vmem:[%s3 + $0x8] sm:$0xff]
        %v652 = vld [vmem:[#allocation9] sm:$0x3]
        %v655 = vunpack.c.l.b16 %v650
        %v656 = vunpack.c.h.b16 %v650
        %v657 = vunpack.c.l.b16 %v651
        %v658 = vunpack.c.h.b16 %v651
        %v659 = vpack.c.b16 %v657, %v655
        %v660 = vpack.c.b16 %v658, %v656
        %v664 = vlaneseq
        %v665 = vshrl.u32 %v664, 7
        %v666 = vsub.s32 0, %v665
        %v667 = vrot.slane %v652, %v666
        %v668 = vlaneseq
        %v669 = vshrl.u32 %v668, 7
        %v670 = vsub.s32 1, %v669
        %v671 = vrot.slane %v652, %v670
        %v675 = vsel %vm572, %v649, 0
        %677 = vmatprep.subr.bf16.mxu0 %v660
        %678 = vmatpush1.bf16.msra.mxu0 %v659
        %679 = vmatprep.subr.bf16.mxu0 0
        %680 = vmatpush1.bf16.msra.mxu0 0
        %681 = vmatprep.subr.bf16.mxu0 0
        %682 = vmatpush1.bf16.msra.mxu0 0
        %683 = vmatprep.subr.bf16.mxu0 0
        %684 = vmatpush1.bf16.msra.mxu0 0
        %685 = vmatprep.subr.bf16.mxu0 0
        %686 = vmatpush1.bf16.msra.mxu0 0
        %687 = vmatprep.subr.bf16.mxu0 0
        %688 = vmatpush1.bf16.msra.mxu0 0
        %689 = vmatprep.subr.bf16.mxu0 0
        %690 = vmatpush1.bf16.msra.mxu0 0
        %691 = vmatprep.subr.bf16.mxu0 0
        %692 = vmatpush1.bf16.msra.mxu0 0
        %693 = vmatprep.subr.bf16.mxu0 0
        %694 = vmatpush1.bf16.msra.mxu0 0
        %695 = vmatprep.subr.bf16.mxu0 0
        %696 = vmatpush1.bf16.msra.mxu0 0
        %697 = vmatprep.subr.bf16.mxu0 0
        %698 = vmatpush1.bf16.msra.mxu0 0
        %699 = vmatprep.subr.bf16.mxu0 0
        %700 = vmatpush1.bf16.msra.mxu0 0
        %701 = vmatprep.subr.bf16.mxu0 0
        %702 = vmatpush1.bf16.msra.mxu0 0
        %703 = vmatprep.subr.bf16.mxu0 0
        %704 = vmatpush1.bf16.msra.mxu0 0
        %705 = vmatprep.subr.bf16.mxu0 0
        %706 = vmatpush1.bf16.msra.mxu0 0
        %707 = vmatprep.subr.bf16.mxu0 0
        %708 = vmatpush1.bf16.msra.mxu0 0
        %709 = vmatprep.mubr.bf16.mxu0 0
        %710 = vmatmul.mubr.bf16.gmra.mrb[0].mxu0 %v675
        %v711 = vpop.f32.mrb[0].mxu0
        %v712 = vadd.f32 %v667, %v711
        %v713 = vpop.f32.mrb[0].mxu0
        %v714 = vadd.f32 %v671, %v713
        %v715 = vpop.f32.mrb[0].mxu0
        %v716 = vpop.f32.mrb[0].mxu0
        %717 = vdwg.mxu0
        %v718 = vxor.u32 %v712, 2147483648
        %v719 = vxor.u32 %v714, 2147483648
        %v720 = vmul.f32 %v718, 1.442695
        %v721 = vpow.pop %v720
        %v722 = vmul.f32 %v719, 1.442695
        %v723 = vpow.pop %v722
        %v724 = vadd.f32 %v721, 1.0
        %v725 = vadd.f32 %v723, 1.0
        %v726 = vrcp.pop %v724
        %v727 = vmul.f32 1.0, %v726
        %v728 = vrcp.pop %v725
        %v729 = vmul.f32 1.0, %v728
        %v730 = vlaneseq
        %v731 = vshrl.u32 %v730, 7
        %v732 = vsub.s32 0, %v731
        %v733 = vrot.slane %v727, %v732
        %735 = vrot.lane.b32.xlu0 %v733, 112
        %v736 = vpop.permute.xlu0 %735
        %738 = vrot.lane.b32.xlu0 %v733, 96
        %v739 = vpop.permute.xlu0 %738
        %741 = vrot.lane.b32.xlu0 %v733, 80
        %v742 = vpop.permute.xlu0 %741
        %vm744 = vcmask 1043456
        %v745 = vsel %vm744, %v733, %v736
        %v746 = vsel %vm744, %v739, %v742
        %v747 = vld [vmem:[#allocation11] sm:$0xff]
        %v748 = vld [vmem:[#allocation11 + $0x8] sm:$0xff]
        %v749 = vld [vmem:[#allocation11 + $0x10] sm:$0xff]
        %v750 = vld [vmem:[#allocation11 + $0x18] sm:$0xff]
        %v751 = vld [vmem:[#allocation11 + $0x20] sm:$0xff]
        %v752 = vld [vmem:[#allocation11 + $0x28] sm:$0xff]
        %v753 = vld [vmem:[#allocation11 + $0x30] sm:$0xff]
        %v754 = vld [vmem:[#allocation11 + $0x38] sm:$0xff]
        %v755 = vld [vmem:[#allocation11 + $0x40] sm:$0xff]
        %v756 = vld [vmem:[#allocation11 + $0x48] sm:$0xff]
        %v757 = vld [vmem:[#allocation11 + $0x50] sm:$0xff]
        %v758 = vld [vmem:[#allocation11 + $0x58] sm:$0xff]
        %v759 = vld [vmem:[#allocation11 + $0x60] sm:$0xff]
        %v760 = vld [vmem:[#allocation11 + $0x68] sm:$0xff]
        %v761 = vld [vmem:[#allocation11 + $0x70] sm:$0xff]
        %v762 = vld [vmem:[#allocation11 + $0x78] sm:$0xff]
        %v763 = vld [vmem:[#allocation11 + $0x80] sm:$0xff]
        %v764 = vld [vmem:[#allocation11 + $0x88] sm:$0xff]
        %v765 = vmul.f32 %v747, %v745
        %v766 = vmul.f32 %v748, %v746
        %v767 = vmul.f32 %v749, %v745
        %v768 = vmul.f32 %v750, %v746
        %v769 = vmul.f32 %v751, %v745
        %v770 = vmul.f32 %v752, %v746
        %v771 = vmul.f32 %v753, %v745
        %v772 = vmul.f32 %v754, %v746
        %v773 = vmul.f32 %v755, %v745
        %v774 = vmul.f32 %v756, %v746
        %v775 = vmul.f32 %v757, %v745
        %v776 = vmul.f32 %v758, %v746
        %v777 = vmul.f32 %v759, %v745
        %v778 = vmul.f32 %v760, %v746
        %v779 = vmul.f32 %v761, %v745
        %v780 = vmul.f32 %v762, %v746
        %v781 = vmul.f32 %v763, %v745
        %v782 = vmul.f32 %v764, %v746
        %s783 = scalar_lea.vmem [#allocation11], 144
        %v784 = vld [vmem:[%s783] sm:$0xff]
        %v785 = vld [vmem:[%s783 + $0x8] sm:$0xff]
        %v786 = vld [vmem:[%s783 + $0x10] sm:$0xff]
        %v787 = vld [vmem:[%s783 + $0x18] sm:$0xff]
        %v788 = vld [vmem:[%s783 + $0x20] sm:$0xff]
        %v789 = vld [vmem:[%s783 + $0x28] sm:$0xff]
        %v790 = vld [vmem:[%s783 + $0x30] sm:$0xff]
        %v791 = vld [vmem:[%s783 + $0x38] sm:$0xff]
        %v792 = vld [vmem:[%s783 + $0x40] sm:$0xff]
        %v793 = vld [vmem:[%s783 + $0x48] sm:$0xff]
        %v794 = vld [vmem:[%s783 + $0x50] sm:$0xff]
        %v795 = vld [vmem:[%s783 + $0x58] sm:$0xff]
        %v796 = vld [vmem:[%s783 + $0x60] sm:$0xff]
        %v797 = vld [vmem:[%s783 + $0x68] sm:$0xff]
        %v798 = vld [vmem:[%s783 + $0x70] sm:$0xff]
        %v799 = vld [vmem:[%s783 + $0x78] sm:$0xff]
        %v800 = vld [vmem:[%s783 + $0x80] sm:$0xff]
        %v801 = vld [vmem:[%s783 + $0x88] sm:$0xff]
        %804 = vrot.lane.b32.xlu0 %v745, 64
        %v805 = vpop.permute.xlu0 %804
        %806 = vrot.lane.b32.xlu0 %v746, 64
        %v807 = vpop.permute.xlu0 %806
        %v810 = vmul.f32 %v784, %v805
        %v811 = vmul.f32 %v785, %v807
        %v812 = vmul.f32 %v786, %v805
        %v813 = vmul.f32 %v787, %v807
        %v814 = vmul.f32 %v788, %v805
        %v815 = vmul.f32 %v789, %v807
        %v816 = vmul.f32 %v790, %v805
        %v817 = vmul.f32 %v791, %v807
        %v818 = vmul.f32 %v792, %v805
        %v819 = vmul.f32 %v793, %v807
        %v820 = vmul.f32 %v794, %v805
        %v821 = vmul.f32 %v795, %v807
        %v822 = vmul.f32 %v796, %v805
        %v823 = vmul.f32 %v797, %v807
        %v824 = vmul.f32 %v798, %v805
        %v825 = vmul.f32 %v799, %v807
        %v826 = vmul.f32 %v800, %v805
        %v827 = vmul.f32 %v801, %v807
        %v828 = vadd.f32 %v765, %v810
        %v829 = vadd.f32 %v766, %v811
        %v830 = vadd.f32 %v767, %v812
        %v831 = vadd.f32 %v768, %v813
        %v832 = vadd.f32 %v769, %v814
        %v833 = vadd.f32 %v770, %v815
        %v834 = vadd.f32 %v771, %v816
        %v835 = vadd.f32 %v772, %v817
        %v836 = vadd.f32 %v773, %v818
        %v837 = vadd.f32 %v774, %v819
        %v838 = vadd.f32 %v775, %v820
        %v839 = vadd.f32 %v776, %v821
        %v840 = vadd.f32 %v777, %v822
        %v841 = vadd.f32 %v778, %v823
        %v842 = vadd.f32 %v779, %v824
        %v843 = vadd.f32 %v780, %v825
        %v844 = vadd.f32 %v781, %v826
        %v845 = vadd.f32 %v782, %v827
        %v846 = vlaneseq
        %v847 = vshrl.u32 %v846, 7
        %v848 = vsub.s32 0, %v847
        %v849 = vrot.slane %v729, %v848
        %851 = vrot.lane.b32.xlu0 %v849, 112
        %v852 = vpop.permute.xlu0 %851
        %854 = vrot.lane.b32.xlu0 %v849, 96
        %v855 = vpop.permute.xlu0 %854
        %857 = vrot.lane.b32.xlu0 %v849, 80
        %v858 = vpop.permute.xlu0 %857
        %v860 = vsel %vm744, %v849, %v852
        %v861 = vsel %vm744, %v855, %v858
        %s862 = scalar_lea.vmem [#allocation11], 288
        %v863 = vld [vmem:[%s862] sm:$0xff]
        %v864 = vld [vmem:[%s862 + $0x8] sm:$0xff]
        %v865 = vld [vmem:[%s862 + $0x10] sm:$0xff]
        %v866 = vld [vmem:[%s862 + $0x18] sm:$0xff]
        %v867 = vld [vmem:[%s862 + $0x20] sm:$0xff]
        %v868 = vld [vmem:[%s862 + $0x28] sm:$0xff]
        %v869 = vld [vmem:[%s862 + $0x30] sm:$0xff]
        %v870 = vld [vmem:[%s862 + $0x38] sm:$0xff]
        %v871 = vld [vmem:[%s862 + $0x40] sm:$0xff]
        %v872 = vld [vmem:[%s862 + $0x48] sm:$0xff]
        %v873 = vld [vmem:[%s862 + $0x50] sm:$0xff]
        %v874 = vld [vmem:[%s862 + $0x58] sm:$0xff]
        %v875 = vld [vmem:[%s862 + $0x60] sm:$0xff]
        %v876 = vld [vmem:[%s862 + $0x68] sm:$0xff]
        %v877 = vld [vmem:[%s862 + $0x70] sm:$0xff]
        %v878 = vld [vmem:[%s862 + $0x78] sm:$0xff]
        %v879 = vld [vmem:[%s862 + $0x80] sm:$0xff]
        %v880 = vld [vmem:[%s862 + $0x88] sm:$0xff]
        %v881 = vmul.f32 %v863, %v860
        %v882 = vmul.f32 %v864, %v861
        %v883 = vmul.f32 %v865, %v860
        %v884 = vmul.f32 %v866, %v861
        %v885 = vmul.f32 %v867, %v860
        %v886 = vmul.f32 %v868, %v861
        %v887 = vmul.f32 %v869, %v860
        %v888 = vmul.f32 %v870, %v861
        %v889 = vmul.f32 %v871, %v860
        %v890 = vmul.f32 %v872, %v861
        %v891 = vmul.f32 %v873, %v860
        %v892 = vmul.f32 %v874, %v861
        %v893 = vmul.f32 %v875, %v860
        %v894 = vmul.f32 %v876, %v861
        %v895 = vmul.f32 %v877, %v860
        %v896 = vmul.f32 %v878, %v861
        %v897 = vmul.f32 %v879, %v860
        %v898 = vmul.f32 %v880, %v861
        %v899 = vadd.f32 %v828, %v881
        %v900 = vadd.f32 %v829, %v882
        %v901 = vadd.f32 %v830, %v883
        %v902 = vadd.f32 %v831, %v884
        %v903 = vadd.f32 %v832, %v885
        %v904 = vadd.f32 %v833, %v886
        %v905 = vadd.f32 %v834, %v887
        %v906 = vadd.f32 %v835, %v888
        %v907 = vadd.f32 %v836, %v889
        %v908 = vadd.f32 %v837, %v890
        %v909 = vadd.f32 %v838, %v891
        %v910 = vadd.f32 %v839, %v892
        %v911 = vadd.f32 %v840, %v893
        %v912 = vadd.f32 %v841, %v894
        %v913 = vadd.f32 %v842, %v895
        %v914 = vadd.f32 %v843, %v896
        %v915 = vadd.f32 %v844, %v897
        %v916 = vadd.f32 %v845, %v898
        %s917 = scalar_lea.vmem [#allocation11], 432
        %v918 = vld [vmem:[%s917] sm:$0xff]
        %v919 = vld [vmem:[%s917 + $0x8] sm:$0xff]
        %v920 = vld [vmem:[%s917 + $0x10] sm:$0xff]
        %v921 = vld [vmem:[%s917 + $0x18] sm:$0xff]
        %v922 = vld [vmem:[%s917 + $0x20] sm:$0xff]
        %v923 = vld [vmem:[%s917 + $0x28] sm:$0xff]
        %v924 = vld [vmem:[%s917 + $0x30] sm:$0xff]
        %v925 = vld [vmem:[%s917 + $0x38] sm:$0xff]
        %v926 = vld [vmem:[%s917 + $0x40] sm:$0xff]
        %v927 = vld [vmem:[%s917 + $0x48] sm:$0xff]
        %v928 = vld [vmem:[%s917 + $0x50] sm:$0xff]
        %v929 = vld [vmem:[%s917 + $0x58] sm:$0xff]
        %v930 = vld [vmem:[%s917 + $0x60] sm:$0xff]
        %v931 = vld [vmem:[%s917 + $0x68] sm:$0xff]
        %v932 = vld [vmem:[%s917 + $0x70] sm:$0xff]
        %v933 = vld [vmem:[%s917 + $0x78] sm:$0xff]
        %v934 = vld [vmem:[%s917 + $0x80] sm:$0xff]
        %v935 = vld [vmem:[%s917 + $0x88] sm:$0xff]
        %938 = vrot.lane.b32.xlu0 %v860, 64
        %v939 = vpop.permute.xlu0 %938
        %940 = vrot.lane.b32.xlu0 %v861, 64
        %v941 = vpop.permute.xlu0 %940
        %v944 = vmul.f32 %v918, %v939
        %v945 = vmul.f32 %v919, %v941
        %v946 = vmul.f32 %v920, %v939
        %v947 = vmul.f32 %v921, %v941
        %v948 = vmul.f32 %v922, %v939
        %v949 = vmul.f32 %v923, %v941
        %v950 = vmul.f32 %v924, %v939
        %v951 = vmul.f32 %v925, %v941
        %v952 = vmul.f32 %v926, %v939
        %v953 = vmul.f32 %v927, %v941
        %v954 = vmul.f32 %v928, %v939
        %v955 = vmul.f32 %v929, %v941
        %v956 = vmul.f32 %v930, %v939
        %v957 = vmul.f32 %v931, %v941
        %v958 = vmul.f32 %v932, %v939
        %v959 = vmul.f32 %v933, %v941
        %v960 = vmul.f32 %v934, %v939
        %v961 = vmul.f32 %v935, %v941
        %v962 = vadd.f32 %v899, %v944
        %v963 = vadd.f32 %v900, %v945
        %v964 = vadd.f32 %v901, %v946
        %v965 = vadd.f32 %v902, %v947
        %v966 = vadd.f32 %v903, %v948
        %v967 = vadd.f32 %v904, %v949
        %v968 = vadd.f32 %v905, %v950
        %v969 = vadd.f32 %v906, %v951
        %v970 = vadd.f32 %v907, %v952
        %v971 = vadd.f32 %v908, %v953
        %v972 = vadd.f32 %v909, %v954
        %v973 = vadd.f32 %v910, %v955
        %v974 = vadd.f32 %v911, %v956
        %v975 = vadd.f32 %v912, %v957
        %v976 = vadd.f32 %v913, %v958
        %v977 = vadd.f32 %v914, %v959
        %v978 = vadd.f32 %v915, %v960
        %v979 = vadd.f32 %v916, %v961
        %v980 = vpack.c.bf16 %v963, %v962
        %v981 = vpack.c.bf16 %v965, %v964
        %v982 = vpack.c.bf16 %v967, %v966
        %v983 = vpack.c.bf16 %v969, %v968
        %v984 = vpack.c.bf16 %v971, %v970
        %v985 = vpack.c.bf16 %v973, %v972
        %v986 = vpack.c.bf16 %v975, %v974
        %v987 = vpack.c.bf16 %v977, %v976
        %v988 = vpack.c.bf16 %v979, %v978
        %v989 = vld [vmem:[%s6] sm:$0xff]
        %v990 = vld [vmem:[%s6 + $0x8] sm:$0xff]
        %v991 = vld [vmem:[#allocation12] sm:$0x3]
        %v994 = vunpack.c.l.b16 %v989
        %v995 = vunpack.c.h.b16 %v989
        %v996 = vunpack.c.l.b16 %v990
        %v997 = vunpack.c.h.b16 %v990
        %v998 = vpack.c.b16 %v996, %v994
        %v999 = vpack.c.b16 %v997, %v995
        %v1003 = vlaneseq
        %v1004 = vshrl.u32 %v1003, 7
        %v1005 = vsub.s32 0, %v1004
        %v1006 = vrot.slane %v991, %v1005
        %v1007 = vlaneseq
        %v1008 = vshrl.u32 %v1007, 7
        %v1009 = vsub.s32 1, %v1008
        %v1010 = vrot.slane %v991, %v1009
        %1013 = vmatprep.subr.bf16.mxu0 %v999
        %1014 = vmatpush1.bf16.msra.mxu0 %v998
        %1015 = vmatprep.subr.bf16.mxu0 0
        %1016 = vmatpush1.bf16.msra.mxu0 0
        %1017 = vmatprep.subr.bf16.mxu0 0
        %1018 = vmatpush1.bf16.msra.mxu0 0
        %1019 = vmatprep.subr.bf16.mxu0 0
        %1020 = vmatpush1.bf16.msra.mxu0 0
        %1021 = vmatprep.subr.bf16.mxu0 0
        %1022 = vmatpush1.bf16.msra.mxu0 0
        %1023 = vmatprep.subr.bf16.mxu0 0
        %1024 = vmatpush1.bf16.msra.mxu0 0
        %1025 = vmatprep.subr.bf16.mxu0 0
        %1026 = vmatpush1.bf16.msra.mxu0 0
        %1027 = vmatprep.subr.bf16.mxu0 0
        %1028 = vmatpush1.bf16.msra.mxu0 0
        %1029 = vmatprep.subr.bf16.mxu0 0
        %1030 = vmatpush1.bf16.msra.mxu0 0
        %1031 = vmatprep.subr.bf16.mxu0 0
        %1032 = vmatpush1.bf16.msra.mxu0 0
        %1033 = vmatprep.subr.bf16.mxu0 0
        %1034 = vmatpush1.bf16.msra.mxu0 0
        %1035 = vmatprep.subr.bf16.mxu0 0
        %1036 = vmatpush1.bf16.msra.mxu0 0
        %1037 = vmatprep.subr.bf16.mxu0 0
        %1038 = vmatpush1.bf16.msra.mxu0 0
        %1039 = vmatprep.subr.bf16.mxu0 0
        %1040 = vmatpush1.bf16.msra.mxu0 0
        %1041 = vmatprep.subr.bf16.mxu0 0
        %1042 = vmatpush1.bf16.msra.mxu0 0
        %1043 = vmatprep.subr.bf16.mxu0 0
        %1044 = vmatpush1.bf16.msra.mxu0 0
        %1045 = vmatprep.mubr.bf16.mxu0 0
        %1046 = vmatmul.mubr.bf16.gmra.mrb[0].mxu0 %v675
        %v1047 = vpop.f32.mrb[0].mxu0
        %v1048 = vadd.f32 %v1006, %v1047
        %v1049 = vpop.f32.mrb[0].mxu0
        %v1050 = vadd.f32 %v1010, %v1049
        %v1051 = vpop.f32.mrb[0].mxu0
        %v1052 = vpop.f32.mrb[0].mxu0
        %1053 = vdwg.mxu0
        %v1054 = vxor.u32 %v1048, 2147483648
        %v1055 = vxor.u32 %v1050, 2147483648
        %v1056 = vmul.f32 %v1054, 1.442695
        %v1057 = vpow.pop %v1056
        %v1058 = vmul.f32 %v1055, 1.442695
        %v1059 = vpow.pop %v1058
        %v1060 = vadd.f32 %v1057, 1.0
        %v1061 = vadd.f32 %v1059, 1.0
        %v1062 = vrcp.pop %v1060
        %v1063 = vmul.f32 1.0, %v1062
        %v1064 = vrcp.pop %v1061
        %v1065 = vmul.f32 1.0, %v1064
        %v1066 = vlaneseq
        %v1067 = vshrl.u32 %v1066, 7
        %v1068 = vsub.s32 0, %v1067
        %v1069 = vrot.slane %v1063, %v1068
        %1071 = vrot.lane.b32.xlu0 %v1069, 112
        %v1072 = vpop.permute.xlu0 %1071
        %1074 = vrot.lane.b32.xlu0 %v1069, 96
        %v1075 = vpop.permute.xlu0 %1074
        %1077 = vrot.lane.b32.xlu0 %v1069, 80
        %v1078 = vpop.permute.xlu0 %1077
        %v1080 = vsel %vm744, %v1069, %v1072
        %v1081 = vsel %vm744, %v1075, %v1078
        %v1082 = vld [vmem:[#allocation14] sm:$0xff]
        %v1083 = vld [vmem:[#allocation14 + $0x8] sm:$0xff]
        %v1084 = vld [vmem:[#allocation14 + $0x10] sm:$0xff]
        %v1085 = vld [vmem:[#allocation14 + $0x18] sm:$0xff]
        %v1086 = vld [vmem:[#allocation14 + $0x20] sm:$0xff]
        %v1087 = vld [vmem:[#allocation14 + $0x28] sm:$0xff]
        %v1088 = vld [vmem:[#allocation14 + $0x30] sm:$0xff]
        %v1089 = vld [vmem:[#allocation14 + $0x38] sm:$0xff]
        %v1090 = vld [vmem:[#allocation14 + $0x40] sm:$0xff]
        %v1091 = vld [vmem:[#allocation14 + $0x48] sm:$0xff]
        %v1092 = vld [vmem:[#allocation14 + $0x50] sm:$0xff]
        %v1093 = vld [vmem:[#allocation14 + $0x58] sm:$0xff]
        %v1094 = vld [vmem:[#allocation14 + $0x60] sm:$0xff]
        %v1095 = vld [vmem:[#allocation14 + $0x68] sm:$0xff]
        %v1096 = vld [vmem:[#allocation14 + $0x70] sm:$0xff]
        %v1097 = vld [vmem:[#allocation14 + $0x78] sm:$0xff]
        %v1098 = vld [vmem:[#allocation14 + $0x80] sm:$0xff]
        %v1099 = vld [vmem:[#allocation14 + $0x88] sm:$0xff]
        %v1100 = vmul.f32 %v1082, %v1080
        %v1101 = vmul.f32 %v1083, %v1081
        %v1102 = vmul.f32 %v1084, %v1080
        %v1103 = vmul.f32 %v1085, %v1081
        %v1104 = vmul.f32 %v1086, %v1080
        %v1105 = vmul.f32 %v1087, %v1081
        %v1106 = vmul.f32 %v1088, %v1080
        %v1107 = vmul.f32 %v1089, %v1081
        %v1108 = vmul.f32 %v1090, %v1080
        %v1109 = vmul.f32 %v1091, %v1081
        %v1110 = vmul.f32 %v1092, %v1080
        %v1111 = vmul.f32 %v1093, %v1081
        %v1112 = vmul.f32 %v1094, %v1080
        %v1113 = vmul.f32 %v1095, %v1081
        %v1114 = vmul.f32 %v1096, %v1080
        %v1115 = vmul.f32 %v1097, %v1081
        %v1116 = vmul.f32 %v1098, %v1080
        %v1117 = vmul.f32 %v1099, %v1081
        %s1118 = scalar_lea.vmem [#allocation14], 144
        %v1119 = vld [vmem:[%s1118] sm:$0xff]
        %v1120 = vld [vmem:[%s1118 + $0x8] sm:$0xff]
        %v1121 = vld [vmem:[%s1118 + $0x10] sm:$0xff]
        %v1122 = vld [vmem:[%s1118 + $0x18] sm:$0xff]
        %v1123 = vld [vmem:[%s1118 + $0x20] sm:$0xff]
        %v1124 = vld [vmem:[%s1118 + $0x28] sm:$0xff]
        %v1125 = vld [vmem:[%s1118 + $0x30] sm:$0xff]
        %v1126 = vld [vmem:[%s1118 + $0x38] sm:$0xff]
        %v1127 = vld [vmem:[%s1118 + $0x40] sm:$0xff]
        %v1128 = vld [vmem:[%s1118 + $0x48] sm:$0xff]
        %v1129 = vld [vmem:[%s1118 + $0x50] sm:$0xff]
        %v1130 = vld [vmem:[%s1118 + $0x58] sm:$0xff]
        %v1131 = vld [vmem:[%s1118 + $0x60] sm:$0xff]
        %v1132 = vld [vmem:[%s1118 + $0x68] sm:$0xff]
        %v1133 = vld [vmem:[%s1118 + $0x70] sm:$0xff]
        %v1134 = vld [vmem:[%s1118 + $0x78] sm:$0xff]
        %v1135 = vld [vmem:[%s1118 + $0x80] sm:$0xff]
        %v1136 = vld [vmem:[%s1118 + $0x88] sm:$0xff]
        %1139 = vrot.lane.b32.xlu0 %v1080, 64
        %v1140 = vpop.permute.xlu0 %1139
        %1141 = vrot.lane.b32.xlu0 %v1081, 64
        %v1142 = vpop.permute.xlu0 %1141
        %v1145 = vmul.f32 %v1119, %v1140
        %v1146 = vmul.f32 %v1120, %v1142
        %v1147 = vmul.f32 %v1121, %v1140
        %v1148 = vmul.f32 %v1122, %v1142
        %v1149 = vmul.f32 %v1123, %v1140
        %v1150 = vmul.f32 %v1124, %v1142
        %v1151 = vmul.f32 %v1125, %v1140
        %v1152 = vmul.f32 %v1126, %v1142
        %v1153 = vmul.f32 %v1127, %v1140
        %v1154 = vmul.f32 %v1128, %v1142
        %v1155 = vmul.f32 %v1129, %v1140
        %v1156 = vmul.f32 %v1130, %v1142
        %v1157 = vmul.f32 %v1131, %v1140
        %v1158 = vmul.f32 %v1132, %v1142
        %v1159 = vmul.f32 %v1133, %v1140
        %v1160 = vmul.f32 %v1134, %v1142
        %v1161 = vmul.f32 %v1135, %v1140
        %v1162 = vmul.f32 %v1136, %v1142
        %v1163 = vadd.f32 %v1100, %v1145
        %v1164 = vadd.f32 %v1101, %v1146
        %v1165 = vadd.f32 %v1102, %v1147
        %v1166 = vadd.f32 %v1103, %v1148
        %v1167 = vadd.f32 %v1104, %v1149
        %v1168 = vadd.f32 %v1105, %v1150
        %v1169 = vadd.f32 %v1106, %v1151
        %v1170 = vadd.f32 %v1107, %v1152
        %v1171 = vadd.f32 %v1108, %v1153
        %v1172 = vadd.f32 %v1109, %v1154
        %v1173 = vadd.f32 %v1110, %v1155
        %v1174 = vadd.f32 %v1111, %v1156
        %v1175 = vadd.f32 %v1112, %v1157
        %v1176 = vadd.f32 %v1113, %v1158
        %v1177 = vadd.f32 %v1114, %v1159
        %v1178 = vadd.f32 %v1115, %v1160
        %v1179 = vadd.f32 %v1116, %v1161
        %v1180 = vadd.f32 %v1117, %v1162
        %v1181 = vlaneseq
        %v1182 = vshrl.u32 %v1181, 7
        %v1183 = vsub.s32 0, %v1182
        %v1184 = vrot.slane %v1065, %v1183
        %1186 = vrot.lane.b32.xlu0 %v1184, 112
        %v1187 = vpop.permute.xlu0 %1186
        %1189 = vrot.lane.b32.xlu0 %v1184, 96
        %v1190 = vpop.permute.xlu0 %1189
        %1192 = vrot.lane.b32.xlu0 %v1184, 80
        %v1193 = vpop.permute.xlu0 %1192
        %v1195 = vsel %vm744, %v1184, %v1187
        %v1196 = vsel %vm744, %v1190, %v1193
        %s1197 = scalar_lea.vmem [#allocation14], 288
        %v1198 = vld [vmem:[%s1197] sm:$0xff]
        %v1199 = vld [vmem:[%s1197 + $0x8] sm:$0xff]
        %v1200 = vld [vmem:[%s1197 + $0x10] sm:$0xff]
        %v1201 = vld [vmem:[%s1197 + $0x18] sm:$0xff]
        %v1202 = vld [vmem:[%s1197 + $0x20] sm:$0xff]
        %v1203 = vld [vmem:[%s1197 + $0x28] sm:$0xff]
        %v1204 = vld [vmem:[%s1197 + $0x30] sm:$0xff]
        %v1205 = vld [vmem:[%s1197 + $0x38] sm:$0xff]
        %v1206 = vld [vmem:[%s1197 + $0x40] sm:$0xff]
        %v1207 = vld [vmem:[%s1197 + $0x48] sm:$0xff]
        %v1208 = vld [vmem:[%s1197 + $0x50] sm:$0xff]
        %v1209 = vld [vmem:[%s1197 + $0x58] sm:$0xff]
        %v1210 = vld [vmem:[%s1197 + $0x60] sm:$0xff]
        %v1211 = vld [vmem:[%s1197 + $0x68] sm:$0xff]
        %v1212 = vld [vmem:[%s1197 + $0x70] sm:$0xff]
        %v1213 = vld [vmem:[%s1197 + $0x78] sm:$0xff]
        %v1214 = vld [vmem:[%s1197 + $0x80] sm:$0xff]
        %v1215 = vld [vmem:[%s1197 + $0x88] sm:$0xff]
        %v1216 = vmul.f32 %v1198, %v1195
        %v1217 = vmul.f32 %v1199, %v1196
        %v1218 = vmul.f32 %v1200, %v1195
        %v1219 = vmul.f32 %v1201, %v1196
        %v1220 = vmul.f32 %v1202, %v1195
        %v1221 = vmul.f32 %v1203, %v1196
        %v1222 = vmul.f32 %v1204, %v1195
        %v1223 = vmul.f32 %v1205, %v1196
        %v1224 = vmul.f32 %v1206, %v1195
        %v1225 = vmul.f32 %v1207, %v1196
        %v1226 = vmul.f32 %v1208, %v1195
        %v1227 = vmul.f32 %v1209, %v1196
        %v1228 = vmul.f32 %v1210, %v1195
        %v1229 = vmul.f32 %v1211, %v1196
        %v1230 = vmul.f32 %v1212, %v1195
        %v1231 = vmul.f32 %v1213, %v1196
        %v1232 = vmul.f32 %v1214, %v1195
        %v1233 = vmul.f32 %v1215, %v1196
        %v1234 = vadd.f32 %v1163, %v1216
        %v1235 = vadd.f32 %v1164, %v1217
        %v1236 = vadd.f32 %v1165, %v1218
        %v1237 = vadd.f32 %v1166, %v1219
        %v1238 = vadd.f32 %v1167, %v1220
        %v1239 = vadd.f32 %v1168, %v1221
        %v1240 = vadd.f32 %v1169, %v1222
        %v1241 = vadd.f32 %v1170, %v1223
        %v1242 = vadd.f32 %v1171, %v1224
        %v1243 = vadd.f32 %v1172, %v1225
        %v1244 = vadd.f32 %v1173, %v1226
        %v1245 = vadd.f32 %v1174, %v1227
        %v1246 = vadd.f32 %v1175, %v1228
        %v1247 = vadd.f32 %v1176, %v1229
        %v1248 = vadd.f32 %v1177, %v1230
        %v1249 = vadd.f32 %v1178, %v1231
        %v1250 = vadd.f32 %v1179, %v1232
        %v1251 = vadd.f32 %v1180, %v1233
        %s1252 = scalar_lea.vmem [#allocation14], 432
        %v1253 = vld [vmem:[%s1252] sm:$0xff]
        %v1254 = vld [vmem:[%s1252 + $0x8] sm:$0xff]
        %v1255 = vld [vmem:[%s1252 + $0x10] sm:$0xff]
        %v1256 = vld [vmem:[%s1252 + $0x18] sm:$0xff]
        %v1257 = vld [vmem:[%s1252 + $0x20] sm:$0xff]
        %v1258 = vld [vmem:[%s1252 + $0x28] sm:$0xff]
        %v1259 = vld [vmem:[%s1252 + $0x30] sm:$0xff]
        %v1260 = vld [vmem:[%s1252 + $0x38] sm:$0xff]
        %v1261 = vld [vmem:[%s1252 + $0x40] sm:$0xff]
        %v1262 = vld [vmem:[%s1252 + $0x48] sm:$0xff]
        %v1263 = vld [vmem:[%s1252 + $0x50] sm:$0xff]
        %v1264 = vld [vmem:[%s1252 + $0x58] sm:$0xff]
        %v1265 = vld [vmem:[%s1252 + $0x60] sm:$0xff]
        %v1266 = vld [vmem:[%s1252 + $0x68] sm:$0xff]
        %v1267 = vld [vmem:[%s1252 + $0x70] sm:$0xff]
        %v1268 = vld [vmem:[%s1252 + $0x78] sm:$0xff]
        %v1269 = vld [vmem:[%s1252 + $0x80] sm:$0xff]
        %v1270 = vld [vmem:[%s1252 + $0x88] sm:$0xff]
        %1273 = vrot.lane.b32.xlu0 %v1195, 64
        %v1274 = vpop.permute.xlu0 %1273
        %1275 = vrot.lane.b32.xlu0 %v1196, 64
        %v1276 = vpop.permute.xlu0 %1275
        %v1279 = vmul.f32 %v1253, %v1274
        %v1280 = vmul.f32 %v1254, %v1276
        %v1281 = vmul.f32 %v1255, %v1274
        %v1282 = vmul.f32 %v1256, %v1276
        %v1283 = vmul.f32 %v1257, %v1274
        %v1284 = vmul.f32 %v1258, %v1276
        %v1285 = vmul.f32 %v1259, %v1274
        %v1286 = vmul.f32 %v1260, %v1276
        %v1287 = vmul.f32 %v1261, %v1274
        %v1288 = vmul.f32 %v1262, %v1276
        %v1289 = vmul.f32 %v1263, %v1274
        %v1290 = vmul.f32 %v1264, %v1276
        %v1291 = vmul.f32 %v1265, %v1274
        %v1292 = vmul.f32 %v1266, %v1276
        %v1293 = vmul.f32 %v1267, %v1274
        %v1294 = vmul.f32 %v1268, %v1276
        %v1295 = vmul.f32 %v1269, %v1274
        %v1296 = vmul.f32 %v1270, %v1276
        %v1297 = vadd.f32 %v1234, %v1279
        %v1298 = vadd.f32 %v1235, %v1280
        %v1299 = vadd.f32 %v1236, %v1281
        %v1300 = vadd.f32 %v1237, %v1282
        %v1301 = vadd.f32 %v1238, %v1283
        %v1302 = vadd.f32 %v1239, %v1284
        %v1303 = vadd.f32 %v1240, %v1285
        %v1304 = vadd.f32 %v1241, %v1286
        %v1305 = vadd.f32 %v1242, %v1287
        %v1306 = vadd.f32 %v1243, %v1288
        %v1307 = vadd.f32 %v1244, %v1289
        %v1308 = vadd.f32 %v1245, %v1290
        %v1309 = vadd.f32 %v1246, %v1291
        %v1310 = vadd.f32 %v1247, %v1292
        %v1311 = vadd.f32 %v1248, %v1293
        %v1312 = vadd.f32 %v1249, %v1294
        %v1313 = vadd.f32 %v1250, %v1295
        %v1314 = vadd.f32 %v1251, %v1296
        %v1315 = vpack.c.bf16 %v1298, %v1297
        %v1316 = vpack.c.bf16 %v1300, %v1299
        %v1317 = vpack.c.bf16 %v1302, %v1301
        %v1318 = vpack.c.bf16 %v1304, %v1303
        %v1319 = vpack.c.bf16 %v1306, %v1305
        %v1320 = vpack.c.bf16 %v1308, %v1307
        %v1321 = vpack.c.bf16 %v1310, %v1309
        %v1322 = vpack.c.bf16 %v1312, %v1311
        %v1323 = vpack.c.bf16 %v1314, %v1313
        %vm1324 = vcmask 125952
        %1325 = vst.msk [vmem:[#allocation2] sm:$0xf] %vm1324, 0
        %vm1326 = vcmask 122880
        %1327 = vst.msk [vmem:[#allocation2 + $0x4] sm:$0x1] %vm1326, 0
        %s1328 = scalar_lea.vmem [#allocation2], 72
        %1329 = vst.msk [vmem:[%s1328] sm:$0xf] %vm1324, 0
        %1330 = vst.msk [vmem:[%s1328 + $0x4] sm:$0x1] %vm1326, 0
        %vm1331 = vcmask 122880
        %vm1332 = vsmask.f32 256
        %vm1333 = vmand %vm1331, %vm1332
        %v1334 = vld [vmem:[#allocation2] sm:$0x1]
        %v1335 = vsel %vm1333, 0, %v1334
        %1336 = vst [vmem:[#allocation2] sm:$0x1] %v1335
        %v1337 = vld [vmem:[#allocation2 + $0x8] sm:$0x1]
        %v1338 = vsel %vm1333, 0, %v1337
        %1339 = vst [vmem:[#allocation2 + $0x8] sm:$0x1] %v1338
        %v1340 = vld [vmem:[#allocation2 + $0x10] sm:$0x1]
        %v1341 = vsel %vm1333, 0, %v1340
        %1342 = vst [vmem:[#allocation2 + $0x10] sm:$0x1] %v1341
        %v1343 = vld [vmem:[#allocation2 + $0x18] sm:$0x1]
        %v1344 = vsel %vm1333, 0, %v1343
        %1345 = vst [vmem:[#allocation2 + $0x18] sm:$0x1] %v1344
        %v1346 = vld [vmem:[#allocation2 + $0x20] sm:$0x1]
        %v1347 = vsel %vm1333, 0, %v1346
        %1348 = vst [vmem:[#allocation2 + $0x20] sm:$0x1] %v1347
        %v1349 = vld [vmem:[#allocation2 + $0x28] sm:$0x1]
        %v1350 = vsel %vm1333, 0, %v1349
        %1351 = vst [vmem:[#allocation2 + $0x28] sm:$0x1] %v1350
        %v1352 = vld [vmem:[#allocation2 + $0x30] sm:$0x1]
        %v1353 = vsel %vm1333, 0, %v1352
        %1354 = vst [vmem:[#allocation2 + $0x30] sm:$0x1] %v1353
        %v1355 = vld [vmem:[#allocation2 + $0x38] sm:$0x1]
        %v1356 = vsel %vm1333, 0, %v1355
        %1357 = vst [vmem:[#allocation2 + $0x38] sm:$0x1] %v1356
        %v1358 = vld [vmem:[#allocation2 + $0x40] sm:$0x1]
        %v1359 = vsel %vm1333, 0, %v1358
        %1360 = vst [vmem:[#allocation2 + $0x40] sm:$0x1] %v1359
        %v1361 = vld [vmem:[#allocation2 + $0x48] sm:$0x1]
        %v1362 = vsel %vm1333, 0, %v1361
        %1363 = vst [vmem:[#allocation2 + $0x48] sm:$0x1] %v1362
        %vm1364 = vsmask.f32 7938
        %vm1365 = vmand %vm1331, %vm1364
        %v1366 = vld [vmem:[#allocation2 + $0x4] sm:$0x1]
        %v1367 = vsel %vm1365, 0, %v1366
        %1368 = vst [vmem:[#allocation2 + $0x4] sm:$0x1] %v1367
        %v1369 = vld [vmem:[#allocation2 + $0xc] sm:$0x1]
        %v1370 = vsel %vm1365, 0, %v1369
        %1371 = vst [vmem:[#allocation2 + $0xc] sm:$0x1] %v1370
        %v1372 = vld [vmem:[#allocation2 + $0x14] sm:$0x1]
        %v1373 = vsel %vm1365, 0, %v1372
        %1374 = vst [vmem:[#allocation2 + $0x14] sm:$0x1] %v1373
        %v1375 = vld [vmem:[#allocation2 + $0x1c] sm:$0x1]
        %v1376 = vsel %vm1365, 0, %v1375
        %1377 = vst [vmem:[#allocation2 + $0x1c] sm:$0x1] %v1376
        %v1378 = vld [vmem:[#allocation2 + $0x24] sm:$0x1]
        %v1379 = vsel %vm1365, 0, %v1378
        %1380 = vst [vmem:[#allocation2 + $0x24] sm:$0x1] %v1379
        %v1381 = vld [vmem:[#allocation2 + $0x2c] sm:$0x1]
        %v1382 = vsel %vm1365, 0, %v1381
        %1383 = vst [vmem:[#allocation2 + $0x2c] sm:$0x1] %v1382
        %v1384 = vld [vmem:[#allocation2 + $0x34] sm:$0x1]
        %v1385 = vsel %vm1365, 0, %v1384
        %1386 = vst [vmem:[#allocation2 + $0x34] sm:$0x1] %v1385
        %v1387 = vld [vmem:[#allocation2 + $0x3c] sm:$0x1]
        %v1388 = vsel %vm1365, 0, %v1387
        %1389 = vst [vmem:[#allocation2 + $0x3c] sm:$0x1] %v1388
        %v1390 = vld [vmem:[#allocation2 + $0x44] sm:$0x1]
        %v1391 = vsel %vm1365, 0, %v1390
        %1392 = vst [vmem:[#allocation2 + $0x44] sm:$0x1] %v1391
        %v1393 = vld [vmem:[#allocation2 + $0x4c] sm:$0x1]
        %v1394 = vsel %vm1365, 0, %v1393
        %1395 = vst [vmem:[#allocation2 + $0x4c] sm:$0x1] %v1394
        %v1396 = vpack.c.bf16 %v564, %v564
        %v1397 = vpack.c.bf16 %v565, %v565
        %v1398 = vpack.c.bf16 %v566, %v566
        %v1399 = vpack.c.bf16 %v567, %v567
        %v1400 = vpack.c.bf16 %v568, %v568
        %v1401 = vpack.c.bf16 %v569, %v569
        %v1402 = vpack.c.bf16 %v570, %v570
        %v1403 = vpack.c.bf16 %v571, %v571
        %v1412 = vunpack.c.l.b16 %v1396
        %v1413 = vunpack.c.l.b16 %v1397
        %v1414 = vunpack.c.l.b16 %v1398
        %v1415 = vunpack.c.l.b16 %v1399
        %v1416 = vunpack.c.l.b16 %v1400
        %v1417 = vunpack.c.l.b16 %v1401
        %v1418 = vunpack.c.l.b16 %v1402
        %v1419 = vunpack.c.l.b16 %v1403
        %v1420 = vpack.c.b16 %v1412, %v1412
        %v1421 = vpack.c.b16 %v1413, %v1413
        %v1422 = vpack.c.b16 %v1414, %v1414
        %v1423 = vpack.c.b16 %v1415, %v1415
        %v1424 = vpack.c.b16 %v1416, %v1416
        %v1425 = vpack.c.b16 %v1417, %v1417
        %v1426 = vpack.c.b16 %v1418, %v1418
        %v1427 = vpack.c.b16 %v1419, %v1419
        %v1429 = vshrl.u32 %v1420, 16
        %v1431 = vrot.slane %v1429, 7
        %v1432 = vshll.u32 %v1420, 16
        %v1434 = vor.u32 %v1431, %v1432
        %v1435 = vrot.slane %v1431, 4
        %v1437 = vshrl.u32 %v1421, 16
        %v1439 = vrot.slane %v1437, 7
        %v1440 = vshll.u32 %v1421, 16
        %v1442 = vor.u32 %v1439, %v1440
        %v1443 = vrot.slane %v1439, 4
        %v1445 = vshrl.u32 %v1422, 16
        %v1447 = vrot.slane %v1445, 7
        %v1448 = vshll.u32 %v1422, 16
        %v1450 = vor.u32 %v1447, %v1448
        %v1451 = vrot.slane %v1447, 4
        %v1453 = vshrl.u32 %v1423, 16
        %v1455 = vrot.slane %v1453, 7
        %v1456 = vshll.u32 %v1423, 16
        %v1458 = vor.u32 %v1455, %v1456
        %v1459 = vrot.slane %v1455, 4
        %v1461 = vshrl.u32 %v1424, 16
        %v1463 = vrot.slane %v1461, 7
        %v1464 = vshll.u32 %v1424, 16
        %v1466 = vor.u32 %v1463, %v1464
        %v1467 = vrot.slane %v1463, 4
        %v1469 = vshrl.u32 %v1425, 16
        %v1471 = vrot.slane %v1469, 7
        %v1472 = vshll.u32 %v1425, 16
        %v1474 = vor.u32 %v1471, %v1472
        %v1475 = vrot.slane %v1471, 4
        %v1477 = vshrl.u32 %v1426, 16
        %v1479 = vrot.slane %v1477, 7
        %v1480 = vshll.u32 %v1426, 16
        %v1482 = vor.u32 %v1479, %v1480
        %v1483 = vrot.slane %v1479, 4
        %v1485 = vshrl.u32 %v1427, 16
        %v1487 = vrot.slane %v1485, 7
        %v1488 = vshll.u32 %v1427, 16
        %v1490 = vor.u32 %v1487, %v1488
        %v1491 = vrot.slane %v1487, 4
        %s1508 = scalar_lea.vmem [#allocation2], 8
        %vm1509 = vcmask 125952
        %vm1510 = vmand %vm1509, %vm1364
        %v1511 = vld [vmem:[%s1508] sm:$0xf]
        %v1512 = vsel %vm1510, %v1434, %v1511
        %1513 = vst [vmem:[%s1508] sm:$0xf] %v1512
        %v1514 = vld [vmem:[%s1508 + $0x4] sm:$0x1]
        %v1515 = vsel %vm1333, %v1435, %v1514
        %1516 = vst [vmem:[%s1508 + $0x4] sm:$0x1] %v1515
        %v1517 = vld [vmem:[%s1508 + $0x8] sm:$0xf]
        %v1518 = vsel %vm1510, %v1442, %v1517
        %1519 = vst [vmem:[%s1508 + $0x8] sm:$0xf] %v1518
        %v1520 = vld [vmem:[%s1508 + $0xc] sm:$0x1]
        %v1521 = vsel %vm1333, %v1443, %v1520
        %1522 = vst [vmem:[%s1508 + $0xc] sm:$0x1] %v1521
        %v1523 = vld [vmem:[%s1508 + $0x10] sm:$0xf]
        %v1524 = vsel %vm1510, %v1450, %v1523
        %1525 = vst [vmem:[%s1508 + $0x10] sm:$0xf] %v1524
        %v1526 = vld [vmem:[%s1508 + $0x14] sm:$0x1]
        %v1527 = vsel %vm1333, %v1451, %v1526
        %1528 = vst [vmem:[%s1508 + $0x14] sm:$0x1] %v1527
        %v1529 = vld [vmem:[%s1508 + $0x18] sm:$0xf]
        %v1530 = vsel %vm1510, %v1458, %v1529
        %1531 = vst [vmem:[%s1508 + $0x18] sm:$0xf] %v1530
        %v1532 = vld [vmem:[%s1508 + $0x1c] sm:$0x1]
        %v1533 = vsel %vm1333, %v1459, %v1532
        %1534 = vst [vmem:[%s1508 + $0x1c] sm:$0x1] %v1533
        %v1535 = vld [vmem:[%s1508 + $0x20] sm:$0xf]
        %v1536 = vsel %vm1510, %v1466, %v1535
        %1537 = vst [vmem:[%s1508 + $0x20] sm:$0xf] %v1536
        %v1538 = vld [vmem:[%s1508 + $0x24] sm:$0x1]
        %v1539 = vsel %vm1333, %v1467, %v1538
        %1540 = vst [vmem:[%s1508 + $0x24] sm:$0x1] %v1539
        %v1541 = vld [vmem:[%s1508 + $0x28] sm:$0xf]
        %v1542 = vsel %vm1510, %v1474, %v1541
        %1543 = vst [vmem:[%s1508 + $0x28] sm:$0xf] %v1542
        %v1544 = vld [vmem:[%s1508 + $0x2c] sm:$0x1]
        %v1545 = vsel %vm1333, %v1475, %v1544
        %1546 = vst [vmem:[%s1508 + $0x2c] sm:$0x1] %v1545
        %v1547 = vld [vmem:[%s1508 + $0x30] sm:$0xf]
        %v1548 = vsel %vm1510, %v1482, %v1547
        %1549 = vst [vmem:[%s1508 + $0x30] sm:$0xf] %v1548
        %v1550 = vld [vmem:[%s1508 + $0x34] sm:$0x1]
        %v1551 = vsel %vm1333, %v1483, %v1550
        %1552 = vst [vmem:[%s1508 + $0x34] sm:$0x1] %v1551
        %v1553 = vld [vmem:[%s1508 + $0x38] sm:$0xf]
        %v1554 = vsel %vm1510, %v1490, %v1553
        %1555 = vst [vmem:[%s1508 + $0x38] sm:$0xf] %v1554
        %v1556 = vld [vmem:[%s1508 + $0x3c] sm:$0x1]
        %v1557 = vsel %vm1333, %v1491, %v1556
        %1558 = vst [vmem:[%s1508 + $0x3c] sm:$0x1] %v1557
        %v1559 = vld [vmem:[#allocation2] sm:$0xf]
        %v1560 = vld [vmem:[#allocation2 + $0x8] sm:$0xf]
        %v1561 = vld [vmem:[#allocation2 + $0x10] sm:$0xf]
        %v1562 = vld [vmem:[#allocation2 + $0x18] sm:$0xf]
        %v1563 = vld [vmem:[#allocation2 + $0x20] sm:$0xf]
        %v1564 = vld [vmem:[#allocation2 + $0x28] sm:$0xf]
        %v1565 = vld [vmem:[#allocation2 + $0x30] sm:$0xf]
        %v1566 = vld [vmem:[#allocation2 + $0x38] sm:$0xf]
        %v1575 = vunpack.c.l.b16 %v1559
        %v1576 = vunpack.c.l.b16 %v1560
        %v1577 = vunpack.c.l.b16 %v1561
        %v1578 = vunpack.c.l.b16 %v1562
        %v1579 = vunpack.c.l.b16 %v1563
        %v1580 = vunpack.c.l.b16 %v1564
        %v1581 = vunpack.c.l.b16 %v1565
        %v1582 = vunpack.c.l.b16 %v1566
        %v1583 = vpack.c.b16 %v1576, %v1575
        %v1584 = vpack.c.b16 %v1578, %v1577
        %v1585 = vpack.c.b16 %v1580, %v1579
        %v1586 = vpack.c.b16 %v1582, %v1581
        %1591 = vst.msk [vmem:[#allocation4] sm:$0xff] %vm572, %v1583
        %1592 = vst.msk [vmem:[#allocation4 + $0x10] sm:$0xff] %vm572, %v1584
        %1593 = vst.msk [vmem:[#allocation4 + $0x20] sm:$0xff] %vm572, %v1585
        %1594 = vst.msk [vmem:[#allocation4 + $0x30] sm:$0xff] %vm572, %v1586
        %v1595 = vld [vmem:[#allocation2] sm:$0xf]
        %v1596 = vld [vmem:[#allocation2 + $0x4] sm:$0x1]
        %v1597 = vld [vmem:[#allocation2 + $0x8] sm:$0xf]
        %v1598 = vld [vmem:[#allocation2 + $0xc] sm:$0x1]
        %v1599 = vld [vmem:[#allocation2 + $0x10] sm:$0xf]
        %v1600 = vld [vmem:[#allocation2 + $0x14] sm:$0x1]
        %v1601 = vld [vmem:[#allocation2 + $0x18] sm:$0xf]
        %v1602 = vld [vmem:[#allocation2 + $0x1c] sm:$0x1]
        %v1603 = vld [vmem:[#allocation2 + $0x20] sm:$0xf]
        %v1604 = vld [vmem:[#allocation2 + $0x24] sm:$0x1]
        %v1605 = vld [vmem:[#allocation2 + $0x28] sm:$0xf]
        %v1606 = vld [vmem:[#allocation2 + $0x2c] sm:$0x1]
        %v1607 = vld [vmem:[#allocation2 + $0x30] sm:$0xf]
        %v1608 = vld [vmem:[#allocation2 + $0x34] sm:$0x1]
        %v1609 = vld [vmem:[#allocation2 + $0x38] sm:$0xf]
        %v1610 = vld [vmem:[#allocation2 + $0x3c] sm:$0x1]
        %vm1611 = vsmask.f32 3328
        %vm1612 = vsmask.f32 7440
        %vm1613 = vmor %vm1611, %vm1612
        %v1615 = vshrl.u32 %v1595, 16
        %v1617 = vrot.slane %v1615, 4
        %v1618 = vshll.u32 %v1595, 16
        %v1620 = vrot.slane %v1618, 5
        %v1621 = vor.u32 %v1617, %v1620
        %v1622 = vrot.slane %v1621, 4
        %v1624 = vshll.u32 %v1596, 16
        %v1626 = vrot.slane %v1624, 5
        %v1627 = vsel %vm1613, %v1622, %v1626
        %v1629 = vshrl.u32 %v1597, 16
        %v1631 = vrot.slane %v1629, 4
        %v1632 = vshll.u32 %v1597, 16
        %v1634 = vrot.slane %v1632, 5
        %v1635 = vor.u32 %v1631, %v1634
        %v1636 = vrot.slane %v1635, 4
        %v1638 = vshll.u32 %v1598, 16
        %v1640 = vrot.slane %v1638, 5
        %v1641 = vsel %vm1613, %v1636, %v1640
        %v1643 = vshrl.u32 %v1599, 16
        %v1645 = vrot.slane %v1643, 4
        %v1646 = vshll.u32 %v1599, 16
        %v1648 = vrot.slane %v1646, 5
        %v1649 = vor.u32 %v1645, %v1648
        %v1650 = vrot.slane %v1649, 4
        %v1652 = vshll.u32 %v1600, 16
        %v1654 = vrot.slane %v1652, 5
        %v1655 = vsel %vm1613, %v1650, %v1654
        %v1657 = vshrl.u32 %v1601, 16
        %v1659 = vrot.slane %v1657, 4
        %v1660 = vshll.u32 %v1601, 16
        %v1662 = vrot.slane %v1660, 5
        %v1663 = vor.u32 %v1659, %v1662
        %v1664 = vrot.slane %v1663, 4
        %v1666 = vshll.u32 %v1602, 16
        %v1668 = vrot.slane %v1666, 5
        %v1669 = vsel %vm1613, %v1664, %v1668
        %v1671 = vshrl.u32 %v1603, 16
        %v1673 = vrot.slane %v1671, 4
        %v1674 = vshll.u32 %v1603, 16
        %v1676 = vrot.slane %v1674, 5
        %v1677 = vor.u32 %v1673, %v1676
        %v1678 = vrot.slane %v1677, 4
        %v1680 = vshll.u32 %v1604, 16
        %v1682 = vrot.slane %v1680, 5
        %v1683 = vsel %vm1613, %v1678, %v1682
        %v1685 = vshrl.u32 %v1605, 16
        %v1687 = vrot.slane %v1685, 4
        %v1688 = vshll.u32 %v1605, 16
        %v1690 = vrot.slane %v1688, 5
        %v1691 = vor.u32 %v1687, %v1690
        %v1692 = vrot.slane %v1691, 4
        %v1694 = vshll.u32 %v1606, 16
        %v1696 = vrot.slane %v1694, 5
        %v1697 = vsel %vm1613, %v1692, %v1696
        %v1699 = vshrl.u32 %v1607, 16
        %v1701 = vrot.slane %v1699, 4
        %v1702 = vshll.u32 %v1607, 16
        %v1704 = vrot.slane %v1702, 5
        %v1705 = vor.u32 %v1701, %v1704
        %v1706 = vrot.slane %v1705, 4
        %v1708 = vshll.u32 %v1608, 16
        %v1710 = vrot.slane %v1708, 5
        %v1711 = vsel %vm1613, %v1706, %v1710
        %v1713 = vshrl.u32 %v1609, 16
        %v1715 = vrot.slane %v1713, 4
        %v1716 = vshll.u32 %v1609, 16
        %v1718 = vrot.slane %v1716, 5
        %v1719 = vor.u32 %v1715, %v1718
        %v1720 = vrot.slane %v1719, 4
        %v1722 = vshll.u32 %v1610, 16
        %v1724 = vrot.slane %v1722, 5
        %v1725 = vsel %vm1613, %v1720, %v1724
        %v1726 = vunpack.c.l.b16 %v1627
        %v1727 = vunpack.c.l.b16 %v1641
        %v1728 = vunpack.c.l.b16 %v1655
        %v1729 = vunpack.c.l.b16 %v1669
        %v1730 = vunpack.c.l.b16 %v1683
        %v1731 = vunpack.c.l.b16 %v1697
        %v1732 = vunpack.c.l.b16 %v1711
        %v1733 = vunpack.c.l.b16 %v1725
        %v1734 = vpack.c.b16 %v1727, %v1726
        %v1735 = vpack.c.b16 %v1729, %v1728
        %v1736 = vpack.c.b16 %v1731, %v1730
        %v1737 = vpack.c.b16 %v1733, %v1732
        %1738 = vrot.lane.b32.xlu0 %v1734, 16
        %v1739 = vpop.permute.xlu0 %1738
        %1740 = vrot.lane.b32.xlu0 %v1735, 16
        %v1741 = vpop.permute.xlu0 %1740
        %1742 = vrot.lane.b32.xlu0 %v1736, 16
        %v1743 = vpop.permute.xlu0 %1742
        %1744 = vrot.lane.b32.xlu0 %v1737, 16
        %v1745 = vpop.permute.xlu0 %1744
        %vm1750 = vcmask 261248
        %1751 = vst.msk [vmem:[#allocation4] sm:$0xff] %vm1750, %v1739
        %1752 = vst.msk [vmem:[#allocation4 + $0x10] sm:$0xff] %vm1750, %v1741
        %1753 = vst.msk [vmem:[#allocation4 + $0x20] sm:$0xff] %vm1750, %v1743
        %1754 = vst.msk [vmem:[#allocation4 + $0x30] sm:$0xff] %vm1750, %v1745
        %v1755 = vld [vmem:[#allocation2] sm:$0xe]
        %v1756 = vld [vmem:[#allocation2 + $0x4] sm:$0x1]
        %v1757 = vld [vmem:[#allocation2 + $0x8] sm:$0xe]
        %v1758 = vld [vmem:[#allocation2 + $0xc] sm:$0x1]
        %v1759 = vld [vmem:[#allocation2 + $0x10] sm:$0xe]
        %v1760 = vld [vmem:[#allocation2 + $0x14] sm:$0x1]
        %v1761 = vld [vmem:[#allocation2 + $0x18] sm:$0xe]
        %v1762 = vld [vmem:[#allocation2 + $0x1c] sm:$0x1]
        %v1763 = vld [vmem:[#allocation2 + $0x20] sm:$0xe]
        %v1764 = vld [vmem:[#allocation2 + $0x24] sm:$0x1]
        %v1765 = vld [vmem:[#allocation2 + $0x28] sm:$0xe]
        %v1766 = vld [vmem:[#allocation2 + $0x2c] sm:$0x1]
        %v1767 = vld [vmem:[#allocation2 + $0x30] sm:$0xe]
        %v1768 = vld [vmem:[#allocation2 + $0x34] sm:$0x1]
        %v1769 = vld [vmem:[#allocation2 + $0x38] sm:$0xe]
        %v1770 = vld [vmem:[#allocation2 + $0x3c] sm:$0x1]
        %vm1787 = vcmask 1042432
        %vm1788 = vcmask 1046532
        %vm1789 = vmor %vm1787, %vm1788
        %v1790 = vrot.slane %v1755, 5
        %v1791 = vrot.slane %v1790, 4
        %v1792 = vrot.slane %v1756, 5
        %v1793 = vsel %vm1789, %v1791, %v1792
        %v1794 = vrot.slane %v1757, 5
        %v1795 = vrot.slane %v1794, 4
        %v1796 = vrot.slane %v1758, 5
        %v1797 = vsel %vm1789, %v1795, %v1796
        %v1798 = vrot.slane %v1759, 5
        %v1799 = vrot.slane %v1798, 4
        %v1800 = vrot.slane %v1760, 5
        %v1801 = vsel %vm1789, %v1799, %v1800
        %v1802 = vrot.slane %v1761, 5
        %v1803 = vrot.slane %v1802, 4
        %v1804 = vrot.slane %v1762, 5
        %v1805 = vsel %vm1789, %v1803, %v1804
        %v1806 = vrot.slane %v1763, 5
        %v1807 = vrot.slane %v1806, 4
        %v1808 = vrot.slane %v1764, 5
        %v1809 = vsel %vm1789, %v1807, %v1808
        %v1810 = vrot.slane %v1765, 5
        %v1811 = vrot.slane %v1810, 4
        %v1812 = vrot.slane %v1766, 5
        %v1813 = vsel %vm1789, %v1811, %v1812
        %v1814 = vrot.slane %v1767, 5
        %v1815 = vrot.slane %v1814, 4
        %v1816 = vrot.slane %v1768, 5
        %v1817 = vsel %vm1789, %v1815, %v1816
        %v1818 = vrot.slane %v1769, 5
        %v1819 = vrot.slane %v1818, 4
        %v1820 = vrot.slane %v1770, 5
        %v1821 = vsel %vm1789, %v1819, %v1820
        %v1822 = vunpack.c.l.b16 %v1793
        %v1823 = vunpack.c.l.b16 %v1797
        %v1824 = vunpack.c.l.b16 %v1801
        %v1825 = vunpack.c.l.b16 %v1805
        %v1826 = vunpack.c.l.b16 %v1809
        %v1827 = vunpack.c.l.b16 %v1813
        %v1828 = vunpack.c.l.b16 %v1817
        %v1829 = vunpack.c.l.b16 %v1821
        %v1830 = vpack.c.b16 %v1823, %v1822
        %v1831 = vpack.c.b16 %v1825, %v1824
        %v1832 = vpack.c.b16 %v1827, %v1826
        %v1833 = vpack.c.b16 %v1829, %v1828
        %1834 = vrot.lane.b32.xlu0 %v1830, 32
        %v1835 = vpop.permute.xlu0 %1834
        %1836 = vrot.lane.b32.xlu0 %v1831, 32
        %v1837 = vpop.permute.xlu0 %1836
        %1838 = vrot.lane.b32.xlu0 %v1832, 32
        %v1839 = vpop.permute.xlu0 %1838
        %1840 = vrot.lane.b32.xlu0 %v1833, 32
        %v1841 = vpop.permute.xlu0 %1840
        %vm1846 = vcmask 392448
        %1847 = vst.msk [vmem:[#allocation4] sm:$0xff] %vm1846, %v1835
        %1848 = vst.msk [vmem:[#allocation4 + $0x10] sm:$0xff] %vm1846, %v1837
        %1849 = vst.msk [vmem:[#allocation4 + $0x20] sm:$0xff] %vm1846, %v1839
        %1850 = vst.msk [vmem:[#allocation4 + $0x30] sm:$0xff] %vm1846, %v1841
        %v1851 = vld [vmem:[%s1508] sm:$0xf]
        %v1852 = vld [vmem:[%s1508 + $0x8] sm:$0xf]
        %v1853 = vld [vmem:[%s1508 + $0x10] sm:$0xf]
        %v1854 = vld [vmem:[%s1508 + $0x18] sm:$0xf]
        %v1855 = vld [vmem:[%s1508 + $0x20] sm:$0xf]
        %v1856 = vld [vmem:[%s1508 + $0x28] sm:$0xf]
        %v1857 = vld [vmem:[%s1508 + $0x30] sm:$0xf]
        %v1858 = vld [vmem:[%s1508 + $0x38] sm:$0xf]
        %v1867 = vunpack.c.l.b16 %v1851
        %v1868 = vunpack.c.l.b16 %v1852
        %v1869 = vunpack.c.l.b16 %v1853
        %v1870 = vunpack.c.l.b16 %v1854
        %v1871 = vunpack.c.l.b16 %v1855
        %v1872 = vunpack.c.l.b16 %v1856
        %v1873 = vunpack.c.l.b16 %v1857
        %v1874 = vunpack.c.l.b16 %v1858
        %v1875 = vpack.c.b16 %v1868, %v1867
        %v1876 = vpack.c.b16 %v1870, %v1869
        %v1877 = vpack.c.b16 %v1872, %v1871
        %v1878 = vpack.c.b16 %v1874, %v1873
        %1879 = vrot.lane.b32.xlu0 %v1875, 48
        %v1880 = vpop.permute.xlu0 %1879
        %1881 = vrot.lane.b32.xlu0 %v1876, 48
        %v1882 = vpop.permute.xlu0 %1881
        %1883 = vrot.lane.b32.xlu0 %v1877, 48
        %v1884 = vpop.permute.xlu0 %1883
        %1885 = vrot.lane.b32.xlu0 %v1878, 48
        %v1886 = vpop.permute.xlu0 %1885
        %vm1891 = vcmask 523648
        %1892 = vst.msk [vmem:[#allocation4] sm:$0xff] %vm1891, %v1880
        %1893 = vst.msk [vmem:[#allocation4 + $0x10] sm:$0xff] %vm1891, %v1882
        %1894 = vst.msk [vmem:[#allocation4 + $0x20] sm:$0xff] %vm1891, %v1884
        %1895 = vst.msk [vmem:[#allocation4 + $0x30] sm:$0xff] %vm1891, %v1886
        %v1896 = vld [vmem:[%s1508] sm:$0xf]
        %v1897 = vld [vmem:[%s1508 + $0x4] sm:$0x1]
        %v1898 = vld [vmem:[%s1508 + $0x8] sm:$0xf]
        %v1899 = vld [vmem:[%s1508 + $0xc] sm:$0x1]
        %v1900 = vld [vmem:[%s1508 + $0x10] sm:$0xf]
        %v1901 = vld [vmem:[%s1508 + $0x14] sm:$0x1]
        %v1902 = vld [vmem:[%s1508 + $0x18] sm:$0xf]
        %v1903 = vld [vmem:[%s1508 + $0x1c] sm:$0x1]
        %v1904 = vld [vmem:[%s1508 + $0x20] sm:$0xf]
        %v1905 = vld [vmem:[%s1508 + $0x24] sm:$0x1]
        %v1906 = vld [vmem:[%s1508 + $0x28] sm:$0xf]
        %v1907 = vld [vmem:[%s1508 + $0x2c] sm:$0x1]
        %v1908 = vld [vmem:[%s1508 + $0x30] sm:$0xf]
        %v1909 = vld [vmem:[%s1508 + $0x34] sm:$0x1]
        %v1910 = vld [vmem:[%s1508 + $0x38] sm:$0xf]
        %v1911 = vld [vmem:[%s1508 + $0x3c] sm:$0x1]
        %v1913 = vshrl.u32 %v1896, 16
        %v1915 = vrot.slane %v1913, 4
        %v1916 = vshll.u32 %v1896, 16
        %v1918 = vrot.slane %v1916, 5
        %v1919 = vor.u32 %v1915, %v1918
        %v1920 = vrot.slane %v1919, 4
        %v1922 = vshll.u32 %v1897, 16
        %v1924 = vrot.slane %v1922, 5
        %v1925 = vsel %vm1613, %v1920, %v1924
        %v1927 = vshrl.u32 %v1898, 16
        %v1929 = vrot.slane %v1927, 4
        %v1930 = vshll.u32 %v1898, 16
        %v1932 = vrot.slane %v1930, 5
        %v1933 = vor.u32 %v1929, %v1932
        %v1934 = vrot.slane %v1933, 4
        %v1936 = vshll.u32 %v1899, 16
        %v1938 = vrot.slane %v1936, 5
        %v1939 = vsel %vm1613, %v1934, %v1938
        %v1941 = vshrl.u32 %v1900, 16
        %v1943 = vrot.slane %v1941, 4
        %v1944 = vshll.u32 %v1900, 16
        %v1946 = vrot.slane %v1944, 5
        %v1947 = vor.u32 %v1943, %v1946
        %v1948 = vrot.slane %v1947, 4
        %v1950 = vshll.u32 %v1901, 16
        %v1952 = vrot.slane %v1950, 5
        %v1953 = vsel %vm1613, %v1948, %v1952
        %v1955 = vshrl.u32 %v1902, 16
        %v1957 = vrot.slane %v1955, 4
        %v1958 = vshll.u32 %v1902, 16
        %v1960 = vrot.slane %v1958, 5
        %v1961 = vor.u32 %v1957, %v1960
        %v1962 = vrot.slane %v1961, 4
        %v1964 = vshll.u32 %v1903, 16
        %v1966 = vrot.slane %v1964, 5
        %v1967 = vsel %vm1613, %v1962, %v1966
        %v1969 = vshrl.u32 %v1904, 16
        %v1971 = vrot.slane %v1969, 4
        %v1972 = vshll.u32 %v1904, 16
        %v1974 = vrot.slane %v1972, 5
        %v1975 = vor.u32 %v1971, %v1974
        %v1976 = vrot.slane %v1975, 4
        %v1978 = vshll.u32 %v1905, 16
        %v1980 = vrot.slane %v1978, 5
        %v1981 = vsel %vm1613, %v1976, %v1980
        %v1983 = vshrl.u32 %v1906, 16
        %v1985 = vrot.slane %v1983, 4
        %v1986 = vshll.u32 %v1906, 16
        %v1988 = vrot.slane %v1986, 5
        %v1989 = vor.u32 %v1985, %v1988
        %v1990 = vrot.slane %v1989, 4
        %v1992 = vshll.u32 %v1907, 16
        %v1994 = vrot.slane %v1992, 5
        %v1995 = vsel %vm1613, %v1990, %v1994
        %v1997 = vshrl.u32 %v1908, 16
        %v1999 = vrot.slane %v1997, 4
        %v2000 = vshll.u32 %v1908, 16
        %v2002 = vrot.slane %v2000, 5
        %v2003 = vor.u32 %v1999, %v2002
        %v2004 = vrot.slane %v2003, 4
        %v2006 = vshll.u32 %v1909, 16
        %v2008 = vrot.slane %v2006, 5
        %v2009 = vsel %vm1613, %v2004, %v2008
        %v2011 = vshrl.u32 %v1910, 16
        %v2013 = vrot.slane %v2011, 4
        %v2014 = vshll.u32 %v1910, 16
        %v2016 = vrot.slane %v2014, 5
        %v2017 = vor.u32 %v2013, %v2016
        %v2018 = vrot.slane %v2017, 4
        %v2020 = vshll.u32 %v1911, 16
        %v2022 = vrot.slane %v2020, 5
        %v2023 = vsel %vm1613, %v2018, %v2022
        %v2024 = vunpack.c.l.b16 %v1925
        %v2025 = vunpack.c.l.b16 %v1939
        %v2026 = vunpack.c.l.b16 %v1953
        %v2027 = vunpack.c.l.b16 %v1967
        %v2028 = vunpack.c.l.b16 %v1981
        %v2029 = vunpack.c.l.b16 %v1995
        %v2030 = vunpack.c.l.b16 %v2009
        %v2031 = vunpack.c.l.b16 %v2023
        %v2032 = vpack.c.b16 %v2025, %v2024
        %v2033 = vpack.c.b16 %v2027, %v2026
        %v2034 = vpack.c.b16 %v2029, %v2028
        %v2035 = vpack.c.b16 %v2031, %v2030
        %2036 = vrot.lane.b32.xlu0 %v2032, 64
        %v2037 = vpop.permute.xlu0 %2036
        %2038 = vrot.lane.b32.xlu0 %v2033, 64
        %v2039 = vpop.permute.xlu0 %2038
        %2040 = vrot.lane.b32.xlu0 %v2034, 64
        %v2041 = vpop.permute.xlu0 %2040
        %2042 = vrot.lane.b32.xlu0 %v2035, 64
        %v2043 = vpop.permute.xlu0 %2042
        %vm2048 = vcmask 654848
        %2049 = vst.msk [vmem:[#allocation4] sm:$0xff] %vm2048, %v2037
        %2050 = vst.msk [vmem:[#allocation4 + $0x10] sm:$0xff] %vm2048, %v2039
        %2051 = vst.msk [vmem:[#allocation4 + $0x20] sm:$0xff] %vm2048, %v2041
        %2052 = vst.msk [vmem:[#allocation4 + $0x30] sm:$0xff] %vm2048, %v2043
        %v2053 = vld [vmem:[%s1508] sm:$0xe]
        %v2054 = vld [vmem:[%s1508 + $0x4] sm:$0x1]
        %v2055 = vld [vmem:[%s1508 + $0x8] sm:$0xe]
        %v2056 = vld [vmem:[%s1508 + $0xc] sm:$0x1]
        %v2057 = vld [vmem:[%s1508 + $0x10] sm:$0xe]
        %v2058 = vld [vmem:[%s1508 + $0x14] sm:$0x1]
        %v2059 = vld [vmem:[%s1508 + $0x18] sm:$0xe]
        %v2060 = vld [vmem:[%s1508 + $0x1c] sm:$0x1]
        %v2061 = vld [vmem:[%s1508 + $0x20] sm:$0xe]
        %v2062 = vld [vmem:[%s1508 + $0x24] sm:$0x1]
        %v2063 = vld [vmem:[%s1508 + $0x28] sm:$0xe]
        %v2064 = vld [vmem:[%s1508 + $0x2c] sm:$0x1]
        %v2065 = vld [vmem:[%s1508 + $0x30] sm:$0xe]
        %v2066 = vld [vmem:[%s1508 + $0x34] sm:$0x1]
        %v2067 = vld [vmem:[%s1508 + $0x38] sm:$0xe]
        %v2068 = vld [vmem:[%s1508 + $0x3c] sm:$0x1]
        %v2085 = vrot.slane %v2053, 5
        %v2086 = vrot.slane %v2085, 4
        %v2087 = vrot.slane %v2054, 5
        %v2088 = vsel %vm1789, %v2086, %v2087
        %v2089 = vrot.slane %v2055, 5
        %v2090 = vrot.slane %v2089, 4
        %v2091 = vrot.slane %v2056, 5
        %v2092 = vsel %vm1789, %v2090, %v2091
        %v2093 = vrot.slane %v2057, 5
        %v2094 = vrot.slane %v2093, 4
        %v2095 = vrot.slane %v2058, 5
        %v2096 = vsel %vm1789, %v2094, %v2095
        %v2097 = vrot.slane %v2059, 5
        %v2098 = vrot.slane %v2097, 4
        %v2099 = vrot.slane %v2060, 5
        %v2100 = vsel %vm1789, %v2098, %v2099
        %v2101 = vrot.slane %v2061, 5
        %v2102 = vrot.slane %v2101, 4
        %v2103 = vrot.slane %v2062, 5
        %v2104 = vsel %vm1789, %v2102, %v2103
        %v2105 = vrot.slane %v2063, 5
        %v2106 = vrot.slane %v2105, 4
        %v2107 = vrot.slane %v2064, 5
        %v2108 = vsel %vm1789, %v2106, %v2107
        %v2109 = vrot.slane %v2065, 5
        %v2110 = vrot.slane %v2109, 4
        %v2111 = vrot.slane %v2066, 5
        %v2112 = vsel %vm1789, %v2110, %v2111
        %v2113 = vrot.slane %v2067, 5
        %v2114 = vrot.slane %v2113, 4
        %v2115 = vrot.slane %v2068, 5
        %v2116 = vsel %vm1789, %v2114, %v2115
        %v2117 = vunpack.c.l.b16 %v2088
        %v2118 = vunpack.c.l.b16 %v2092
        %v2119 = vunpack.c.l.b16 %v2096
        %v2120 = vunpack.c.l.b16 %v2100
        %v2121 = vunpack.c.l.b16 %v2104
        %v2122 = vunpack.c.l.b16 %v2108
        %v2123 = vunpack.c.l.b16 %v2112
        %v2124 = vunpack.c.l.b16 %v2116
        %v2125 = vpack.c.b16 %v2118, %v2117
        %v2126 = vpack.c.b16 %v2120, %v2119
        %v2127 = vpack.c.b16 %v2122, %v2121
        %v2128 = vpack.c.b16 %v2124, %v2123
        %2129 = vrot.lane.b32.xlu0 %v2125, 80
        %v2130 = vpop.permute.xlu0 %2129
        %2131 = vrot.lane.b32.xlu0 %v2126, 80
        %v2132 = vpop.permute.xlu0 %2131
        %2133 = vrot.lane.b32.xlu0 %v2127, 80
        %v2134 = vpop.permute.xlu0 %2133
        %2135 = vrot.lane.b32.xlu0 %v2128, 80
        %v2136 = vpop.permute.xlu0 %2135
        %vm2141 = vcmask 786048
        %2142 = vst.msk [vmem:[#allocation4] sm:$0xff] %vm2141, %v2130
        %2143 = vst.msk [vmem:[#allocation4 + $0x10] sm:$0xff] %vm2141, %v2132
        %2144 = vst.msk [vmem:[#allocation4 + $0x20] sm:$0xff] %vm2141, %v2134
        %2145 = vst.msk [vmem:[#allocation4 + $0x30] sm:$0xff] %vm2141, %v2136
        %s2146 = scalar_lea.vmem [#allocation2], 16
        %v2147 = vld [vmem:[%s2146] sm:$0xf]
        %v2148 = vld [vmem:[%s2146 + $0x8] sm:$0xf]
        %v2149 = vld [vmem:[%s2146 + $0x10] sm:$0xf]
        %v2150 = vld [vmem:[%s2146 + $0x18] sm:$0xf]
        %v2151 = vld [vmem:[%s2146 + $0x20] sm:$0xf]
        %v2152 = vld [vmem:[%s2146 + $0x28] sm:$0xf]
        %v2153 = vld [vmem:[%s2146 + $0x30] sm:$0xf]
        %v2154 = vld [vmem:[%s2146 + $0x38] sm:$0xf]
        %v2163 = vunpack.c.l.b16 %v2147
        %v2164 = vunpack.c.l.b16 %v2148
        %v2165 = vunpack.c.l.b16 %v2149
        %v2166 = vunpack.c.l.b16 %v2150
        %v2167 = vunpack.c.l.b16 %v2151
        %v2168 = vunpack.c.l.b16 %v2152
        %v2169 = vunpack.c.l.b16 %v2153
        %v2170 = vunpack.c.l.b16 %v2154
        %v2171 = vpack.c.b16 %v2164, %v2163
        %v2172 = vpack.c.b16 %v2166, %v2165
        %v2173 = vpack.c.b16 %v2168, %v2167
        %v2174 = vpack.c.b16 %v2170, %v2169
        %2175 = vrot.lane.b32.xlu0 %v2171, 96
        %v2176 = vpop.permute.xlu0 %2175
        %2177 = vrot.lane.b32.xlu0 %v2172, 96
        %v2178 = vpop.permute.xlu0 %2177
        %2179 = vrot.lane.b32.xlu0 %v2173, 96
        %v2180 = vpop.permute.xlu0 %2179
        %2181 = vrot.lane.b32.xlu0 %v2174, 96
        %v2182 = vpop.permute.xlu0 %2181
        %vm2187 = vcmask 917248
        %2188 = vst.msk [vmem:[#allocation4] sm:$0xff] %vm2187, %v2176
        %2189 = vst.msk [vmem:[#allocation4 + $0x10] sm:$0xff] %vm2187, %v2178
        %2190 = vst.msk [vmem:[#allocation4 + $0x20] sm:$0xff] %vm2187, %v2180
        %2191 = vst.msk [vmem:[#allocation4 + $0x30] sm:$0xff] %vm2187, %v2182
        %v2192 = vld [vmem:[%s2146] sm:$0xf]
        %v2193 = vld [vmem:[%s2146 + $0x4] sm:$0x1]
        %v2194 = vld [vmem:[%s2146 + $0x8] sm:$0xf]
        %v2195 = vld [vmem:[%s2146 + $0xc] sm:$0x1]
        %v2196 = vld [vmem:[%s2146 + $0x10] sm:$0xf]
        %v2197 = vld [vmem:[%s2146 + $0x14] sm:$0x1]
        %v2198 = vld [vmem:[%s2146 + $0x18] sm:$0xf]
        %v2199 = vld [vmem:[%s2146 + $0x1c] sm:$0x1]
        %v2200 = vld [vmem:[%s2146 + $0x20] sm:$0xf]
        %v2201 = vld [vmem:[%s2146 + $0x24] sm:$0x1]
        %v2202 = vld [vmem:[%s2146 + $0x28] sm:$0xf]
        %v2203 = vld [vmem:[%s2146 + $0x2c] sm:$0x1]
        %v2204 = vld [vmem:[%s2146 + $0x30] sm:$0xf]
        %v2205 = vld [vmem:[%s2146 + $0x34] sm:$0x1]
        %v2206 = vld [vmem:[%s2146 + $0x38] sm:$0xf]
        %v2207 = vld [vmem:[%s2146 + $0x3c] sm:$0x1]
        %v2209 = vshrl.u32 %v2192, 16
        %v2211 = vrot.slane %v2209, 4
        %v2212 = vshll.u32 %v2192, 16
        %v2214 = vrot.slane %v2212, 5
        %v2215 = vor.u32 %v2211, %v2214
        %v2216 = vrot.slane %v2215, 4
        %v2218 = vshll.u32 %v2193, 16
        %v2220 = vrot.slane %v2218, 5
        %v2221 = vsel %vm1613, %v2216, %v2220
        %v2223 = vshrl.u32 %v2194, 16
        %v2225 = vrot.slane %v2223, 4
        %v2226 = vshll.u32 %v2194, 16
        %v2228 = vrot.slane %v2226, 5
        %v2229 = vor.u32 %v2225, %v2228
        %v2230 = vrot.slane %v2229, 4
        %v2232 = vshll.u32 %v2195, 16
        %v2234 = vrot.slane %v2232, 5
        %v2235 = vsel %vm1613, %v2230, %v2234
        %v2237 = vshrl.u32 %v2196, 16
        %v2239 = vrot.slane %v2237, 4
        %v2240 = vshll.u32 %v2196, 16
        %v2242 = vrot.slane %v2240, 5
        %v2243 = vor.u32 %v2239, %v2242
        %v2244 = vrot.slane %v2243, 4
        %v2246 = vshll.u32 %v2197, 16
        %v2248 = vrot.slane %v2246, 5
        %v2249 = vsel %vm1613, %v2244, %v2248
        %v2251 = vshrl.u32 %v2198, 16
        %v2253 = vrot.slane %v2251, 4
        %v2254 = vshll.u32 %v2198, 16
        %v2256 = vrot.slane %v2254, 5
        %v2257 = vor.u32 %v2253, %v2256
        %v2258 = vrot.slane %v2257, 4
        %v2260 = vshll.u32 %v2199, 16
        %v2262 = vrot.slane %v2260, 5
        %v2263 = vsel %vm1613, %v2258, %v2262
        %v2265 = vshrl.u32 %v2200, 16
        %v2267 = vrot.slane %v2265, 4
        %v2268 = vshll.u32 %v2200, 16
        %v2270 = vrot.slane %v2268, 5
        %v2271 = vor.u32 %v2267, %v2270
        %v2272 = vrot.slane %v2271, 4
        %v2274 = vshll.u32 %v2201, 16
        %v2276 = vrot.slane %v2274, 5
        %v2277 = vsel %vm1613, %v2272, %v2276
        %v2279 = vshrl.u32 %v2202, 16
        %v2281 = vrot.slane %v2279, 4
        %v2282 = vshll.u32 %v2202, 16
        %v2284 = vrot.slane %v2282, 5
        %v2285 = vor.u32 %v2281, %v2284
        %v2286 = vrot.slane %v2285, 4
        %v2288 = vshll.u32 %v2203, 16
        %v2290 = vrot.slane %v2288, 5
        %v2291 = vsel %vm1613, %v2286, %v2290
        %v2293 = vshrl.u32 %v2204, 16
        %v2295 = vrot.slane %v2293, 4
        %v2296 = vshll.u32 %v2204, 16
        %v2298 = vrot.slane %v2296, 5
        %v2299 = vor.u32 %v2295, %v2298
        %v2300 = vrot.slane %v2299, 4
        %v2302 = vshll.u32 %v2205, 16
        %v2304 = vrot.slane %v2302, 5
        %v2305 = vsel %vm1613, %v2300, %v2304
        %v2307 = vshrl.u32 %v2206, 16
        %v2309 = vrot.slane %v2307, 4
        %v2310 = vshll.u32 %v2206, 16
        %v2312 = vrot.slane %v2310, 5
        %v2313 = vor.u32 %v2309, %v2312
        %v2314 = vrot.slane %v2313, 4
        %v2316 = vshll.u32 %v2207, 16
        %v2318 = vrot.slane %v2316, 5
        %v2319 = vsel %vm1613, %v2314, %v2318
        %v2320 = vunpack.c.l.b16 %v2221
        %v2321 = vunpack.c.l.b16 %v2235
        %v2322 = vunpack.c.l.b16 %v2249
        %v2323 = vunpack.c.l.b16 %v2263
        %v2324 = vunpack.c.l.b16 %v2277
        %v2325 = vunpack.c.l.b16 %v2291
        %v2326 = vunpack.c.l.b16 %v2305
        %v2327 = vunpack.c.l.b16 %v2319
        %v2328 = vpack.c.b16 %v2321, %v2320
        %v2329 = vpack.c.b16 %v2323, %v2322
        %v2330 = vpack.c.b16 %v2325, %v2324
        %v2331 = vpack.c.b16 %v2327, %v2326
        %2332 = vrot.lane.b32.xlu0 %v2328, 112
        %v2333 = vpop.permute.xlu0 %2332
        %2334 = vrot.lane.b32.xlu0 %v2329, 112
        %v2335 = vpop.permute.xlu0 %2334
        %2336 = vrot.lane.b32.xlu0 %v2330, 112
        %v2337 = vpop.permute.xlu0 %2336
        %2338 = vrot.lane.b32.xlu0 %v2331, 112
        %v2339 = vpop.permute.xlu0 %2338
        %vm2344 = vcmask 1048448
        %2345 = vst.msk [vmem:[#allocation4] sm:$0xff] %vm2344, %v2333
        %2346 = vst.msk [vmem:[#allocation4 + $0x10] sm:$0xff] %vm2344, %v2335
        %2347 = vst.msk [vmem:[#allocation4 + $0x20] sm:$0xff] %vm2344, %v2337
        %2348 = vst.msk [vmem:[#allocation4 + $0x30] sm:$0xff] %vm2344, %v2339
        %v2349 = vld [vmem:[%s2146] sm:$0xe]
        %v2350 = vld [vmem:[%s2146 + $0x4] sm:$0x1]
        %v2351 = vld [vmem:[%s2146 + $0x8] sm:$0xe]
        %v2352 = vld [vmem:[%s2146 + $0xc] sm:$0x1]
        %v2353 = vld [vmem:[%s2146 + $0x10] sm:$0xe]
        %v2354 = vld [vmem:[%s2146 + $0x14] sm:$0x1]
        %v2355 = vld [vmem:[%s2146 + $0x18] sm:$0xe]
        %v2356 = vld [vmem:[%s2146 + $0x1c] sm:$0x1]
        %v2357 = vld [vmem:[%s2146 + $0x20] sm:$0xe]
        %v2358 = vld [vmem:[%s2146 + $0x24] sm:$0x1]
        %v2359 = vld [vmem:[%s2146 + $0x28] sm:$0xe]
        %v2360 = vld [vmem:[%s2146 + $0x2c] sm:$0x1]
        %v2361 = vld [vmem:[%s2146 + $0x30] sm:$0xe]
        %v2362 = vld [vmem:[%s2146 + $0x34] sm:$0x1]
        %v2363 = vld [vmem:[%s2146 + $0x38] sm:$0xe]
        %v2364 = vld [vmem:[%s2146 + $0x3c] sm:$0x1]
        %v2381 = vrot.slane %v2349, 5
        %v2382 = vrot.slane %v2381, 4
        %v2383 = vrot.slane %v2350, 5
        %v2384 = vsel %vm1789, %v2382, %v2383
        %v2385 = vrot.slane %v2351, 5
        %v2386 = vrot.slane %v2385, 4
        %v2387 = vrot.slane %v2352, 5
        %v2388 = vsel %vm1789, %v2386, %v2387
        %v2389 = vrot.slane %v2353, 5
        %v2390 = vrot.slane %v2389, 4
        %v2391 = vrot.slane %v2354, 5
        %v2392 = vsel %vm1789, %v2390, %v2391
        %v2393 = vrot.slane %v2355, 5
        %v2394 = vrot.slane %v2393, 4
        %v2395 = vrot.slane %v2356, 5
        %v2396 = vsel %vm1789, %v2394, %v2395
        %v2397 = vrot.slane %v2357, 5
        %v2398 = vrot.slane %v2397, 4
        %v2399 = vrot.slane %v2358, 5
        %v2400 = vsel %vm1789, %v2398, %v2399
        %v2401 = vrot.slane %v2359, 5
        %v2402 = vrot.slane %v2401, 4
        %v2403 = vrot.slane %v2360, 5
        %v2404 = vsel %vm1789, %v2402, %v2403
        %v2405 = vrot.slane %v2361, 5
        %v2406 = vrot.slane %v2405, 4
        %v2407 = vrot.slane %v2362, 5
        %v2408 = vsel %vm1789, %v2406, %v2407
        %v2409 = vrot.slane %v2363, 5
        %v2410 = vrot.slane %v2409, 4
        %v2411 = vrot.slane %v2364, 5
        %v2412 = vsel %vm1789, %v2410, %v2411
        %v2413 = vunpack.c.l.b16 %v2384
        %v2414 = vunpack.c.l.b16 %v2388
        %v2415 = vunpack.c.l.b16 %v2392
        %v2416 = vunpack.c.l.b16 %v2396
        %v2417 = vunpack.c.l.b16 %v2400
        %v2418 = vunpack.c.l.b16 %v2404
        %v2419 = vunpack.c.l.b16 %v2408
        %v2420 = vunpack.c.l.b16 %v2412
        %v2421 = vpack.c.b16 %v2414, %v2413
        %v2422 = vpack.c.b16 %v2416, %v2415
        %v2423 = vpack.c.b16 %v2418, %v2417
        %v2424 = vpack.c.b16 %v2420, %v2419
        %2429 = vst.msk [vmem:[#allocation4 + $0x8] sm:$0xff] %vm572, %v2421
        %2430 = vst.msk [vmem:[#allocation4 + $0x18] sm:$0xff] %vm572, %v2422
        %2431 = vst.msk [vmem:[#allocation4 + $0x28] sm:$0xff] %vm572, %v2423
        %2432 = vst.msk [vmem:[#allocation4 + $0x38] sm:$0xff] %vm572, %v2424
        %v2433 = vld [vmem:[#allocation4] sm:$0xff]
        %v2434 = vld [vmem:[#allocation4 + $0x8] sm:$0xff]
        %v2435 = vld [vmem:[#allocation4 + $0x10] sm:$0xff]
        %v2436 = vld [vmem:[#allocation4 + $0x18] sm:$0xff]
        %v2437 = vld [vmem:[#allocation4 + $0x20] sm:$0xff]
        %v2438 = vld [vmem:[#allocation4 + $0x28] sm:$0xff]
        %v2439 = vld [vmem:[#allocation4 + $0x30] sm:$0xff]
        %v2440 = vld [vmem:[#allocation4 + $0x38] sm:$0xff]
        %v2442 = vsel %vm572, %v2434, 0
        %v2445 = vsel %vm572, %v2436, 0
        %v2448 = vsel %vm572, %v2438, 0
        %v2451 = vsel %vm572, %v2440, 0
        %2453 = vmatprep.subr.bf16.mxu0 0
        %2454 = vmatpush1.bf16.msra.mxu0 %v980
        %2455 = vmatprep.subr.bf16.mxu0 0
        %2456 = vmatpush1.bf16.msra.mxu0 %v981
        %2457 = vmatprep.subr.bf16.mxu0 0
        %2458 = vmatpush1.bf16.msra.mxu0 %v982
        %2459 = vmatprep.subr.bf16.mxu0 0
        %2460 = vmatpush1.bf16.msra.mxu0 %v983
        %2461 = vmatprep.subr.bf16.mxu0 0
        %2462 = vmatpush1.bf16.msra.mxu0 %v984
        %2463 = vmatprep.subr.bf16.mxu0 0
        %2464 = vmatpush1.bf16.msra.mxu0 %v985
        %2465 = vmatprep.subr.bf16.mxu0 0
        %2466 = vmatpush1.bf16.msra.mxu0 %v986
        %2467 = vmatprep.subr.bf16.mxu0 0
        %2468 = vmatpush1.bf16.msra.mxu0 %v987
        %2469 = vmatprep.subr.bf16.mxu0 0
        %2470 = vmatpush1.bf16.msra.mxu0 %v988
        %2471 = vmatprep.subr.bf16.mxu0 0
        %2472 = vmatpush1.bf16.msra.mxu0 0
        %2473 = vmatprep.subr.bf16.mxu0 0
        %2474 = vmatpush1.bf16.msra.mxu0 0
        %2475 = vmatprep.subr.bf16.mxu0 0
        %2476 = vmatpush1.bf16.msra.mxu0 0
        %2477 = vmatprep.subr.bf16.mxu0 0
        %2478 = vmatpush1.bf16.msra.mxu0 0
        %2479 = vmatprep.subr.bf16.mxu0 0
        %2480 = vmatpush1.bf16.msra.mxu0 0
        %2481 = vmatprep.subr.bf16.mxu0 0
        %2482 = vmatpush1.bf16.msra.mxu0 0
        %2483 = vmatprep.subr.bf16.mxu0 0
        %2484 = vmatpush1.bf16.msra.mxu0 0
        %2485 = vmatprep.mubr.bf16.mxu0 %v2442
        %2486 = vmatmul.mubr.bf16.gmra.mrb[0].mxu0 %v2433
        %v2487 = vpop.f32.mrb[0].mxu0
        %v2488 = vadd.f32 0.0, %v2487
        %v2489 = vpop.f32.mrb[0].mxu0
        %v2490 = vpop.f32.mrb[0].mxu0
        %v2491 = vadd.f32 0.0, %v2490
        %v2492 = vpop.f32.mrb[0].mxu0
        %2493 = vmatprep.mubr.bf16.mxu0 %v2445
        %2494 = vmatmul.mubr.bf16.gmra.mrb[0].mxu0 %v2435
        %v2495 = vpop.f32.mrb[0].mxu0
        %v2496 = vadd.f32 0.0, %v2495
        %v2497 = vpop.f32.mrb[0].mxu0
        %v2498 = vpop.f32.mrb[0].mxu0
        %v2499 = vadd.f32 0.0, %v2498
        %v2500 = vpop.f32.mrb[0].mxu0
        %2501 = vmatprep.mubr.bf16.mxu0 %v2448
        %2502 = vmatmul.mubr.bf16.gmra.mrb[0].mxu0 %v2437
        %v2503 = vpop.f32.mrb[0].mxu0
        %v2504 = vadd.f32 0.0, %v2503
        %v2505 = vpop.f32.mrb[0].mxu0
        %v2506 = vpop.f32.mrb[0].mxu0
        %v2507 = vadd.f32 0.0, %v2506
        %v2508 = vpop.f32.mrb[0].mxu0
        %2509 = vmatprep.mubr.bf16.mxu0 %v2451
        %2510 = vmatmul.mubr.bf16.gmra.mrb[0].mxu0 %v2439
        %v2511 = vpop.f32.mrb[0].mxu0
        %v2512 = vadd.f32 0.0, %v2511
        %v2513 = vpop.f32.mrb[0].mxu0
        %v2514 = vpop.f32.mrb[0].mxu0
        %v2515 = vadd.f32 0.0, %v2514
        %v2516 = vpop.f32.mrb[0].mxu0
        %2517 = vdwg.mxu0
        %v2518 = vld [vmem:[#allocation15] sm:$0x1]
        %v2520 = vlaneseq
        %v2521 = vshrl.u32 %v2520, 7
        %v2522 = vsub.s32 0, %v2521
        %v2523 = vrot.slane %v2518, %v2522
        %v2525 = vmul.f32 %v2488, %v2523
        %v2526 = vmul.f32 %v2491, %v2523
        %v2527 = vmul.f32 %v2496, %v2523
        %v2528 = vmul.f32 %v2499, %v2523
        %v2529 = vmul.f32 %v2504, %v2523
        %v2530 = vmul.f32 %v2507, %v2523
        %v2531 = vmul.f32 %v2512, %v2523
        %v2532 = vmul.f32 %v2515, %v2523
        %v2533 = vld [vmem:[#allocation17] sm:$0x1]
        %v2535 = vlaneseq
        %v2536 = vshrl.u32 %v2535, 7
        %v2537 = vsub.s32 0, %v2536
        %v2538 = vrot.slane %v2533, %v2537
        %v2540 = vadd.f32 %v2525, %v2538
        %v2541 = vadd.f32 %v2526, %v2538
        %v2542 = vadd.f32 %v2527, %v2538
        %v2543 = vadd.f32 %v2528, %v2538
        %v2544 = vadd.f32 %v2529, %v2538
        %v2545 = vadd.f32 %v2530, %v2538
        %v2546 = vadd.f32 %v2531, %v2538
        %v2547 = vadd.f32 %v2532, %v2538
        %v2548 = vmax.f32 %v2540, 0.0
        %v2549 = vmax.f32 %v2541, 0.0
        %v2550 = vmax.f32 %v2542, 0.0
        %v2551 = vmax.f32 %v2543, 0.0
        %v2552 = vmax.f32 %v2544, 0.0
        %v2553 = vmax.f32 %v2545, 0.0
        %v2554 = vmax.f32 %v2546, 0.0
        %v2555 = vmax.f32 %v2547, 0.0
        %2556 = vst.msk [vmem:[#allocation3] sm:$0xf] %vm1324, 0
        %2557 = vst.msk [vmem:[#allocation3 + $0x4] sm:$0x1] %vm1326, 0
        %s2558 = scalar_lea.vmem [#allocation3], 72
        %2559 = vst.msk [vmem:[%s2558] sm:$0xf] %vm1324, 0
        %2560 = vst.msk [vmem:[%s2558 + $0x4] sm:$0x1] %vm1326, 0
        %v2561 = vld [vmem:[#allocation3] sm:$0x1]
        %v2562 = vsel %vm1333, 0, %v2561
        %2563 = vst [vmem:[#allocation3] sm:$0x1] %v2562
        %v2564 = vld [vmem:[#allocation3 + $0x8] sm:$0x1]
        %v2565 = vsel %vm1333, 0, %v2564
        %2566 = vst [vmem:[#allocation3 + $0x8] sm:$0x1] %v2565
        %v2567 = vld [vmem:[#allocation3 + $0x10] sm:$0x1]
        %v2568 = vsel %vm1333, 0, %v2567
        %2569 = vst [vmem:[#allocation3 + $0x10] sm:$0x1] %v2568
        %v2570 = vld [vmem:[#allocation3 + $0x18] sm:$0x1]
        %v2571 = vsel %vm1333, 0, %v2570
        %2572 = vst [vmem:[#allocation3 + $0x18] sm:$0x1] %v2571
        %v2573 = vld [vmem:[#allocation3 + $0x20] sm:$0x1]
        %v2574 = vsel %vm1333, 0, %v2573
        %2575 = vst [vmem:[#allocation3 + $0x20] sm:$0x1] %v2574
        %v2576 = vld [vmem:[#allocation3 + $0x28] sm:$0x1]
        %v2577 = vsel %vm1333, 0, %v2576
        %2578 = vst [vmem:[#allocation3 + $0x28] sm:$0x1] %v2577
        %v2579 = vld [vmem:[#allocation3 + $0x30] sm:$0x1]
        %v2580 = vsel %vm1333, 0, %v2579
        %2581 = vst [vmem:[#allocation3 + $0x30] sm:$0x1] %v2580
        %v2582 = vld [vmem:[#allocation3 + $0x38] sm:$0x1]
        %v2583 = vsel %vm1333, 0, %v2582
        %2584 = vst [vmem:[#allocation3 + $0x38] sm:$0x1] %v2583
        %v2585 = vld [vmem:[#allocation3 + $0x40] sm:$0x1]
        %v2586 = vsel %vm1333, 0, %v2585
        %2587 = vst [vmem:[#allocation3 + $0x40] sm:$0x1] %v2586
        %v2588 = vld [vmem:[#allocation3 + $0x48] sm:$0x1]
        %v2589 = vsel %vm1333, 0, %v2588
        %2590 = vst [vmem:[#allocation3 + $0x48] sm:$0x1] %v2589
        %v2591 = vld [vmem:[#allocation3 + $0x4] sm:$0x1]
        %v2592 = vsel %vm1365, 0, %v2591
        %2593 = vst [vmem:[#allocation3 + $0x4] sm:$0x1] %v2592
        %v2594 = vld [vmem:[#allocation3 + $0xc] sm:$0x1]
        %v2595 = vsel %vm1365, 0, %v2594
        %2596 = vst [vmem:[#allocation3 + $0xc] sm:$0x1] %v2595
        %v2597 = vld [vmem:[#allocation3 + $0x14] sm:$0x1]
        %v2598 = vsel %vm1365, 0, %v2597
        %2599 = vst [vmem:[#allocation3 + $0x14] sm:$0x1] %v2598
        %v2600 = vld [vmem:[#allocation3 + $0x1c] sm:$0x1]
        %v2601 = vsel %vm1365, 0, %v2600
        %2602 = vst [vmem:[#allocation3 + $0x1c] sm:$0x1] %v2601
        %v2603 = vld [vmem:[#allocation3 + $0x24] sm:$0x1]
        %v2604 = vsel %vm1365, 0, %v2603
        %2605 = vst [vmem:[#allocation3 + $0x24] sm:$0x1] %v2604
        %v2606 = vld [vmem:[#allocation3 + $0x2c] sm:$0x1]
        %v2607 = vsel %vm1365, 0, %v2606
        %2608 = vst [vmem:[#allocation3 + $0x2c] sm:$0x1] %v2607
        %v2609 = vld [vmem:[#allocation3 + $0x34] sm:$0x1]
        %v2610 = vsel %vm1365, 0, %v2609
        %2611 = vst [vmem:[#allocation3 + $0x34] sm:$0x1] %v2610
        %v2612 = vld [vmem:[#allocation3 + $0x3c] sm:$0x1]
        %v2613 = vsel %vm1365, 0, %v2612
        %2614 = vst [vmem:[#allocation3 + $0x3c] sm:$0x1] %v2613
        %v2615 = vld [vmem:[#allocation3 + $0x44] sm:$0x1]
        %v2616 = vsel %vm1365, 0, %v2615
        %2617 = vst [vmem:[#allocation3 + $0x44] sm:$0x1] %v2616
        %v2618 = vld [vmem:[#allocation3 + $0x4c] sm:$0x1]
        %v2619 = vsel %vm1365, 0, %v2618
        %2620 = vst [vmem:[#allocation3 + $0x4c] sm:$0x1] %v2619
        %v2621 = vpack.c.bf16 %v2548, %v2548
        %v2622 = vpack.c.bf16 %v2549, %v2549
        %v2623 = vpack.c.bf16 %v2550, %v2550
        %v2624 = vpack.c.bf16 %v2551, %v2551
        %v2625 = vpack.c.bf16 %v2552, %v2552
        %v2626 = vpack.c.bf16 %v2553, %v2553
        %v2627 = vpack.c.bf16 %v2554, %v2554
        %v2628 = vpack.c.bf16 %v2555, %v2555
        %v2637 = vunpack.c.l.b16 %v2621
        %v2638 = vunpack.c.l.b16 %v2622
        %v2639 = vunpack.c.l.b16 %v2623
        %v2640 = vunpack.c.l.b16 %v2624
        %v2641 = vunpack.c.l.b16 %v2625
        %v2642 = vunpack.c.l.b16 %v2626
        %v2643 = vunpack.c.l.b16 %v2627
        %v2644 = vunpack.c.l.b16 %v2628
        %v2645 = vpack.c.b16 %v2637, %v2637
        %v2646 = vpack.c.b16 %v2638, %v2638
        %v2647 = vpack.c.b16 %v2639, %v2639
        %v2648 = vpack.c.b16 %v2640, %v2640
        %v2649 = vpack.c.b16 %v2641, %v2641
        %v2650 = vpack.c.b16 %v2642, %v2642
        %v2651 = vpack.c.b16 %v2643, %v2643
        %v2652 = vpack.c.b16 %v2644, %v2644
        %v2654 = vshrl.u32 %v2645, 16
        %v2656 = vrot.slane %v2654, 7
        %v2657 = vshll.u32 %v2645, 16
        %v2659 = vor.u32 %v2656, %v2657
        %v2660 = vrot.slane %v2656, 4
        %v2662 = vshrl.u32 %v2646, 16
        %v2664 = vrot.slane %v2662, 7
        %v2665 = vshll.u32 %v2646, 16
        %v2667 = vor.u32 %v2664, %v2665
        %v2668 = vrot.slane %v2664, 4
        %v2670 = vshrl.u32 %v2647, 16
        %v2672 = vrot.slane %v2670, 7
        %v2673 = vshll.u32 %v2647, 16
        %v2675 = vor.u32 %v2672, %v2673
        %v2676 = vrot.slane %v2672, 4
        %v2678 = vshrl.u32 %v2648, 16
        %v2680 = vrot.slane %v2678, 7
        %v2681 = vshll.u32 %v2648, 16
        %v2683 = vor.u32 %v2680, %v2681
        %v2684 = vrot.slane %v2680, 4
        %v2686 = vshrl.u32 %v2649, 16
        %v2688 = vrot.slane %v2686, 7
        %v2689 = vshll.u32 %v2649, 16
        %v2691 = vor.u32 %v2688, %v2689
        %v2692 = vrot.slane %v2688, 4
        %v2694 = vshrl.u32 %v2650, 16
        %v2696 = vrot.slane %v2694, 7
        %v2697 = vshll.u32 %v2650, 16
        %v2699 = vor.u32 %v2696, %v2697
        %v2700 = vrot.slane %v2696, 4
        %v2702 = vshrl.u32 %v2651, 16
        %v2704 = vrot.slane %v2702, 7
        %v2705 = vshll.u32 %v2651, 16
        %v2707 = vor.u32 %v2704, %v2705
        %v2708 = vrot.slane %v2704, 4
        %v2710 = vshrl.u32 %v2652, 16
        %v2712 = vrot.slane %v2710, 7
        %v2713 = vshll.u32 %v2652, 16
        %v2715 = vor.u32 %v2712, %v2713
        %v2716 = vrot.slane %v2712, 4
        %s2733 = scalar_lea.vmem [#allocation3], 8
        %v2734 = vld [vmem:[%s2733] sm:$0xf]
        %v2735 = vsel %vm1510, %v2659, %v2734
        %2736 = vst [vmem:[%s2733] sm:$0xf] %v2735
        %v2737 = vld [vmem:[%s2733 + $0x4] sm:$0x1]
        %v2738 = vsel %vm1333, %v2660, %v2737
        %2739 = vst [vmem:[%s2733 + $0x4] sm:$0x1] %v2738
        %v2740 = vld [vmem:[%s2733 + $0x8] sm:$0xf]
        %v2741 = vsel %vm1510, %v2667, %v2740
        %2742 = vst [vmem:[%s2733 + $0x8] sm:$0xf] %v2741
        %v2743 = vld [vmem:[%s2733 + $0xc] sm:$0x1]
        %v2744 = vsel %vm1333, %v2668, %v2743
        %2745 = vst [vmem:[%s2733 + $0xc] sm:$0x1] %v2744
        %v2746 = vld [vmem:[%s2733 + $0x10] sm:$0xf]
        %v2747 = vsel %vm1510, %v2675, %v2746
        %2748 = vst [vmem:[%s2733 + $0x10] sm:$0xf] %v2747
        %v2749 = vld [vmem:[%s2733 + $0x14] sm:$0x1]
        %v2750 = vsel %vm1333, %v2676, %v2749
        %2751 = vst [vmem:[%s2733 + $0x14] sm:$0x1] %v2750
        %v2752 = vld [vmem:[%s2733 + $0x18] sm:$0xf]
        %v2753 = vsel %vm1510, %v2683, %v2752
        %2754 = vst [vmem:[%s2733 + $0x18] sm:$0xf] %v2753
        %v2755 = vld [vmem:[%s2733 + $0x1c] sm:$0x1]
        %v2756 = vsel %vm1333, %v2684, %v2755
        %2757 = vst [vmem:[%s2733 + $0x1c] sm:$0x1] %v2756
        %v2758 = vld [vmem:[%s2733 + $0x20] sm:$0xf]
        %v2759 = vsel %vm1510, %v2691, %v2758
        %2760 = vst [vmem:[%s2733 + $0x20] sm:$0xf] %v2759
        %v2761 = vld [vmem:[%s2733 + $0x24] sm:$0x1]
        %v2762 = vsel %vm1333, %v2692, %v2761
        %2763 = vst [vmem:[%s2733 + $0x24] sm:$0x1] %v2762
        %v2764 = vld [vmem:[%s2733 + $0x28] sm:$0xf]
        %v2765 = vsel %vm1510, %v2699, %v2764
        %2766 = vst [vmem:[%s2733 + $0x28] sm:$0xf] %v2765
        %v2767 = vld [vmem:[%s2733 + $0x2c] sm:$0x1]
        %v2768 = vsel %vm1333, %v2700, %v2767
        %2769 = vst [vmem:[%s2733 + $0x2c] sm:$0x1] %v2768
        %v2770 = vld [vmem:[%s2733 + $0x30] sm:$0xf]
        %v2771 = vsel %vm1510, %v2707, %v2770
        %2772 = vst [vmem:[%s2733 + $0x30] sm:$0xf] %v2771
        %v2773 = vld [vmem:[%s2733 + $0x34] sm:$0x1]
        %v2774 = vsel %vm1333, %v2708, %v2773
        %2775 = vst [vmem:[%s2733 + $0x34] sm:$0x1] %v2774
        %v2776 = vld [vmem:[%s2733 + $0x38] sm:$0xf]
        %v2777 = vsel %vm1510, %v2715, %v2776
        %2778 = vst [vmem:[%s2733 + $0x38] sm:$0xf] %v2777
        %v2779 = vld [vmem:[%s2733 + $0x3c] sm:$0x1]
        %v2780 = vsel %vm1333, %v2716, %v2779
        %2781 = vst [vmem:[%s2733 + $0x3c] sm:$0x1] %v2780
        %v2782 = vld [vmem:[#allocation3] sm:$0xf]
        %v2783 = vld [vmem:[#allocation3 + $0x8] sm:$0xf]
        %v2784 = vld [vmem:[#allocation3 + $0x10] sm:$0xf]
        %v2785 = vld [vmem:[#allocation3 + $0x18] sm:$0xf]
        %v2786 = vld [vmem:[#allocation3 + $0x20] sm:$0xf]
        %v2787 = vld [vmem:[#allocation3 + $0x28] sm:$0xf]
        %v2788 = vld [vmem:[#allocation3 + $0x30] sm:$0xf]
        %v2789 = vld [vmem:[#allocation3 + $0x38] sm:$0xf]
        %v2798 = vunpack.c.l.b16 %v2782
        %v2799 = vunpack.c.l.b16 %v2783
        %v2800 = vunpack.c.l.b16 %v2784
        %v2801 = vunpack.c.l.b16 %v2785
        %v2802 = vunpack.c.l.b16 %v2786
        %v2803 = vunpack.c.l.b16 %v2787
        %v2804 = vunpack.c.l.b16 %v2788
        %v2805 = vunpack.c.l.b16 %v2789
        %v2806 = vpack.c.b16 %v2799, %v2798
        %v2807 = vpack.c.b16 %v2801, %v2800
        %v2808 = vpack.c.b16 %v2803, %v2802
        %v2809 = vpack.c.b16 %v2805, %v2804
        %2814 = vst.msk [vmem:[#allocation5] sm:$0xff] %vm572, %v2806
        %2815 = vst.msk [vmem:[#allocation5 + $0x10] sm:$0xff] %vm572, %v2807
        %2816 = vst.msk [vmem:[#allocation5 + $0x20] sm:$0xff] %vm572, %v2808
        %2817 = vst.msk [vmem:[#allocation5 + $0x30] sm:$0xff] %vm572, %v2809
        %v2818 = vld [vmem:[#allocation3] sm:$0xf]
        %v2819 = vld [vmem:[#allocation3 + $0x4] sm:$0x1]
        %v2820 = vld [vmem:[#allocation3 + $0x8] sm:$0xf]
        %v2821 = vld [vmem:[#allocation3 + $0xc] sm:$0x1]
        %v2822 = vld [vmem:[#allocation3 + $0x10] sm:$0xf]
        %v2823 = vld [vmem:[#allocation3 + $0x14] sm:$0x1]
        %v2824 = vld [vmem:[#allocation3 + $0x18] sm:$0xf]
        %v2825 = vld [vmem:[#allocation3 + $0x1c] sm:$0x1]
        %v2826 = vld [vmem:[#allocation3 + $0x20] sm:$0xf]
        %v2827 = vld [vmem:[#allocation3 + $0x24] sm:$0x1]
        %v2828 = vld [vmem:[#allocation3 + $0x28] sm:$0xf]
        %v2829 = vld [vmem:[#allocation3 + $0x2c] sm:$0x1]
        %v2830 = vld [vmem:[#allocation3 + $0x30] sm:$0xf]
        %v2831 = vld [vmem:[#allocation3 + $0x34] sm:$0x1]
        %v2832 = vld [vmem:[#allocation3 + $0x38] sm:$0xf]
        %v2833 = vld [vmem:[#allocation3 + $0x3c] sm:$0x1]
        %v2835 = vshrl.u32 %v2818, 16
        %v2837 = vrot.slane %v2835, 4
        %v2838 = vshll.u32 %v2818, 16
        %v2840 = vrot.slane %v2838, 5
        %v2841 = vor.u32 %v2837, %v2840
        %v2842 = vrot.slane %v2841, 4
        %v2844 = vshll.u32 %v2819, 16
        %v2846 = vrot.slane %v2844, 5
        %v2847 = vsel %vm1613, %v2842, %v2846
        %v2849 = vshrl.u32 %v2820, 16
        %v2851 = vrot.slane %v2849, 4
        %v2852 = vshll.u32 %v2820, 16
        %v2854 = vrot.slane %v2852, 5
        %v2855 = vor.u32 %v2851, %v2854
        %v2856 = vrot.slane %v2855, 4
        %v2858 = vshll.u32 %v2821, 16
        %v2860 = vrot.slane %v2858, 5
        %v2861 = vsel %vm1613, %v2856, %v2860
        %v2863 = vshrl.u32 %v2822, 16
        %v2865 = vrot.slane %v2863, 4
        %v2866 = vshll.u32 %v2822, 16
        %v2868 = vrot.slane %v2866, 5
        %v2869 = vor.u32 %v2865, %v2868
        %v2870 = vrot.slane %v2869, 4
        %v2872 = vshll.u32 %v2823, 16
        %v2874 = vrot.slane %v2872, 5
        %v2875 = vsel %vm1613, %v2870, %v2874
        %v2877 = vshrl.u32 %v2824, 16
        %v2879 = vrot.slane %v2877, 4
        %v2880 = vshll.u32 %v2824, 16
        %v2882 = vrot.slane %v2880, 5
        %v2883 = vor.u32 %v2879, %v2882
        %v2884 = vrot.slane %v2883, 4
        %v2886 = vshll.u32 %v2825, 16
        %v2888 = vrot.slane %v2886, 5
        %v2889 = vsel %vm1613, %v2884, %v2888
        %v2891 = vshrl.u32 %v2826, 16
        %v2893 = vrot.slane %v2891, 4
        %v2894 = vshll.u32 %v2826, 16
        %v2896 = vrot.slane %v2894, 5
        %v2897 = vor.u32 %v2893, %v2896
        %v2898 = vrot.slane %v2897, 4
        %v2900 = vshll.u32 %v2827, 16
        %v2902 = vrot.slane %v2900, 5
        %v2903 = vsel %vm1613, %v2898, %v2902
        %v2905 = vshrl.u32 %v2828, 16
        %v2907 = vrot.slane %v2905, 4
        %v2908 = vshll.u32 %v2828, 16
        %v2910 = vrot.slane %v2908, 5
        %v2911 = vor.u32 %v2907, %v2910
        %v2912 = vrot.slane %v2911, 4
        %v2914 = vshll.u32 %v2829, 16
        %v2916 = vrot.slane %v2914, 5
        %v2917 = vsel %vm1613, %v2912, %v2916
        %v2919 = vshrl.u32 %v2830, 16
        %v2921 = vrot.slane %v2919, 4
        %v2922 = vshll.u32 %v2830, 16
        %v2924 = vrot.slane %v2922, 5
        %v2925 = vor.u32 %v2921, %v2924
        %v2926 = vrot.slane %v2925, 4
        %v2928 = vshll.u32 %v2831, 16
        %v2930 = vrot.slane %v2928, 5
        %v2931 = vsel %vm1613, %v2926, %v2930
        %v2933 = vshrl.u32 %v2832, 16
        %v2935 = vrot.slane %v2933, 4
        %v2936 = vshll.u32 %v2832, 16
        %v2938 = vrot.slane %v2936, 5
        %v2939 = vor.u32 %v2935, %v2938
        %v2940 = vrot.slane %v2939, 4
        %v2942 = vshll.u32 %v2833, 16
        %v2944 = vrot.slane %v2942, 5
        %v2945 = vsel %vm1613, %v2940, %v2944
        %v2946 = vunpack.c.l.b16 %v2847
        %v2947 = vunpack.c.l.b16 %v2861
        %v2948 = vunpack.c.l.b16 %v2875
        %v2949 = vunpack.c.l.b16 %v2889
        %v2950 = vunpack.c.l.b16 %v2903
        %v2951 = vunpack.c.l.b16 %v2917
        %v2952 = vunpack.c.l.b16 %v2931
        %v2953 = vunpack.c.l.b16 %v2945
        %v2954 = vpack.c.b16 %v2947, %v2946
        %v2955 = vpack.c.b16 %v2949, %v2948
        %v2956 = vpack.c.b16 %v2951, %v2950
        %v2957 = vpack.c.b16 %v2953, %v2952
        %2958 = vrot.lane.b32.xlu0 %v2954, 16
        %v2959 = vpop.permute.xlu0 %2958
        %2960 = vrot.lane.b32.xlu0 %v2955, 16
        %v2961 = vpop.permute.xlu0 %2960
        %2962 = vrot.lane.b32.xlu0 %v2956, 16
        %v2963 = vpop.permute.xlu0 %2962
        %2964 = vrot.lane.b32.xlu0 %v2957, 16
        %v2965 = vpop.permute.xlu0 %2964
        %2970 = vst.msk [vmem:[#allocation5] sm:$0xff] %vm1750, %v2959
        %2971 = vst.msk [vmem:[#allocation5 + $0x10] sm:$0xff] %vm1750, %v2961
        %2972 = vst.msk [vmem:[#allocation5 + $0x20] sm:$0xff] %vm1750, %v2963
        %2973 = vst.msk [vmem:[#allocation5 + $0x30] sm:$0xff] %vm1750, %v2965
        %v2974 = vld [vmem:[#allocation3] sm:$0xe]
        %v2975 = vld [vmem:[#allocation3 + $0x4] sm:$0x1]
        %v2976 = vld [vmem:[#allocation3 + $0x8] sm:$0xe]
        %v2977 = vld [vmem:[#allocation3 + $0xc] sm:$0x1]
        %v2978 = vld [vmem:[#allocation3 + $0x10] sm:$0xe]
        %v2979 = vld [vmem:[#allocation3 + $0x14] sm:$0x1]
        %v2980 = vld [vmem:[#allocation3 + $0x18] sm:$0xe]
        %v2981 = vld [vmem:[#allocation3 + $0x1c] sm:$0x1]
        %v2982 = vld [vmem:[#allocation3 + $0x20] sm:$0xe]
        %v2983 = vld [vmem:[#allocation3 + $0x24] sm:$0x1]
        %v2984 = vld [vmem:[#allocation3 + $0x28] sm:$0xe]
        %v2985 = vld [vmem:[#allocation3 + $0x2c] sm:$0x1]
        %v2986 = vld [vmem:[#allocation3 + $0x30] sm:$0xe]
        %v2987 = vld [vmem:[#allocation3 + $0x34] sm:$0x1]
        %v2988 = vld [vmem:[#allocation3 + $0x38] sm:$0xe]
        %v2989 = vld [vmem:[#allocation3 + $0x3c] sm:$0x1]
        %v3006 = vrot.slane %v2974, 5
        %v3007 = vrot.slane %v3006, 4
        %v3008 = vrot.slane %v2975, 5
        %v3009 = vsel %vm1789, %v3007, %v3008
        %v3010 = vrot.slane %v2976, 5
        %v3011 = vrot.slane %v3010, 4
        %v3012 = vrot.slane %v2977, 5
        %v3013 = vsel %vm1789, %v3011, %v3012
        %v3014 = vrot.slane %v2978, 5
        %v3015 = vrot.slane %v3014, 4
        %v3016 = vrot.slane %v2979, 5
        %v3017 = vsel %vm1789, %v3015, %v3016
        %v3018 = vrot.slane %v2980, 5
        %v3019 = vrot.slane %v3018, 4
        %v3020 = vrot.slane %v2981, 5
        %v3021 = vsel %vm1789, %v3019, %v3020
        %v3022 = vrot.slane %v2982, 5
        %v3023 = vrot.slane %v3022, 4
        %v3024 = vrot.slane %v2983, 5
        %v3025 = vsel %vm1789, %v3023, %v3024
        %v3026 = vrot.slane %v2984, 5
        %v3027 = vrot.slane %v3026, 4
        %v3028 = vrot.slane %v2985, 5
        %v3029 = vsel %vm1789, %v3027, %v3028
        %v3030 = vrot.slane %v2986, 5
        %v3031 = vrot.slane %v3030, 4
        %v3032 = vrot.slane %v2987, 5
        %v3033 = vsel %vm1789, %v3031, %v3032
        %v3034 = vrot.slane %v2988, 5
        %v3035 = vrot.slane %v3034, 4
        %v3036 = vrot.slane %v2989, 5
        %v3037 = vsel %vm1789, %v3035, %v3036
        %v3038 = vunpack.c.l.b16 %v3009
        %v3039 = vunpack.c.l.b16 %v3013
        %v3040 = vunpack.c.l.b16 %v3017
        %v3041 = vunpack.c.l.b16 %v3021
        %v3042 = vunpack.c.l.b16 %v3025
        %v3043 = vunpack.c.l.b16 %v3029
        %v3044 = vunpack.c.l.b16 %v3033
        %v3045 = vunpack.c.l.b16 %v3037
        %v3046 = vpack.c.b16 %v3039, %v3038
        %v3047 = vpack.c.b16 %v3041, %v3040
        %v3048 = vpack.c.b16 %v3043, %v3042
        %v3049 = vpack.c.b16 %v3045, %v3044
        %3050 = vrot.lane.b32.xlu0 %v3046, 32
        %v3051 = vpop.permute.xlu0 %3050
        %3052 = vrot.lane.b32.xlu0 %v3047, 32
        %v3053 = vpop.permute.xlu0 %3052
        %3054 = vrot.lane.b32.xlu0 %v3048, 32
        %v3055 = vpop.permute.xlu0 %3054
        %3056 = vrot.lane.b32.xlu0 %v3049, 32
        %v3057 = vpop.permute.xlu0 %3056
        %3062 = vst.msk [vmem:[#allocation5] sm:$0xff] %vm1846, %v3051
        %3063 = vst.msk [vmem:[#allocation5 + $0x10] sm:$0xff] %vm1846, %v3053
        %3064 = vst.msk [vmem:[#allocation5 + $0x20] sm:$0xff] %vm1846, %v3055
        %3065 = vst.msk [vmem:[#allocation5 + $0x30] sm:$0xff] %vm1846, %v3057
        %v3066 = vld [vmem:[%s2733] sm:$0xf]
        %v3067 = vld [vmem:[%s2733 + $0x8] sm:$0xf]
        %v3068 = vld [vmem:[%s2733 + $0x10] sm:$0xf]
        %v3069 = vld [vmem:[%s2733 + $0x18] sm:$0xf]
        %v3070 = vld [vmem:[%s2733 + $0x20] sm:$0xf]
        %v3071 = vld [vmem:[%s2733 + $0x28] sm:$0xf]
        %v3072 = vld [vmem:[%s2733 + $0x30] sm:$0xf]
        %v3073 = vld [vmem:[%s2733 + $0x38] sm:$0xf]
        %v3082 = vunpack.c.l.b16 %v3066
        %v3083 = vunpack.c.l.b16 %v3067
        %v3084 = vunpack.c.l.b16 %v3068
        %v3085 = vunpack.c.l.b16 %v3069
        %v3086 = vunpack.c.l.b16 %v3070
        %v3087 = vunpack.c.l.b16 %v3071
        %v3088 = vunpack.c.l.b16 %v3072
        %v3089 = vunpack.c.l.b16 %v3073
        %v3090 = vpack.c.b16 %v3083, %v3082
        %v3091 = vpack.c.b16 %v3085, %v3084
        %v3092 = vpack.c.b16 %v3087, %v3086
        %v3093 = vpack.c.b16 %v3089, %v3088
        %3094 = vrot.lane.b32.xlu0 %v3090, 48
        %v3095 = vpop.permute.xlu0 %3094
        %3096 = vrot.lane.b32.xlu0 %v3091, 48
        %v3097 = vpop.permute.xlu0 %3096
        %3098 = vrot.lane.b32.xlu0 %v3092, 48
        %v3099 = vpop.permute.xlu0 %3098
        %3100 = vrot.lane.b32.xlu0 %v3093, 48
        %v3101 = vpop.permute.xlu0 %3100
        %3106 = vst.msk [vmem:[#allocation5] sm:$0xff] %vm1891, %v3095
        %3107 = vst.msk [vmem:[#allocation5 + $0x10] sm:$0xff] %vm1891, %v3097
        %3108 = vst.msk [vmem:[#allocation5 + $0x20] sm:$0xff] %vm1891, %v3099
        %3109 = vst.msk [vmem:[#allocation5 + $0x30] sm:$0xff] %vm1891, %v3101
        %v3110 = vld [vmem:[%s2733] sm:$0xf]
        %v3111 = vld [vmem:[%s2733 + $0x4] sm:$0x1]
        %v3112 = vld [vmem:[%s2733 + $0x8] sm:$0xf]
        %v3113 = vld [vmem:[%s2733 + $0xc] sm:$0x1]
        %v3114 = vld [vmem:[%s2733 + $0x10] sm:$0xf]
        %v3115 = vld [vmem:[%s2733 + $0x14] sm:$0x1]
        %v3116 = vld [vmem:[%s2733 + $0x18] sm:$0xf]
        %v3117 = vld [vmem:[%s2733 + $0x1c] sm:$0x1]
        %v3118 = vld [vmem:[%s2733 + $0x20] sm:$0xf]
        %v3119 = vld [vmem:[%s2733 + $0x24] sm:$0x1]
        %v3120 = vld [vmem:[%s2733 + $0x28] sm:$0xf]
        %v3121 = vld [vmem:[%s2733 + $0x2c] sm:$0x1]
        %v3122 = vld [vmem:[%s2733 + $0x30] sm:$0xf]
        %v3123 = vld [vmem:[%s2733 + $0x34] sm:$0x1]
        %v3124 = vld [vmem:[%s2733 + $0x38] sm:$0xf]
        %v3125 = vld [vmem:[%s2733 + $0x3c] sm:$0x1]
        %v3127 = vshrl.u32 %v3110, 16
        %v3129 = vrot.slane %v3127, 4
        %v3130 = vshll.u32 %v3110, 16
        %v3132 = vrot.slane %v3130, 5
        %v3133 = vor.u32 %v3129, %v3132
        %v3134 = vrot.slane %v3133, 4
        %v3136 = vshll.u32 %v3111, 16
        %v3138 = vrot.slane %v3136, 5
        %v3139 = vsel %vm1613, %v3134, %v3138
        %v3141 = vshrl.u32 %v3112, 16
        %v3143 = vrot.slane %v3141, 4
        %v3144 = vshll.u32 %v3112, 16
        %v3146 = vrot.slane %v3144, 5
        %v3147 = vor.u32 %v3143, %v3146
        %v3148 = vrot.slane %v3147, 4
        %v3150 = vshll.u32 %v3113, 16
        %v3152 = vrot.slane %v3150, 5
        %v3153 = vsel %vm1613, %v3148, %v3152
        %v3155 = vshrl.u32 %v3114, 16
        %v3157 = vrot.slane %v3155, 4
        %v3158 = vshll.u32 %v3114, 16
        %v3160 = vrot.slane %v3158, 5
        %v3161 = vor.u32 %v3157, %v3160
        %v3162 = vrot.slane %v3161, 4
        %v3164 = vshll.u32 %v3115, 16
        %v3166 = vrot.slane %v3164, 5
        %v3167 = vsel %vm1613, %v3162, %v3166
        %v3169 = vshrl.u32 %v3116, 16
        %v3171 = vrot.slane %v3169, 4
        %v3172 = vshll.u32 %v3116, 16
        %v3174 = vrot.slane %v3172, 5
        %v3175 = vor.u32 %v3171, %v3174
        %v3176 = vrot.slane %v3175, 4
        %v3178 = vshll.u32 %v3117, 16
        %v3180 = vrot.slane %v3178, 5
        %v3181 = vsel %vm1613, %v3176, %v3180
        %v3183 = vshrl.u32 %v3118, 16
        %v3185 = vrot.slane %v3183, 4
        %v3186 = vshll.u32 %v3118, 16
        %v3188 = vrot.slane %v3186, 5
        %v3189 = vor.u32 %v3185, %v3188
        %v3190 = vrot.slane %v3189, 4
        %v3192 = vshll.u32 %v3119, 16
        %v3194 = vrot.slane %v3192, 5
        %v3195 = vsel %vm1613, %v3190, %v3194
        %v3197 = vshrl.u32 %v3120, 16
        %v3199 = vrot.slane %v3197, 4
        %v3200 = vshll.u32 %v3120, 16
        %v3202 = vrot.slane %v3200, 5
        %v3203 = vor.u32 %v3199, %v3202
        %v3204 = vrot.slane %v3203, 4
        %v3206 = vshll.u32 %v3121, 16
        %v3208 = vrot.slane %v3206, 5
        %v3209 = vsel %vm1613, %v3204, %v3208
        %v3211 = vshrl.u32 %v3122, 16
        %v3213 = vrot.slane %v3211, 4
        %v3214 = vshll.u32 %v3122, 16
        %v3216 = vrot.slane %v3214, 5
        %v3217 = vor.u32 %v3213, %v3216
        %v3218 = vrot.slane %v3217, 4
        %v3220 = vshll.u32 %v3123, 16
        %v3222 = vrot.slane %v3220, 5
        %v3223 = vsel %vm1613, %v3218, %v3222
        %v3225 = vshrl.u32 %v3124, 16
        %v3227 = vrot.slane %v3225, 4
        %v3228 = vshll.u32 %v3124, 16
        %v3230 = vrot.slane %v3228, 5
        %v3231 = vor.u32 %v3227, %v3230
        %v3232 = vrot.slane %v3231, 4
        %v3234 = vshll.u32 %v3125, 16
        %v3236 = vrot.slane %v3234, 5
        %v3237 = vsel %vm1613, %v3232, %v3236
        %v3238 = vunpack.c.l.b16 %v3139
        %v3239 = vunpack.c.l.b16 %v3153
        %v3240 = vunpack.c.l.b16 %v3167
        %v3241 = vunpack.c.l.b16 %v3181
        %v3242 = vunpack.c.l.b16 %v3195
        %v3243 = vunpack.c.l.b16 %v3209
        %v3244 = vunpack.c.l.b16 %v3223
        %v3245 = vunpack.c.l.b16 %v3237
        %v3246 = vpack.c.b16 %v3239, %v3238
        %v3247 = vpack.c.b16 %v3241, %v3240
        %v3248 = vpack.c.b16 %v3243, %v3242
        %v3249 = vpack.c.b16 %v3245, %v3244
        %3250 = vrot.lane.b32.xlu0 %v3246, 64
        %v3251 = vpop.permute.xlu0 %3250
        %3252 = vrot.lane.b32.xlu0 %v3247, 64
        %v3253 = vpop.permute.xlu0 %3252
        %3254 = vrot.lane.b32.xlu0 %v3248, 64
        %v3255 = vpop.permute.xlu0 %3254
        %3256 = vrot.lane.b32.xlu0 %v3249, 64
        %v3257 = vpop.permute.xlu0 %3256
        %3262 = vst.msk [vmem:[#allocation5] sm:$0xff] %vm2048, %v3251
        %3263 = vst.msk [vmem:[#allocation5 + $0x10] sm:$0xff] %vm2048, %v3253
        %3264 = vst.msk [vmem:[#allocation5 + $0x20] sm:$0xff] %vm2048, %v3255
        %3265 = vst.msk [vmem:[#allocation5 + $0x30] sm:$0xff] %vm2048, %v3257
        %v3266 = vld [vmem:[%s2733] sm:$0xe]
        %v3267 = vld [vmem:[%s2733 + $0x4] sm:$0x1]
        %v3268 = vld [vmem:[%s2733 + $0x8] sm:$0xe]
        %v3269 = vld [vmem:[%s2733 + $0xc] sm:$0x1]
        %v3270 = vld [vmem:[%s2733 + $0x10] sm:$0xe]
        %v3271 = vld [vmem:[%s2733 + $0x14] sm:$0x1]
        %v3272 = vld [vmem:[%s2733 + $0x18] sm:$0xe]
        %v3273 = vld [vmem:[%s2733 + $0x1c] sm:$0x1]
        %v3274 = vld [vmem:[%s2733 + $0x20] sm:$0xe]
        %v3275 = vld [vmem:[%s2733 + $0x24] sm:$0x1]
        %v3276 = vld [vmem:[%s2733 + $0x28] sm:$0xe]
        %v3277 = vld [vmem:[%s2733 + $0x2c] sm:$0x1]
        %v3278 = vld [vmem:[%s2733 + $0x30] sm:$0xe]
        %v3279 = vld [vmem:[%s2733 + $0x34] sm:$0x1]
        %v3280 = vld [vmem:[%s2733 + $0x38] sm:$0xe]
        %v3281 = vld [vmem:[%s2733 + $0x3c] sm:$0x1]
        %v3298 = vrot.slane %v3266, 5
        %v3299 = vrot.slane %v3298, 4
        %v3300 = vrot.slane %v3267, 5
        %v3301 = vsel %vm1789, %v3299, %v3300
        %v3302 = vrot.slane %v3268, 5
        %v3303 = vrot.slane %v3302, 4
        %v3304 = vrot.slane %v3269, 5
        %v3305 = vsel %vm1789, %v3303, %v3304
        %v3306 = vrot.slane %v3270, 5
        %v3307 = vrot.slane %v3306, 4
        %v3308 = vrot.slane %v3271, 5
        %v3309 = vsel %vm1789, %v3307, %v3308
        %v3310 = vrot.slane %v3272, 5
        %v3311 = vrot.slane %v3310, 4
        %v3312 = vrot.slane %v3273, 5
        %v3313 = vsel %vm1789, %v3311, %v3312
        %v3314 = vrot.slane %v3274, 5
        %v3315 = vrot.slane %v3314, 4
        %v3316 = vrot.slane %v3275, 5
        %v3317 = vsel %vm1789, %v3315, %v3316
        %v3318 = vrot.slane %v3276, 5
        %v3319 = vrot.slane %v3318, 4
        %v3320 = vrot.slane %v3277, 5
        %v3321 = vsel %vm1789, %v3319, %v3320
        %v3322 = vrot.slane %v3278, 5
        %v3323 = vrot.slane %v3322, 4
        %v3324 = vrot.slane %v3279, 5
        %v3325 = vsel %vm1789, %v3323, %v3324
        %v3326 = vrot.slane %v3280, 5
        %v3327 = vrot.slane %v3326, 4
        %v3328 = vrot.slane %v3281, 5
        %v3329 = vsel %vm1789, %v3327, %v3328
        %v3330 = vunpack.c.l.b16 %v3301
        %v3331 = vunpack.c.l.b16 %v3305
        %v3332 = vunpack.c.l.b16 %v3309
        %v3333 = vunpack.c.l.b16 %v3313
        %v3334 = vunpack.c.l.b16 %v3317
        %v3335 = vunpack.c.l.b16 %v3321
        %v3336 = vunpack.c.l.b16 %v3325
        %v3337 = vunpack.c.l.b16 %v3329
        %v3338 = vpack.c.b16 %v3331, %v3330
        %v3339 = vpack.c.b16 %v3333, %v3332
        %v3340 = vpack.c.b16 %v3335, %v3334
        %v3341 = vpack.c.b16 %v3337, %v3336
        %3342 = vrot.lane.b32.xlu0 %v3338, 80
        %v3343 = vpop.permute.xlu0 %3342
        %3344 = vrot.lane.b32.xlu0 %v3339, 80
        %v3345 = vpop.permute.xlu0 %3344
        %3346 = vrot.lane.b32.xlu0 %v3340, 80
        %v3347 = vpop.permute.xlu0 %3346
        %3348 = vrot.lane.b32.xlu0 %v3341, 80
        %v3349 = vpop.permute.xlu0 %3348
        %3354 = vst.msk [vmem:[#allocation5] sm:$0xff] %vm2141, %v3343
        %3355 = vst.msk [vmem:[#allocation5 + $0x10] sm:$0xff] %vm2141, %v3345
        %3356 = vst.msk [vmem:[#allocation5 + $0x20] sm:$0xff] %vm2141, %v3347
        %3357 = vst.msk [vmem:[#allocation5 + $0x30] sm:$0xff] %vm2141, %v3349
        %s3358 = scalar_lea.vmem [#allocation3], 16
        %v3359 = vld [vmem:[%s3358] sm:$0xf]
        %v3360 = vld [vmem:[%s3358 + $0x8] sm:$0xf]
        %v3361 = vld [vmem:[%s3358 + $0x10] sm:$0xf]
        %v3362 = vld [vmem:[%s3358 + $0x18] sm:$0xf]
        %v3363 = vld [vmem:[%s3358 + $0x20] sm:$0xf]
        %v3364 = vld [vmem:[%s3358 + $0x28] sm:$0xf]
        %v3365 = vld [vmem:[%s3358 + $0x30] sm:$0xf]
        %v3366 = vld [vmem:[%s3358 + $0x38] sm:$0xf]
        %v3375 = vunpack.c.l.b16 %v3359
        %v3376 = vunpack.c.l.b16 %v3360
        %v3377 = vunpack.c.l.b16 %v3361
        %v3378 = vunpack.c.l.b16 %v3362
        %v3379 = vunpack.c.l.b16 %v3363
        %v3380 = vunpack.c.l.b16 %v3364
        %v3381 = vunpack.c.l.b16 %v3365
        %v3382 = vunpack.c.l.b16 %v3366
        %v3383 = vpack.c.b16 %v3376, %v3375
        %v3384 = vpack.c.b16 %v3378, %v3377
        %v3385 = vpack.c.b16 %v3380, %v3379
        %v3386 = vpack.c.b16 %v3382, %v3381
        %3387 = vrot.lane.b32.xlu0 %v3383, 96
        %v3388 = vpop.permute.xlu0 %3387
        %3389 = vrot.lane.b32.xlu0 %v3384, 96
        %v3390 = vpop.permute.xlu0 %3389
        %3391 = vrot.lane.b32.xlu0 %v3385, 96
        %v3392 = vpop.permute.xlu0 %3391
        %3393 = vrot.lane.b32.xlu0 %v3386, 96
        %v3394 = vpop.permute.xlu0 %3393
        %3399 = vst.msk [vmem:[#allocation5] sm:$0xff] %vm2187, %v3388
        %3400 = vst.msk [vmem:[#allocation5 + $0x10] sm:$0xff] %vm2187, %v3390
        %3401 = vst.msk [vmem:[#allocation5 + $0x20] sm:$0xff] %vm2187, %v3392
        %3402 = vst.msk [vmem:[#allocation5 + $0x30] sm:$0xff] %vm2187, %v3394
        %v3403 = vld [vmem:[%s3358] sm:$0xf]
        %v3404 = vld [vmem:[%s3358 + $0x4] sm:$0x1]
        %v3405 = vld [vmem:[%s3358 + $0x8] sm:$0xf]
        %v3406 = vld [vmem:[%s3358 + $0xc] sm:$0x1]
        %v3407 = vld [vmem:[%s3358 + $0x10] sm:$0xf]
        %v3408 = vld [vmem:[%s3358 + $0x14] sm:$0x1]
        %v3409 = vld [vmem:[%s3358 + $0x18] sm:$0xf]
        %v3410 = vld [vmem:[%s3358 + $0x1c] sm:$0x1]
        %v3411 = vld [vmem:[%s3358 + $0x20] sm:$0xf]
        %v3412 = vld [vmem:[%s3358 + $0x24] sm:$0x1]
        %v3413 = vld [vmem:[%s3358 + $0x28] sm:$0xf]
        %v3414 = vld [vmem:[%s3358 + $0x2c] sm:$0x1]
        %v3415 = vld [vmem:[%s3358 + $0x30] sm:$0xf]
        %v3416 = vld [vmem:[%s3358 + $0x34] sm:$0x1]
        %v3417 = vld [vmem:[%s3358 + $0x38] sm:$0xf]
        %v3418 = vld [vmem:[%s3358 + $0x3c] sm:$0x1]
        %v3420 = vshrl.u32 %v3403, 16
        %v3422 = vrot.slane %v3420, 4
        %v3423 = vshll.u32 %v3403, 16
        %v3425 = vrot.slane %v3423, 5
        %v3426 = vor.u32 %v3422, %v3425
        %v3427 = vrot.slane %v3426, 4
        %v3429 = vshll.u32 %v3404, 16
        %v3431 = vrot.slane %v3429, 5
        %v3432 = vsel %vm1613, %v3427, %v3431
        %v3434 = vshrl.u32 %v3405, 16
        %v3436 = vrot.slane %v3434, 4
        %v3437 = vshll.u32 %v3405, 16
        %v3439 = vrot.slane %v3437, 5
        %v3440 = vor.u32 %v3436, %v3439
        %v3441 = vrot.slane %v3440, 4
        %v3443 = vshll.u32 %v3406, 16
        %v3445 = vrot.slane %v3443, 5
        %v3446 = vsel %vm1613, %v3441, %v3445
        %v3448 = vshrl.u32 %v3407, 16
        %v3450 = vrot.slane %v3448, 4
        %v3451 = vshll.u32 %v3407, 16
        %v3453 = vrot.slane %v3451, 5
        %v3454 = vor.u32 %v3450, %v3453
        %v3455 = vrot.slane %v3454, 4
        %v3457 = vshll.u32 %v3408, 16
        %v3459 = vrot.slane %v3457, 5
        %v3460 = vsel %vm1613, %v3455, %v3459
        %v3462 = vshrl.u32 %v3409, 16
        %v3464 = vrot.slane %v3462, 4
        %v3465 = vshll.u32 %v3409, 16
        %v3467 = vrot.slane %v3465, 5
        %v3468 = vor.u32 %v3464, %v3467
        %v3469 = vrot.slane %v3468, 4
        %v3471 = vshll.u32 %v3410, 16
        %v3473 = vrot.slane %v3471, 5
        %v3474 = vsel %vm1613, %v3469, %v3473
        %v3476 = vshrl.u32 %v3411, 16
        %v3478 = vrot.slane %v3476, 4
        %v3479 = vshll.u32 %v3411, 16
        %v3481 = vrot.slane %v3479, 5
        %v3482 = vor.u32 %v3478, %v3481
        %v3483 = vrot.slane %v3482, 4
        %v3485 = vshll.u32 %v3412, 16
        %v3487 = vrot.slane %v3485, 5
        %v3488 = vsel %vm1613, %v3483, %v3487
        %v3490 = vshrl.u32 %v3413, 16
        %v3492 = vrot.slane %v3490, 4
        %v3493 = vshll.u32 %v3413, 16
        %v3495 = vrot.slane %v3493, 5
        %v3496 = vor.u32 %v3492, %v3495
        %v3497 = vrot.slane %v3496, 4
        %v3499 = vshll.u32 %v3414, 16
        %v3501 = vrot.slane %v3499, 5
        %v3502 = vsel %vm1613, %v3497, %v3501
        %v3504 = vshrl.u32 %v3415, 16
        %v3506 = vrot.slane %v3504, 4
        %v3507 = vshll.u32 %v3415, 16
        %v3509 = vrot.slane %v3507, 5
        %v3510 = vor.u32 %v3506, %v3509
        %v3511 = vrot.slane %v3510, 4
        %v3513 = vshll.u32 %v3416, 16
        %v3515 = vrot.slane %v3513, 5
        %v3516 = vsel %vm1613, %v3511, %v3515
        %v3518 = vshrl.u32 %v3417, 16
        %v3520 = vrot.slane %v3518, 4
        %v3521 = vshll.u32 %v3417, 16
        %v3523 = vrot.slane %v3521, 5
        %v3524 = vor.u32 %v3520, %v3523
        %v3525 = vrot.slane %v3524, 4
        %v3527 = vshll.u32 %v3418, 16
        %v3529 = vrot.slane %v3527, 5
        %v3530 = vsel %vm1613, %v3525, %v3529
        %v3531 = vunpack.c.l.b16 %v3432
        %v3532 = vunpack.c.l.b16 %v3446
        %v3533 = vunpack.c.l.b16 %v3460
        %v3534 = vunpack.c.l.b16 %v3474
        %v3535 = vunpack.c.l.b16 %v3488
        %v3536 = vunpack.c.l.b16 %v3502
        %v3537 = vunpack.c.l.b16 %v3516
        %v3538 = vunpack.c.l.b16 %v3530
        %v3539 = vpack.c.b16 %v3532, %v3531
        %v3540 = vpack.c.b16 %v3534, %v3533
        %v3541 = vpack.c.b16 %v3536, %v3535
        %v3542 = vpack.c.b16 %v3538, %v3537
        %3543 = vrot.lane.b32.xlu0 %v3539, 112
        %v3544 = vpop.permute.xlu0 %3543
        %3545 = vrot.lane.b32.xlu0 %v3540, 112
        %v3546 = vpop.permute.xlu0 %3545
        %3547 = vrot.lane.b32.xlu0 %v3541, 112
        %v3548 = vpop.permute.xlu0 %3547
        %3549 = vrot.lane.b32.xlu0 %v3542, 112
        %v3550 = vpop.permute.xlu0 %3549
        %3555 = vst.msk [vmem:[#allocation5] sm:$0xff] %vm2344, %v3544
        %3556 = vst.msk [vmem:[#allocation5 + $0x10] sm:$0xff] %vm2344, %v3546
        %3557 = vst.msk [vmem:[#allocation5 + $0x20] sm:$0xff] %vm2344, %v3548
        %3558 = vst.msk [vmem:[#allocation5 + $0x30] sm:$0xff] %vm2344, %v3550
        %v3559 = vld [vmem:[%s3358] sm:$0xe]
        %v3560 = vld [vmem:[%s3358 + $0x4] sm:$0x1]
        %v3561 = vld [vmem:[%s3358 + $0x8] sm:$0xe]
        %v3562 = vld [vmem:[%s3358 + $0xc] sm:$0x1]
        %v3563 = vld [vmem:[%s3358 + $0x10] sm:$0xe]
        %v3564 = vld [vmem:[%s3358 + $0x14] sm:$0x1]
        %v3565 = vld [vmem:[%s3358 + $0x18] sm:$0xe]
        %v3566 = vld [vmem:[%s3358 + $0x1c] sm:$0x1]
        %v3567 = vld [vmem:[%s3358 + $0x20] sm:$0xe]
        %v3568 = vld [vmem:[%s3358 + $0x24] sm:$0x1]
        %v3569 = vld [vmem:[%s3358 + $0x28] sm:$0xe]
        %v3570 = vld [vmem:[%s3358 + $0x2c] sm:$0x1]
        %v3571 = vld [vmem:[%s3358 + $0x30] sm:$0xe]
        %v3572 = vld [vmem:[%s3358 + $0x34] sm:$0x1]
        %v3573 = vld [vmem:[%s3358 + $0x38] sm:$0xe]
        %v3574 = vld [vmem:[%s3358 + $0x3c] sm:$0x1]
        %v3591 = vrot.slane %v3559, 5
        %v3592 = vrot.slane %v3591, 4
        %v3593 = vrot.slane %v3560, 5
        %v3594 = vsel %vm1789, %v3592, %v3593
        %v3595 = vrot.slane %v3561, 5
        %v3596 = vrot.slane %v3595, 4
        %v3597 = vrot.slane %v3562, 5
        %v3598 = vsel %vm1789, %v3596, %v3597
        %v3599 = vrot.slane %v3563, 5
        %v3600 = vrot.slane %v3599, 4
        %v3601 = vrot.slane %v3564, 5
        %v3602 = vsel %vm1789, %v3600, %v3601
        %v3603 = vrot.slane %v3565, 5
        %v3604 = vrot.slane %v3603, 4
        %v3605 = vrot.slane %v3566, 5
        %v3606 = vsel %vm1789, %v3604, %v3605
        %v3607 = vrot.slane %v3567, 5
        %v3608 = vrot.slane %v3607, 4
        %v3609 = vrot.slane %v3568, 5
        %v3610 = vsel %vm1789, %v3608, %v3609
        %v3611 = vrot.slane %v3569, 5
        %v3612 = vrot.slane %v3611, 4
        %v3613 = vrot.slane %v3570, 5
        %v3614 = vsel %vm1789, %v3612, %v3613
        %v3615 = vrot.slane %v3571, 5
        %v3616 = vrot.slane %v3615, 4
        %v3617 = vrot.slane %v3572, 5
        %v3618 = vsel %vm1789, %v3616, %v3617
        %v3619 = vrot.slane %v3573, 5
        %v3620 = vrot.slane %v3619, 4
        %v3621 = vrot.slane %v3574, 5
        %v3622 = vsel %vm1789, %v3620, %v3621
        %v3623 = vunpack.c.l.b16 %v3594
        %v3624 = vunpack.c.l.b16 %v3598
        %v3625 = vunpack.c.l.b16 %v3602
        %v3626 = vunpack.c.l.b16 %v3606
        %v3627 = vunpack.c.l.b16 %v3610
        %v3628 = vunpack.c.l.b16 %v3614
        %v3629 = vunpack.c.l.b16 %v3618
        %v3630 = vunpack.c.l.b16 %v3622
        %v3631 = vpack.c.b16 %v3624, %v3623
        %v3632 = vpack.c.b16 %v3626, %v3625
        %v3633 = vpack.c.b16 %v3628, %v3627
        %v3634 = vpack.c.b16 %v3630, %v3629
        %3639 = vst.msk [vmem:[#allocation5 + $0x8] sm:$0xff] %vm572, %v3631
        %3640 = vst.msk [vmem:[#allocation5 + $0x18] sm:$0xff] %vm572, %v3632
        %3641 = vst.msk [vmem:[#allocation5 + $0x28] sm:$0xff] %vm572, %v3633
        %3642 = vst.msk [vmem:[#allocation5 + $0x38] sm:$0xff] %vm572, %v3634
        %v3643 = vld [vmem:[#allocation5] sm:$0xff]
        %v3644 = vld [vmem:[#allocation5 + $0x8] sm:$0xff]
        %v3645 = vld [vmem:[#allocation5 + $0x10] sm:$0xff]
        %v3646 = vld [vmem:[#allocation5 + $0x18] sm:$0xff]
        %v3647 = vld [vmem:[#allocation5 + $0x20] sm:$0xff]
        %v3648 = vld [vmem:[#allocation5 + $0x28] sm:$0xff]
        %v3649 = vld [vmem:[#allocation5 + $0x30] sm:$0xff]
        %v3650 = vld [vmem:[#allocation5 + $0x38] sm:$0xff]
        %v3652 = vsel %vm572, %v3644, 0
        %v3655 = vsel %vm572, %v3646, 0
        %v3658 = vsel %vm572, %v3648, 0
        %v3661 = vsel %vm572, %v3650, 0
        %3663 = vmatprep.subr.bf16.mxu0 0
        %3664 = vmatpush1.bf16.msra.mxu0 %v1315
        %3665 = vmatprep.subr.bf16.mxu0 0
        %3666 = vmatpush1.bf16.msra.mxu0 %v1316
        %3667 = vmatprep.subr.bf16.mxu0 0
        %3668 = vmatpush1.bf16.msra.mxu0 %v1317
        %3669 = vmatprep.subr.bf16.mxu0 0
        %3670 = vmatpush1.bf16.msra.mxu0 %v1318
        %3671 = vmatprep.subr.bf16.mxu0 0
        %3672 = vmatpush1.bf16.msra.mxu0 %v1319
        %3673 = vmatprep.subr.bf16.mxu0 0
        %3674 = vmatpush1.bf16.msra.mxu0 %v1320
        %3675 = vmatprep.subr.bf16.mxu0 0
        %3676 = vmatpush1.bf16.msra.mxu0 %v1321
        %3677 = vmatprep.subr.bf16.mxu0 0
        %3678 = vmatpush1.bf16.msra.mxu0 %v1322
        %3679 = vmatprep.subr.bf16.mxu0 0
        %3680 = vmatpush1.bf16.msra.mxu0 %v1323
        %3681 = vmatprep.subr.bf16.mxu0 0
        %3682 = vmatpush1.bf16.msra.mxu0 0
        %3683 = vmatprep.subr.bf16.mxu0 0
        %3684 = vmatpush1.bf16.msra.mxu0 0
        %3685 = vmatprep.subr.bf16.mxu0 0
        %3686 = vmatpush1.bf16.msra.mxu0 0
        %3687 = vmatprep.subr.bf16.mxu0 0
        %3688 = vmatpush1.bf16.msra.mxu0 0
        %3689 = vmatprep.subr.bf16.mxu0 0
        %3690 = vmatpush1.bf16.msra.mxu0 0
        %3691 = vmatprep.subr.bf16.mxu0 0
        %3692 = vmatpush1.bf16.msra.mxu0 0
        %3693 = vmatprep.subr.bf16.mxu0 0
        %3694 = vmatpush1.bf16.msra.mxu0 0
        %3695 = vmatprep.mubr.bf16.mxu0 %v3652
        %3696 = vmatmul.mubr.bf16.gmra.mrb[0].mxu0 %v3643
        %v3697 = vpop.f32.mrb[0].mxu0
        %v3698 = vadd.f32 0.0, %v3697
        %v3699 = vpop.f32.mrb[0].mxu0
        %v3700 = vpop.f32.mrb[0].mxu0
        %v3701 = vadd.f32 0.0, %v3700
        %v3702 = vpop.f32.mrb[0].mxu0
        %3703 = vmatprep.mubr.bf16.mxu0 %v3655
        %3704 = vmatmul.mubr.bf16.gmra.mrb[0].mxu0 %v3645
        %v3705 = vpop.f32.mrb[0].mxu0
        %v3706 = vadd.f32 0.0, %v3705
        %v3707 = vpop.f32.mrb[0].mxu0
        %v3708 = vpop.f32.mrb[0].mxu0
        %v3709 = vadd.f32 0.0, %v3708
        %v3710 = vpop.f32.mrb[0].mxu0
        %3711 = vmatprep.mubr.bf16.mxu0 %v3658
        %3712 = vmatmul.mubr.bf16.gmra.mrb[0].mxu0 %v3647
        %v3713 = vpop.f32.mrb[0].mxu0
        %v3714 = vadd.f32 0.0, %v3713
        %v3715 = vpop.f32.mrb[0].mxu0
        %v3716 = vpop.f32.mrb[0].mxu0
        %v3717 = vadd.f32 0.0, %v3716
        %v3718 = vpop.f32.mrb[0].mxu0
        %3719 = vmatprep.mubr.bf16.mxu0 %v3661
        %3720 = vmatmul.mubr.bf16.gmra.mrb[0].mxu0 %v3649
        %v3721 = vpop.f32.mrb[0].mxu0
        %v3722 = vadd.f32 0.0, %v3721
        %v3723 = vpop.f32.mrb[0].mxu0
        %v3724 = vpop.f32.mrb[0].mxu0
        %v3725 = vadd.f32 0.0, %v3724
        %v3726 = vpop.f32.mrb[0].mxu0
        %3727 = vdwg.mxu0
        %v3728 = vld [vmem:[#allocation18] sm:$0x1]
        %v3730 = vlaneseq
        %v3731 = vshrl.u32 %v3730, 7
        %v3732 = vsub.s32 0, %v3731
        %v3733 = vrot.slane %v3728, %v3732
        %v3735 = vmul.f32 %v3698, %v3733
        %v3736 = vmul.f32 %v3701, %v3733
        %v3737 = vmul.f32 %v3706, %v3733
        %v3738 = vmul.f32 %v3709, %v3733
        %v3739 = vmul.f32 %v3714, %v3733
        %v3740 = vmul.f32 %v3717, %v3733
        %v3741 = vmul.f32 %v3722, %v3733
        %v3742 = vmul.f32 %v3725, %v3733
        %v3743 = vld [vmem:[#allocation20] sm:$0x1]
        %v3745 = vlaneseq
        %v3746 = vshrl.u32 %v3745, 7
        %v3747 = vsub.s32 0, %v3746
        %v3748 = vrot.slane %v3743, %v3747
        %v3750 = vadd.f32 %v3735, %v3748
        %v3751 = vadd.f32 %v3736, %v3748
        %v3752 = vadd.f32 %v3737, %v3748
        %v3753 = vadd.f32 %v3738, %v3748
        %v3754 = vadd.f32 %v3739, %v3748
        %v3755 = vadd.f32 %v3740, %v3748
        %v3756 = vadd.f32 %v3741, %v3748
        %v3757 = vadd.f32 %v3742, %v3748
        %v3758 = vadd.f32 %v3750, %v564
        %v3759 = vadd.f32 %v3751, %v565
        %v3760 = vadd.f32 %v3752, %v566
        %v3761 = vadd.f32 %v3753, %v567
        %v3762 = vadd.f32 %v3754, %v568
        %v3763 = vadd.f32 %v3755, %v569
        %v3764 = vadd.f32 %v3756, %v570
        %v3765 = vadd.f32 %v3757, %v571
        %v3766 = vmax.f32 %v3758, 0.0
        %v3767 = vmax.f32 %v3759, 0.0
        %v3768 = vmax.f32 %v3760, 0.0
        %v3769 = vmax.f32 %v3761, 0.0
        %v3770 = vmax.f32 %v3762, 0.0
        %v3771 = vmax.f32 %v3763, 0.0
        %v3772 = vmax.f32 %v3764, 0.0
        %v3773 = vmax.f32 %v3765, 0.0
        %3774 = vst.msk [vmem:[%s562] sm:$0xff] %vm572, %v3766
        %3775 = vst.msk [vmem:[%s562 + $0x8] sm:$0xff] %vm572, %v3767
        %3776 = vst.msk [vmem:[%s562 + $0x10] sm:$0xff] %vm572, %v3768
        %3777 = vst.msk [vmem:[%s562 + $0x18] sm:$0xff] %vm572, %v3769
        %3778 = vst.msk [vmem:[%s562 + $0x20] sm:$0xff] %vm572, %v3770
        %3779 = vst.msk [vmem:[%s562 + $0x28] sm:$0xff] %vm572, %v3771
        %3780 = vst.msk [vmem:[%s562 + $0x30] sm:$0xff] %vm572, %v3772
        %3781 = vst.msk [vmem:[%s562 + $0x38] sm:$0xff] %vm572, %v3773
        %s3782 = sand.u32 %s320, 1
        %s3783 = scalar_lea.sflag [#allocation8], %s3782
        %s3784 = sand.u32 %s320, 1
        %s3785 = smul.addr %s3784, 64
        %s3786 = scalar_lea.vmem [#allocation21], %s3785
        // Predicated region
        $region109: #{basic_block_forward.1} parent=71 // pred_check
          %p3787 = pneg %p330
        $region110: #{basic_block_forward.1} parent=71 // pred_check_branch
          %3789 = sbr.rel (%p3787) target = $region112
        $region111: #{basic_block_forward.1} parent=71 // pred_region
          %s3791 = ssub.s32 1024, 1024
          %3792 = vsyncadd %s3783, %s3791
          %s3793 = smul.addr %s34, 8
          %s3794 = smul.addr %s3793, 128
          %s3795 = scalar_lea.hbm %s13, %s3794
          %s3796 = sshll.u32 %s3786, 4
          %s3797 = int_to_ptr.vmem [resolvable:$true] %s3796
          %3802 = dma.vmem_to_hbm [thread:$0]  %s3797, 1024, %s3795, %s3783, 128, 128, 8
        $region112: #{basic_block_forward.1} parent=71 // pred_fallthru
          _
      $region72: #{basic_block_forward.1} parent=5 // pred_fallthru
        _
      %p3803 = scmp.le.s32.totalorder 2, %s29
      // Predicated region
      $region113: #{basic_block_forward.1} parent=5 // pred_check
        %p3804 = pneg %p3803
      $region114: #{basic_block_forward.1} parent=5 // pred_check_branch
        %3806 = sbr.rel (%p3804) target = $region116
      $region115: #{basic_block_forward.1} parent=5 // pred_region
        %s3807 = ssub.s32 %s29, 2
        // Predicated region
        $region117: #{basic_block_forward.1} parent=115 // pred_check
          %p3808 = pneg %p336
        $region118: #{basic_block_forward.1} parent=115 // pred_check_branch
          %3810 = sbr.rel (%p3808) target = $region120
        $region119: #{basic_block_forward.1} parent=115 // pred_region
          %s3811 = sand.u32 %s321, 1
          %s3812 = scalar_lea.sflag [#allocation8], %s3811
          %s3813 = sand.u32 %s321, 1
          %s3814 = smul.addr %s3813, 64
          %s3815 = scalar_lea.vmem [#allocation21], %s3814
          %3816 = dma.done %s3812, 1024
        $region120: #{basic_block_forward.1} parent=115 // pred_fallthru
          _
      $region116: #{basic_block_forward.1} parent=5 // pred_fallthru
        _
    $region6: #{basic_block_forward.1} parent=1 // loop_footer
      %s33 = sadd.s32 1, %s29
    $region7: #{basic_block_forward.1} parent=1 // loop_footer_branch
      %28 = sbr.rel target = $region3
    $region8: #{basic_block_forward.1} parent=1 // loop_exit
      _
    %3817 = vsyncpa [#allocation7], 1
    %s3818 = scalar_lea.sflag [#allocation7], 1
    %3819 = vsyncpa %s3818, 1
    %3820 = vsyncpa [#allocation10], 1
    %3821 = vsyncpa [#allocation13], 1
    %3822 = vsyncpa [#allocation16], 1
    %3823 = vsyncpa [#allocation19], 1
    %3824 = vsyncpa [#allocation8], 1
    %s3825 = scalar_lea.sflag [#allocation8], 1
    %3826 = vsyncpa %s3825, 1

</llo_original>
